<compile_context>
chip_gen: v5e
topology: v5e:2x2
jax: 0.10.0
libtpu: 0.0.40
codegen_flags: <defaults>
</compile_context>

<pallas_src>
import functools

import jax
import jax.numpy as jnp
from jax.experimental import pallas as pl
from jax.experimental.pallas import tpu as pltpu

LANE = 128


def _round_up(x, m):
    return (x + m - 1) // m * m


def _gemm_bn_act_kernel(*refs, m_total, bn_eps, tm, has_skip, use_cache):
    """Fused (im2col GEMM) conv + train-mode BN + optional skip + LeakyReLU.

    Grid = (2, n_row_tiles):
      phase 0: conv tile -> per-channel sum / sumsq (BN stats), cache conv tile in VMEM
      phase 1: conv tile (from cache, or recompute fallback) -> normalize
               (+skip, per-channel-slope LeakyReLU) -> lane-dense store
    """
    it = iter(refs)
    p_ref = next(it)        # (TM, K)   bf16 im2col patches
    w_ref = next(it)        # (K, Cp)   bf16 weights
    g_ref = next(it)        # (1, Cp)   f32 gamma
    b_ref = next(it)        # (1, Cp)   f32 beta
    a_ref = next(it)        # (1, Cp)   f32 LeakyReLU negative slope (1.0 == no act)
    s_ref = next(it) if has_skip else None   # (TM, Cp) bf16 skip
    o_ref = next(it)        # (TM, Cp)  output
    sum_ref = next(it)      # (1, Cp)   f32 scratch (per-channel sum)
    sq_ref = next(it)       # (1, Cp)   f32 scratch (per-channel sumsq)
    cache_ref = next(it) if use_cache else None   # (n_tiles*TM, Cp) bf16 scratch

    phase = pl.program_id(0)
    tile = pl.program_id(1)

    @pl.when(jnp.logical_and(phase == 0, tile == 0))
    def _init():
        sum_ref[...] = jnp.zeros_like(sum_ref)
        sq_ref[...] = jnp.zeros_like(sq_ref)

    @pl.when(phase == 0)
    def _stats():
        conv = jnp.dot(p_ref[...], w_ref[...], preferred_element_type=jnp.float32)
        if use_cache:
            row0 = pl.multiple_of(tile * tm, tm)
            cache_ref[pl.ds(row0, tm), :] = conv.astype(cache_ref.dtype)
        sum_ref[...] += jnp.sum(conv, axis=0, keepdims=True)
        sq_ref[...] += jnp.sum(conv * conv, axis=0, keepdims=True)

    @pl.when(phase == 1)
    def _normalize():
        if use_cache:
            row0 = pl.multiple_of(tile * tm, tm)
            conv = cache_ref[pl.ds(row0, tm), :].astype(jnp.float32)
        else:
            conv = jnp.dot(p_ref[...], w_ref[...], preferred_element_type=jnp.float32)
        inv_m = jnp.float32(1.0 / m_total)
        mean = sum_ref[...] * inv_m                         # (1, Cp)
        var = jnp.maximum(sq_ref[...] * inv_m - mean * mean, 0.0)
        scale = g_ref[...] * jax.lax.rsqrt(var + bn_eps)    # (1, Cp)
        shift = b_ref[...] - mean * scale
        y = conv * scale + shift                            # (TM, Cp), lane-dense, f32
        if has_skip:
            y = y + s_ref[...].astype(jnp.float32)
        y = jnp.where(y >= 0, y, a_ref[...] * y)            # per-channel slope
        o_ref[...] = y.astype(o_ref.dtype)


def _vmem_plan(tm, k, cp, n_tiles, has_skip, out_itemsize):
    """Decide whether the conv-tile cache fits and derive vmem_limit_bytes from the
    actual footprint (capped at 48 MiB for v7x's 64 MiB physical VMEM; >=32 MiB floor
    so big tiles are not blocked on v5e/v6e)."""
    bf16 = 2
    patch_tile = tm * k * bf16
    out_tile = tm * cp * out_itemsize
    skip_tile = tm * cp * bf16 if has_skip else 0
    w_bytes = _round_up(k, LANE) * cp * bf16
    base = 2 * (patch_tile + out_tile + skip_tile + w_bytes) + (1 << 16)
    cache_bytes = n_tiles * tm * cp * bf16
    use_cache = base + cache_bytes <= (40 << 20)
    need = base + (cache_bytes if use_cache else 0)
    vmem_limit = min(max(int(need * 1.25) + (4 << 20), 32 << 20), 48 << 20)
    return use_cache, vmem_limit


def _fused_conv_bn_act(patches, w2d, gamma, beta, slope, skip=None, *,
                       bn_eps=1e-5, out_dtype=jnp.bfloat16):
    """patches: (M, K) im2col matrix; w2d: (K, C); gamma/beta/slope: (C,).

    Returns a lane-padded (M, Cp) array (Cp = round_up(C, 128)); the caller slices
    the channel axis.  `skip` (if given) must already be (M, Cp) and is added after
    batch-norm, before the per-channel LeakyReLU (slope 1.0 == no activation).
    GEMM operands are bf16; accumulation / BN math is f32.
    """
    m, k = patches.shape
    c_total = w2d.shape[1]
    cp = _round_up(c_total, LANE)
    has_skip = skip is not None

    # Channel (lane) padding only: output must stay lane-dense for unmasked vst.
    # K stays unpadded in HBM (Mosaic pads MXU operands in VMEM for free).
    w_p = jnp.pad(w2d.astype(jnp.bfloat16), ((0, 0), (0, cp - c_total)))
    g_p = jnp.pad(gamma.astype(jnp.float32).reshape(1, c_total),
                  ((0, 0), (0, cp - c_total)))
    b_p = jnp.pad(beta.astype(jnp.float32).reshape(1, c_total),
                  ((0, 0), (0, cp - c_total)))
    a_p = jnp.pad(slope.astype(jnp.float32).reshape(1, c_total),
                  ((0, 0), (0, cp - c_total)), constant_values=1.0)

    # Big row tiles (512) for HBM-roofline efficiency; pad M up so the grid covers it.
    # Zero-padded rows contribute exactly 0 to the BN sums (conv of a zero patch is 0)
    # and we divide by the true M, so the statistics stay correct.
    tm = min(512, _round_up(m, 16))
    n_tiles = (m + tm - 1) // tm
    m_pad = n_tiles * tm
    patches_p = jnp.pad(patches.astype(jnp.bfloat16), ((0, m_pad - m), (0, 0)))
    if has_skip:
        assert skip.shape == (m, cp), (skip.shape, (m, cp))
        skip_p = jnp.pad(skip.astype(jnp.bfloat16), ((0, m_pad - m), (0, 0)))

    use_cache, vmem_limit = _vmem_plan(tm, k, cp, n_tiles, has_skip,
                                       jnp.dtype(out_dtype).itemsize)

    kernel = functools.partial(_gemm_bn_act_kernel, m_total=m, bn_eps=bn_eps,
                               tm=tm, has_skip=has_skip, use_cache=use_cache)

    # With the conv cache, phase 1 never touches the patches -> pin the patch block to
    # 0 during phase 1 so the big (TM, K) tiles are DMA'd from HBM only once.
    patch_map = (lambda p, t: ((1 - p) * t, 0)) if use_cache else (lambda p, t: (t, 0))

    in_specs = [
        pl.BlockSpec((tm, k), patch_map),               # patches
        pl.BlockSpec((k, cp), lambda p, t: (0, 0)),     # weights (resident)
        pl.BlockSpec((1, cp), lambda p, t: (0, 0)),     # gamma
        pl.BlockSpec((1, cp), lambda p, t: (0, 0)),     # beta
        pl.BlockSpec((1, cp), lambda p, t: (0, 0)),     # per-channel slope
    ]
    args = [patches_p, w_p, g_p, b_p, a_p]
    if has_skip:
        # Only consumed in phase 1; p*t pins it to block 0 during the stats pass.
        in_specs.append(pl.BlockSpec((tm, cp), lambda p, t: (p * t, 0)))
        args.append(skip_p)

    scratch_shapes = [pltpu.VMEM((1, cp), jnp.float32),   # per-channel sum
                      pltpu.VMEM((1, cp), jnp.float32)]   # per-channel sumsq
    if use_cache:
        scratch_shapes.append(pltpu.VMEM((n_tiles * tm, cp), jnp.bfloat16))

    out = pl.pallas_call(
        kernel,
        out_shape=jax.ShapeDtypeStruct((m_pad, cp), out_dtype),
        grid=(2, n_tiles),
        in_specs=in_specs,
        # p*t keeps the output block pinned during phase 0 so only phase-1 results
        # are ever written back to HBM (no garbage writebacks).
        out_specs=pl.BlockSpec((tm, cp), lambda p, t: (p * t, 0)),
        scratch_shapes=scratch_shapes,
        compiler_params=pltpu.CompilerParams(
            # Both axes sequential: phase 1 depends on phase-0 stats / cache held in
            # resident VMEM scratch.  (See v7x TODO at top of file.)
            dimension_semantics=("arbitrary", "arbitrary"),
            vmem_limit_bytes=vmem_limit,
        ),
    )(*args)
    return out[:m]


def _im2col(x_nhwc, kh, kw, stride, padding):
    """Wrapper glue: (N,H,W,C) -> ((N*Ho*Wo), KH*KW*C) patch matrix (input dtype)."""
    n, h, w, c = x_nhwc.shape
    xp = jnp.pad(x_nhwc, ((0, 0), (padding, padding), (padding, padding), (0, 0)))
    ho = (h + 2 * padding - kh) // stride + 1
    wo = (w + 2 * padding - kw) // stride + 1
    cols = []
    for dy in range(kh):
        for dx in range(kw):
            cols.append(xp[:, dy:dy + (ho - 1) * stride + 1:stride,
                           dx:dx + (wo - 1) * stride + 1:stride, :])
    patches = jnp.concatenate(cols, axis=-1)            # (N, Ho, Wo, KH*KW*C)
    return patches.reshape(n * ho * wo, kh * kw * c), ho, wo


def _w_to_gemm(w_oihw):
    """(Cout, Cin, KH, KW) -> (KH*KW*Cin, Cout) matching the im2col layout."""
    cout, cin, kh, kw = w_oihw.shape
    return jnp.transpose(w_oihw, (2, 3, 1, 0)).reshape(kh * kw * cin, cout)


def _pad_cols(a, c):
    return jnp.pad(a, ((0, 0), (0, c - a.shape[1])))


def _pad_vec(v, c):
    return jnp.pad(v.astype(jnp.float32), (0, c - v.shape[0]))


def residual_forward(x_nchw, params, *, stride=1, padding=1, bn_eps=1e-5,
                     lrelu_eps=0.01):
    """Residual.forward: leaky_relu(BN2(conv2(CBA1(x))) + residual(x), 0.01)."""
    n, cin, h, w = x_nchw.shape
    w1, g1, b1 = params["conv1"]
    w2, g2, b2 = params["conv2"]
    cout = w1.shape[0]
    cp = _round_up(cout, LANE)

    # bf16 operands end-to-end (f32 accumulation happens inside the kernel).
    x_nhwc = jnp.transpose(x_nchw, (0, 2, 3, 1)).astype(jnp.bfloat16)

    kh1, kw1 = w1.shape[2], w1.shape[3]
    p1, ho, wo = _im2col(x_nhwc, kh1, kw1, stride, padding)
    m = n * ho * wo
    w1g = _w_to_gemm(w1)

    if "res" in params:                 # c_in != c_out or stride != 1
        wr, gr, br = params["res"]
        # conv1 and the residual conv share the same im2col patches -> fuse them into
        # one (K, 2*Cp) GEMM: patches are streamed from HBM once and the MXU N-width
        # is 256 (fills v6e/v7x's 256-wide MXU).  Per-channel slope handles the
        # differing activations (0.01 for conv1, 1.0 == none for the residual branch).
        w_cat = jnp.concatenate([_pad_cols(w1g, cp), _pad_cols(_w_to_gemm(wr), cp)], axis=1)
        g_cat = jnp.concatenate([_pad_vec(g1, cp), _pad_vec(gr, cp)])
        b_cat = jnp.concatenate([_pad_vec(b1, cp), _pad_vec(br, cp)])
        a_cat = jnp.concatenate([jnp.full((cp,), lrelu_eps, jnp.float32),
                                 jnp.ones((cp,), jnp.float32)])
        y = _fused_conv_bn_act(p1, w_cat, g_cat, b_cat, a_cat,
                               bn_eps=bn_eps, out_dtype=jnp.bfloat16)
        y1_p = y[:, :cp]                # conv1 output (lane-padded, bf16)
        r_p = y[:, cp:]                 # residual-branch output (lane-padded, bf16)
    else:                               # identity shortcut
        a1 = jnp.full((cout,), lrelu_eps, jnp.float32)
        y1_p = _fused_conv_bn_act(p1, w1g, g1, b1, a1,
                                  bn_eps=bn_eps, out_dtype=jnp.bfloat16)
        r_p = jnp.pad(x_nhwc.reshape(m, cin), ((0, 0), (0, cp - cin)))

    # --- conv2: conv + BN, fused residual add + final LeakyReLU(0.01) ------------
    y1_nhwc = y1_p[:, :cout].reshape(n, ho, wo, cout)
    p2, ho2, wo2 = _im2col(y1_nhwc, w2.shape[2], w2.shape[3], 1, 1)
    a2 = jnp.full((cout,), 0.01, jnp.float32)   # F.leaky_relu default slope
    out_p = _fused_conv_bn_act(p2, _w_to_gemm(w2), g2, b2, a2, skip=r_p,
                               bn_eps=bn_eps, out_dtype=jnp.float32)

    out = out_p[:, :cout].reshape(n, ho2, wo2, cout)
    return jnp.transpose(out, (0, 3, 1, 2)).astype(x_nchw.dtype)


# ----------------------------- pure-JAX reference ----------------------------
def _cba_ref(x, w, gamma, beta, *, stride, padding, lrelu_slope, bn_eps=1e-5):
    conv = jax.lax.conv_general_dilated(
        x, w, window_strides=(stride, stride),
        padding=((padding, padding), (padding, padding)),
        dimension_numbers=("NCHW", "OIHW", "NCHW"),
        precision=jax.lax.Precision.HIGHEST)
    mean = jnp.mean(conv, axis=(0, 2, 3), keepdims=True)
    var = jnp.mean(jnp.square(conv - mean), axis=(0, 2, 3), keepdims=True)
    y = (conv - mean) * jax.lax.rsqrt(var + bn_eps)
    y = y * gamma.reshape(1, -1, 1, 1) + beta.reshape(1, -1, 1, 1)
    if lrelu_slope is not None:
        y = jnp.where(y >= 0, y, lrelu_slope * y)
    return y


def _residual_ref(x, params, *, stride=1, padding=1):
    w1, g1, b1 = params["conv1"]
    w2, g2, b2 = params["conv2"]
    y1 = _cba_ref(x, w1, g1, b1, stride=stride, padding=padding, lrelu_slope=0.01)
    y2 = _cba_ref(y1, w2, g2, b2, stride=1, padding=1, lrelu_slope=None)
    if "res" in params:
        wr, gr, br = params["res"]
        r = _cba_ref(x, wr, gr, br, stride=stride, padding=padding, lrelu_slope=None)
    else:
        r = x
    out = y2 + r
    return jnp.where(out >= 0, out, 0.01 * out)


if __name__ == "__main__":
    key = jax.random.PRNGKey(0)
    ks = jax.random.split(key, 10)

    n, cin, cout, h, w = 2, 4, 8, 16, 16
    kh = kw = 3

    x = jax.random.normal(ks[0], (n, cin, h, w), dtype=jnp.float32)
    params = {
        "conv1": (0.1 * jax.random.normal(ks[1], (cout, cin, kh, kw), dtype=jnp.float32),
                  1.0 + 0.1 * jax.random.normal(ks[2], (cout,), dtype=jnp.float32),
                  0.1 * jax.random.normal(ks[3], (cout,), dtype=jnp.float32)),
        "conv2": (0.1 * jax.random.normal(ks[4], (cout, cout, kh, kw), dtype=jnp.float32),
                  1.0 + 0.1 * jax.random.normal(ks[5], (cout,), dtype=jnp.float32),
                  0.1 * jax.random.normal(ks[6], (cout,), dtype=jnp.float32)),
        # c_in != c_out -> residual branch is CBA(c_in, c_out, lrelu_eps=None)
        "res": (0.1 * jax.random.normal(ks[7], (cout, cin, kh, kw), dtype=jnp.float32),
                1.0 + 0.1 * jax.random.normal(ks[8], (cout,), dtype=jnp.float32),
                0.1 * jax.random.normal(ks[9], (cout,), dtype=jnp.float32)),
    }

    out = jax.block_until_ready(jax.jit(residual_forward)(x, params))
    ref = jax.block_until_ready(_residual_ref(x, params))

    assert out.shape == (n, cout, h, w), out.shape
    max_err = float(jnp.max(jnp.abs(out - ref)))
    # bf16 operands (f32 accumulation / BN math) vs an all-f32 HIGHEST-precision
    # reference, chained through two BN normalizations -> loosened tolerance.
    assert jnp.allclose(out, ref, atol=3e-2, rtol=3e-2), max_err

    print("KERNEL_OK")
</pallas_src>

<mosaic_0001>
module attributes {stable_mosaic.version = 11 : i64} {
  func.func @_gemm_bn_act_kernel(%arg0: i32, %arg1: i32, %arg2: memref<512x36xbf16, #tpu.memory_space<vmem>>, %arg3: memref<36x256xbf16, #tpu.memory_space<vmem>>, %arg4: memref<1x256xf32, #tpu.memory_space<vmem>>, %arg5: memref<1x256xf32, #tpu.memory_space<vmem>>, %arg6: memref<1x256xf32, #tpu.memory_space<vmem>>, %arg7: memref<512x256xbf16, #tpu.memory_space<vmem>>, %arg8: memref<1x256xf32, #tpu.memory_space<vmem>>, %arg9: memref<1x256xf32, #tpu.memory_space<vmem>>, %arg10: memref<512x256xbf16, #tpu.memory_space<vmem>>) attributes {dimension_semantics = [#tpu.dimension_semantics<arbitrary>, #tpu.dimension_semantics<arbitrary>], iteration_bounds = array<i64: 2, 1>, scalar_prefetch = 0 : i64, scratch_operands = 3 : i64, tpu.core_type = #tpu.core_type<tc>, window_params = [{transform_indices = @transform_0, window_bounds = array<i64: 512, 36>}, {pipeline_mode = #tpu.pipeline_mode<synchronous>, transform_indices = @transform_1, window_bounds = array<i64: 36, 256>}, {pipeline_mode = #tpu.pipeline_mode<synchronous>, transform_indices = @transform_2, window_bounds = array<i64: 1, 256>}, {pipeline_mode = #tpu.pipeline_mode<synchronous>, transform_indices = @transform_3, window_bounds = array<i64: 1, 256>}, {pipeline_mode = #tpu.pipeline_mode<synchronous>, transform_indices = @transform_4, window_bounds = array<i64: 1, 256>}, {transform_indices = @transform_5, window_bounds = array<i64: 512, 256>}]} {
    %c0_i32 = arith.constant 0 : i32
    %0 = arith.cmpi eq, %arg0, %c0_i32 : i32
    %c0_i32_0 = arith.constant 0 : i32
    %1 = arith.cmpi eq, %arg1, %c0_i32_0 : i32
    %2 = arith.andi %0, %1 : i1
    %3 = arith.extui %2 : i1 to i32
    %c0_i32_1 = arith.constant 0 : i32
    %4 = arith.cmpi ne, %3, %c0_i32_1 : i32
    scf.if %4 {
      %cst = arith.constant 0.000000e+00 : f32
      %11 = vector.broadcast %cst : f32 to vector<1x256xf32>
      %c0 = arith.constant 0 : index
      %c0_5 = arith.constant 0 : index
      %12 = vector.load %arg8[%c0, %c0_5] : memref<1x256xf32, #tpu.memory_space<vmem>>, vector<1x256xf32>
      tpu.vector_store %arg8[%c0, %c0_5], %11 {strides = array<i32>} : memref<1x256xf32, #tpu.memory_space<vmem>>, vector<1x256xf32>,
      %cst_6 = arith.constant 0.000000e+00 : f32
      %13 = vector.broadcast %cst_6 : f32 to vector<1x256xf32>
      %c0_7 = arith.constant 0 : index
      %c0_8 = arith.constant 0 : index
      %14 = vector.load %arg9[%c0_7, %c0_8] : memref<1x256xf32, #tpu.memory_space<vmem>>, vector<1x256xf32>
      tpu.vector_store %arg9[%c0_7, %c0_8], %13 {strides = array<i32>} : memref<1x256xf32, #tpu.memory_space<vmem>>, vector<1x256xf32>,
    } else {
    }
    %c0_i32_2 = arith.constant 0 : i32
    %5 = arith.cmpi eq, %arg0, %c0_i32_2 : i32
    %6 = arith.extui %5 : i1 to i32
    %c0_i32_3 = arith.constant 0 : i32
    %7 = arith.cmpi ne, %6, %c0_i32_3 : i32
    scf.if %7 {
      %c0 = arith.constant 0 : index
      %c0_5 = arith.constant 0 : index
      %11 = vector.load %arg2[%c0, %c0_5] : memref<512x36xbf16, #tpu.memory_space<vmem>>, vector<512x36xbf16>
      %c0_6 = arith.constant 0 : index
      %c0_7 = arith.constant 0 : index
      %12 = vector.load %arg3[%c0_6, %c0_7] : memref<36x256xbf16, #tpu.memory_space<vmem>>, vector<36x256xbf16>
      %cst = arith.constant dense<0.000000e+00> : vector<512x256xf32>
      %13 = tpu.matmul %11, %12, %cst {dimension_numbers = #tpu.dot_dimension_numbers<[1], [0], [0], [1], [0, 0, 1, 1], [], []>} : vector<512x36xbf16>, vector<36x256xbf16>, vector<512x256xf32> -> vector<512x256xf32>
      %c512_i32 = arith.constant 512 : i32
      %14 = arith.muli %arg1, %c512_i32 : i32
      %15 = tpu.assume_multiple %14, 512 : i32
      %16 = arith.truncf %13 : vector<512x256xf32> to vector<512x256xbf16>
      %17 = arith.index_cast %15 : i32 to index
      %c0_8 = arith.constant 0 : index
      %18 = vector.load %arg10[%17, %c0_8] : memref<512x256xbf16, #tpu.memory_space<vmem>>, vector<512x256xbf16>
      tpu.vector_store %arg10[%17, %c0_8], %16 {strides = array<i32>} : memref<512x256xbf16, #tpu.memory_space<vmem>>, vector<512x256xbf16>,
      %c0_9 = arith.constant 0 : index
      %c0_10 = arith.constant 0 : index
      %19 = vector.load %arg8[%c0_9, %c0_10] : memref<1x256xf32, #tpu.memory_space<vmem>>, vector<1x256xf32>
      %cst_11 = arith.constant dense<0.000000e+00> : vector<256xf32>
      %20 = vector.multi_reduction <add>, %13, %cst_11 [0] : vector<512x256xf32> to vector<256xf32>
      %21 = vector.shape_cast %20 : vector<256xf32> to vector<1x256xf32>
      %22 = arith.addf %19, %21 : vector<1x256xf32>
      %c0_12 = arith.constant 0 : index
      %c0_13 = arith.constant 0 : index
      %23 = vector.load %arg8[%c0_12, %c0_13] : memref<1x256xf32, #tpu.memory_space<vmem>>, vector<1x256xf32>
      tpu.vector_store %arg8[%c0_12, %c0_13], %22 {strides = array<i32>} : memref<1x256xf32, #tpu.memory_space<vmem>>, vector<1x256xf32>,
      %c0_14 = arith.constant 0 : index
      %c0_15 = arith.constant 0 : index
      %24 = vector.load %arg9[%c0_14, %c0_15] : memref<1x256xf32, #tpu.memory_space<vmem>>, vector<1x256xf32>
      %25 = arith.mulf %13, %13 : vector<512x256xf32>
      %cst_16 = arith.constant dense<0.000000e+00> : vector<256xf32>
      %26 = vector.multi_reduction <add>, %25, %cst_16 [0] : vector<512x256xf32> to vector<256xf32>
      %27 = vector.shape_cast %26 : vector<256xf32> to vector<1x256xf32>
      %28 = arith.addf %24, %27 : vector<1x256xf32>
      %c0_17 = arith.constant 0 : index
      %c0_18 = arith.constant 0 : index
      %29 = vector.load %arg9[%c0_17, %c0_18] : memref<1x256xf32, #tpu.memory_space<vmem>>, vector<1x256xf32>
      tpu.vector_store %arg9[%c0_17, %c0_18], %28 {strides = array<i32>} : memref<1x256xf32, #tpu.memory_space<vmem>>, vector<1x256xf32>,
    } else {
    }
    %c1_i32 = arith.constant 1 : i32
    %8 = arith.cmpi eq, %arg0, %c1_i32 : i32
    %9 = arith.extui %8 : i1 to i32
    %c0_i32_4 = arith.constant 0 : i32
    %10 = arith.cmpi ne, %9, %c0_i32_4 : i32
    scf.if %10 {
      %c512_i32 = arith.constant 512 : i32
      %11 = arith.muli %arg1, %c512_i32 : i32
      %12 = tpu.assume_multiple %11, 512 : i32
      %13 = arith.index_cast %12 : i32 to index
      %c0 = arith.constant 0 : index
      %14 = vector.load %arg10[%13, %c0] : memref<512x256xbf16, #tpu.memory_space<vmem>>, vector<512x256xbf16>
      %15 = arith.extf %14 : vector<512x256xbf16> to vector<512x256xf32>
      %c0_5 = arith.constant 0 : index
      %c0_6 = arith.constant 0 : index
      %16 = vector.load %arg8[%c0_5, %c0_6] : memref<1x256xf32, #tpu.memory_space<vmem>>, vector<1x256xf32>
      %cst = arith.constant 0.001953125 : f32
      %17 = vector.broadcast %cst : f32 to vector<1x256xf32>
      %18 = arith.mulf %16, %17 : vector<1x256xf32>
      %c0_7 = arith.constant 0 : index
      %c0_8 = arith.constant 0 : index
      %19 = vector.load %arg9[%c0_7, %c0_8] : memref<1x256xf32, #tpu.memory_space<vmem>>, vector<1x256xf32>
      %cst_9 = arith.constant 0.001953125 : f32
      %20 = vector.broadcast %cst_9 : f32 to vector<1x256xf32>
      %21 = arith.mulf %19, %20 : vector<1x256xf32>
      %22 = arith.mulf %18, %18 : vector<1x256xf32>
      %23 = arith.subf %21, %22 : vector<1x256xf32>
      %cst_10 = arith.constant 0.000000e+00 : f32
      %24 = vector.broadcast %cst_10 : f32 to vector<1x256xf32>
      %25 = arith.maximumf %23, %24 : vector<1x256xf32>
      %c0_11 = arith.constant 0 : index
      %c0_12 = arith.constant 0 : index
      %26 = vector.load %arg4[%c0_11, %c0_12] : memref<1x256xf32, #tpu.memory_space<vmem>>, vector<1x256xf32>
      %cst_13 = arith.constant 9.99999974E-6 : f32
      %27 = vector.broadcast %cst_13 : f32 to vector<1x256xf32>
      %28 = arith.addf %25, %27 : vector<1x256xf32>
      %29 = math.rsqrt %28 : vector<1x256xf32>
      %30 = arith.mulf %26, %29 : vector<1x256xf32>
      %c0_14 = arith.constant 0 : index
      %c0_15 = arith.constant 0 : index
      %31 = vector.load %arg5[%c0_14, %c0_15] : memref<1x256xf32, #tpu.memory_space<vmem>>, vector<1x256xf32>
      %32 = arith.mulf %18, %30 : vector<1x256xf32>
      %33 = arith.subf %31, %32 : vector<1x256xf32>
      %34 = vector.broadcast %30 : vector<1x256xf32> to vector<512x256xf32>
      %35 = arith.mulf %15, %34 : vector<512x256xf32>
      %36 = vector.broadcast %33 : vector<1x256xf32> to vector<512x256xf32>
      %37 = arith.addf %35, %36 : vector<512x256xf32>
      %cst_16 = arith.constant 0.000000e+00 : f32
      %38 = vector.broadcast %cst_16 : f32 to vector<512x256xf32>
      %39 = arith.cmpf oge, %37, %38 : vector<512x256xf32>
      %c0_17 = arith.constant 0 : index
      %c0_18 = arith.constant 0 : index
      %40 = vector.load %arg6[%c0_17, %c0_18] : memref<1x256xf32, #tpu.memory_space<vmem>>, vector<1x256xf32>
      %41 = vector.broadcast %40 : vector<1x256xf32> to vector<512x256xf32>
      %42 = arith.mulf %41, %37 : vector<512x256xf32>
      %43 = arith.select %39, %37, %42 : vector<512x256xi1>, vector<512x256xf32>
      %44 = arith.truncf %43 : vector<512x256xf32> to vector<512x256xbf16>
      %c0_19 = arith.constant 0 : index
      %c0_20 = arith.constant 0 : index
      %45 = vector.load %arg7[%c0_19, %c0_20] : memref<512x256xbf16, #tpu.memory_space<vmem>>, vector<512x256xbf16>
      tpu.vector_store %arg7[%c0_19, %c0_20], %44 {strides = array<i32>} : memref<512x256xbf16, #tpu.memory_space<vmem>>, vector<512x256xbf16>,
    } else {
    }
    return
  }
  func.func @transform_0(%arg0: i32, %arg1: i32) -> (i32, i32) {
    %c1_i32 = arith.constant 1 : i32
    %0 = arith.subi %c1_i32, %arg0 : i32
    %1 = arith.muli %0, %arg1 : i32
    %c0_i32 = arith.constant 0 : i32
    %c0_i32_0 = arith.constant 0 : i32
    return %1, %c0_i32 : i32, i32
  }
  func.func @transform_1(%arg0: i32, %arg1: i32) -> (i32, i32) {
    %c0_i32 = arith.constant 0 : i32
    %c0_i32_0 = arith.constant 0 : i32
    %c0_i32_1 = arith.constant 0 : i32
    return %c0_i32, %c0_i32_0 : i32, i32
  }
  func.func @transform_2(%arg0: i32, %arg1: i32) -> (i32, i32) {
    %c0_i32 = arith.constant 0 : i32
    %c0_i32_0 = arith.constant 0 : i32
    %c0_i32_1 = arith.constant 0 : i32
    return %c0_i32, %c0_i32_0 : i32, i32
  }
  func.func @transform_3(%arg0: i32, %arg1: i32) -> (i32, i32) {
    %c0_i32 = arith.constant 0 : i32
    %c0_i32_0 = arith.constant 0 : i32
    %c0_i32_1 = arith.constant 0 : i32
    return %c0_i32, %c0_i32_0 : i32, i32
  }
  func.func @transform_4(%arg0: i32, %arg1: i32) -> (i32, i32) {
    %c0_i32 = arith.constant 0 : i32
    %c0_i32_0 = arith.constant 0 : i32
    %c0_i32_1 = arith.constant 0 : i32
    return %c0_i32, %c0_i32_0 : i32, i32
  }
  func.func @transform_5(%arg0: i32, %arg1: i32) -> (i32, i32) {
    %0 = arith.muli %arg0, %arg1 : i32
    %c0_i32 = arith.constant 0 : i32
    %c0_i32_0 = arith.constant 0 : i32
    return %0, %c0_i32 : i32, i32
  }
}

module attributes {stable_mosaic.version = 11 : i64} {
  func.func @_gemm_bn_act_kernel(%arg0: i32, %arg1: i32, %arg2: memref<512x72xbf16, #tpu.memory_space<vmem>>, %arg3: memref<72x128xbf16, #tpu.memory_space<vmem>>, %arg4: memref<1x128xf32, #tpu.memory_space<vmem>>, %arg5: memref<1x128xf32, #tpu.memory_space<vmem>>, %arg6: memref<1x128xf32, #tpu.memory_space<vmem>>, %arg7: memref<512x128xbf16, #tpu.memory_space<vmem>>, %arg8: memref<512x128xf32, #tpu.memory_space<vmem>>, %arg9: memref<1x128xf32, #tpu.memory_space<vmem>>, %arg10: memref<1x128xf32, #tpu.memory_space<vmem>>, %arg11: memref<512x128xbf16, #tpu.memory_space<vmem>>) attributes {dimension_semantics = [#tpu.dimension_semantics<arbitrary>, #tpu.dimension_semantics<arbitrary>], iteration_bounds = array<i64: 2, 1>, scalar_prefetch = 0 : i64, scratch_operands = 3 : i64, tpu.core_type = #tpu.core_type<tc>, window_params = [{transform_indices = @transform_0, window_bounds = array<i64: 512, 72>}, {pipeline_mode = #tpu.pipeline_mode<synchronous>, transform_indices = @transform_1, window_bounds = array<i64: 72, 128>}, {pipeline_mode = #tpu.pipeline_mode<synchronous>, transform_indices = @transform_2, window_bounds = array<i64: 1, 128>}, {pipeline_mode = #tpu.pipeline_mode<synchronous>, transform_indices = @transform_3, window_bounds = array<i64: 1, 128>}, {pipeline_mode = #tpu.pipeline_mode<synchronous>, transform_indices = @transform_4, window_bounds = array<i64: 1, 128>}, {transform_indices = @transform_5, window_bounds = array<i64: 512, 128>}, {transform_indices = @transform_6, window_bounds = array<i64: 512, 128>}]} {
    %c0_i32 = arith.constant 0 : i32
    %0 = arith.cmpi eq, %arg0, %c0_i32 : i32
    %c0_i32_0 = arith.constant 0 : i32
    %1 = arith.cmpi eq, %arg1, %c0_i32_0 : i32
    %2 = arith.andi %0, %1 : i1
    %3 = arith.extui %2 : i1 to i32
    %c0_i32_1 = arith.constant 0 : i32
    %4 = arith.cmpi ne, %3, %c0_i32_1 : i32
    scf.if %4 {
      %cst = arith.constant 0.000000e+00 : f32
      %11 = vector.broadcast %cst : f32 to vector<1x128xf32>
      %c0 = arith.constant 0 : index
      %c0_5 = arith.constant 0 : index
      %12 = vector.load %arg9[%c0, %c0_5] : memref<1x128xf32, #tpu.memory_space<vmem>>, vector<1x128xf32>
      tpu.vector_store %arg9[%c0, %c0_5], %11 {strides = array<i32>} : memref<1x128xf32, #tpu.memory_space<vmem>>, vector<1x128xf32>,
      %cst_6 = arith.constant 0.000000e+00 : f32
      %13 = vector.broadcast %cst_6 : f32 to vector<1x128xf32>
      %c0_7 = arith.constant 0 : index
      %c0_8 = arith.constant 0 : index
      %14 = vector.load %arg10[%c0_7, %c0_8] : memref<1x128xf32, #tpu.memory_space<vmem>>, vector<1x128xf32>
      tpu.vector_store %arg10[%c0_7, %c0_8], %13 {strides = array<i32>} : memref<1x128xf32, #tpu.memory_space<vmem>>, vector<1x128xf32>,
    } else {
    }
    %c0_i32_2 = arith.constant 0 : i32
    %5 = arith.cmpi eq, %arg0, %c0_i32_2 : i32
    %6 = arith.extui %5 : i1 to i32
    %c0_i32_3 = arith.constant 0 : i32
    %7 = arith.cmpi ne, %6, %c0_i32_3 : i32
    scf.if %7 {
      %c0 = arith.constant 0 : index
      %c0_5 = arith.constant 0 : index
      %11 = vector.load %arg2[%c0, %c0_5] : memref<512x72xbf16, #tpu.memory_space<vmem>>, vector<512x72xbf16>
      %c0_6 = arith.constant 0 : index
      %c0_7 = arith.constant 0 : index
      %12 = vector.load %arg3[%c0_6, %c0_7] : memref<72x128xbf16, #tpu.memory_space<vmem>>, vector<72x128xbf16>
      %cst = arith.constant dense<0.000000e+00> : vector<512x128xf32>
      %13 = tpu.matmul %11, %12, %cst {dimension_numbers = #tpu.dot_dimension_numbers<[1], [0], [0], [1], [0, 0, 1, 1], [], []>} : vector<512x72xbf16>, vector<72x128xbf16>, vector<512x128xf32> -> vector<512x128xf32>
      %c512_i32 = arith.constant 512 : i32
      %14 = arith.muli %arg1, %c512_i32 : i32
      %15 = tpu.assume_multiple %14, 512 : i32
      %16 = arith.truncf %13 : vector<512x128xf32> to vector<512x128xbf16>
      %17 = arith.index_cast %15 : i32 to index
      %c0_8 = arith.constant 0 : index
      %18 = vector.load %arg11[%17, %c0_8] : memref<512x128xbf16, #tpu.memory_space<vmem>>, vector<512x128xbf16>
      tpu.vector_store %arg11[%17, %c0_8], %16 {strides = array<i32>} : memref<512x128xbf16, #tpu.memory_space<vmem>>, vector<512x128xbf16>,
      %c0_9 = arith.constant 0 : index
      %c0_10 = arith.constant 0 : index
      %19 = vector.load %arg9[%c0_9, %c0_10] : memref<1x128xf32, #tpu.memory_space<vmem>>, vector<1x128xf32>
      %cst_11 = arith.constant dense<0.000000e+00> : vector<128xf32>
      %20 = vector.multi_reduction <add>, %13, %cst_11 [0] : vector<512x128xf32> to vector<128xf32>
      %21 = vector.shape_cast %20 : vector<128xf32> to vector<1x128xf32>
      %22 = arith.addf %19, %21 : vector<1x128xf32>
      %c0_12 = arith.constant 0 : index
      %c0_13 = arith.constant 0 : index
      %23 = vector.load %arg9[%c0_12, %c0_13] : memref<1x128xf32, #tpu.memory_space<vmem>>, vector<1x128xf32>
      tpu.vector_store %arg9[%c0_12, %c0_13], %22 {strides = array<i32>} : memref<1x128xf32, #tpu.memory_space<vmem>>, vector<1x128xf32>,
      %c0_14 = arith.constant 0 : index
      %c0_15 = arith.constant 0 : index
      %24 = vector.load %arg10[%c0_14, %c0_15] : memref<1x128xf32, #tpu.memory_space<vmem>>, vector<1x128xf32>
      %25 = arith.mulf %13, %13 : vector<512x128xf32>
      %cst_16 = arith.constant dense<0.000000e+00> : vector<128xf32>
      %26 = vector.multi_reduction <add>, %25, %cst_16 [0] : vector<512x128xf32> to vector<128xf32>
      %27 = vector.shape_cast %26 : vector<128xf32> to vector<1x128xf32>
      %28 = arith.addf %24, %27 : vector<1x128xf32>
      %c0_17 = arith.constant 0 : index
      %c0_18 = arith.constant 0 : index
      %29 = vector.load %arg10[%c0_17, %c0_18] : memref<1x128xf32, #tpu.memory_space<vmem>>, vector<1x128xf32>
      tpu.vector_store %arg10[%c0_17, %c0_18], %28 {strides = array<i32>} : memref<1x128xf32, #tpu.memory_space<vmem>>, vector<1x128xf32>,
    } else {
    }
    %c1_i32 = arith.constant 1 : i32
    %8 = arith.cmpi eq, %arg0, %c1_i32 : i32
    %9 = arith.extui %8 : i1 to i32
    %c0_i32_4 = arith.constant 0 : i32
    %10 = arith.cmpi ne, %9, %c0_i32_4 : i32
    scf.if %10 {
      %c512_i32 = arith.constant 512 : i32
      %11 = arith.muli %arg1, %c512_i32 : i32
      %12 = tpu.assume_multiple %11, 512 : i32
      %13 = arith.index_cast %12 : i32 to index
      %c0 = arith.constant 0 : index
      %14 = vector.load %arg11[%13, %c0] : memref<512x128xbf16, #tpu.memory_space<vmem>>, vector<512x128xbf16>
      %15 = arith.extf %14 : vector<512x128xbf16> to vector<512x128xf32>
      %c0_5 = arith.constant 0 : index
      %c0_6 = arith.constant 0 : index
      %16 = vector.load %arg9[%c0_5, %c0_6] : memref<1x128xf32, #tpu.memory_space<vmem>>, vector<1x128xf32>
      %cst = arith.constant 0.001953125 : f32
      %17 = vector.broadcast %cst : f32 to vector<1x128xf32>
      %18 = arith.mulf %16, %17 : vector<1x128xf32>
      %c0_7 = arith.constant 0 : index
      %c0_8 = arith.constant 0 : index
      %19 = vector.load %arg10[%c0_7, %c0_8] : memref<1x128xf32, #tpu.memory_space<vmem>>, vector<1x128xf32>
      %cst_9 = arith.constant 0.001953125 : f32
      %20 = vector.broadcast %cst_9 : f32 to vector<1x128xf32>
      %21 = arith.mulf %19, %20 : vector<1x128xf32>
      %22 = arith.mulf %18, %18 : vector<1x128xf32>
      %23 = arith.subf %21, %22 : vector<1x128xf32>
      %cst_10 = arith.constant 0.000000e+00 : f32
      %24 = vector.broadcast %cst_10 : f32 to vector<1x128xf32>
      %25 = arith.maximumf %23, %24 : vector<1x128xf32>
      %c0_11 = arith.constant 0 : index
      %c0_12 = arith.constant 0 : index
      %26 = vector.load %arg4[%c0_11, %c0_12] : memref<1x128xf32, #tpu.memory_space<vmem>>, vector<1x128xf32>
      %cst_13 = arith.constant 9.99999974E-6 : f32
      %27 = vector.broadcast %cst_13 : f32 to vector<1x128xf32>
      %28 = arith.addf %25, %27 : vector<1x128xf32>
      %29 = math.rsqrt %28 : vector<1x128xf32>
      %30 = arith.mulf %26, %29 : vector<1x128xf32>
      %c0_14 = arith.constant 0 : index
      %c0_15 = arith.constant 0 : index
      %31 = vector.load %arg5[%c0_14, %c0_15] : memref<1x128xf32, #tpu.memory_space<vmem>>, vector<1x128xf32>
      %32 = arith.mulf %18, %30 : vector<1x128xf32>
      %33 = arith.subf %31, %32 : vector<1x128xf32>
      %34 = vector.broadcast %30 : vector<1x128xf32> to vector<512x128xf32>
      %35 = arith.mulf %15, %34 : vector<512x128xf32>
      %36 = vector.broadcast %33 : vector<1x128xf32> to vector<512x128xf32>
      %37 = arith.addf %35, %36 : vector<512x128xf32>
      %c0_16 = arith.constant 0 : index
      %c0_17 = arith.constant 0 : index
      %38 = vector.load %arg7[%c0_16, %c0_17] : memref<512x128xbf16, #tpu.memory_space<vmem>>, vector<512x128xbf16>
      %39 = arith.extf %38 : vector<512x128xbf16> to vector<512x128xf32>
      %40 = arith.addf %37, %39 : vector<512x128xf32>
      %cst_18 = arith.constant 0.000000e+00 : f32
      %41 = vector.broadcast %cst_18 : f32 to vector<512x128xf32>
      %42 = arith.cmpf oge, %40, %41 : vector<512x128xf32>
      %c0_19 = arith.constant 0 : index
      %c0_20 = arith.constant 0 : index
      %43 = vector.load %arg6[%c0_19, %c0_20] : memref<1x128xf32, #tpu.memory_space<vmem>>, vector<1x128xf32>
      %44 = vector.broadcast %43 : vector<1x128xf32> to vector<512x128xf32>
      %45 = arith.mulf %44, %40 : vector<512x128xf32>
      %46 = arith.select %42, %40, %45 : vector<512x128xi1>, vector<512x128xf32>
      %c0_21 = arith.constant 0 : index
      %c0_22 = arith.constant 0 : index
      %47 = vector.load %arg8[%c0_21, %c0_22] : memref<512x128xf32, #tpu.memory_space<vmem>>, vector<512x128xf32>
      tpu.vector_store %arg8[%c0_21, %c0_22], %46 {strides = array<i32>} : memref<512x128xf32, #tpu.memory_space<vmem>>, vector<512x128xf32>,
    } else {
    }
    return
  }
  func.func @transform_0(%arg0: i32, %arg1: i32) -> (i32, i32) {
    %c1_i32 = arith.constant 1 : i32
    %0 = arith.subi %c1_i32, %arg0 : i32
    %1 = arith.muli %0, %arg1 : i32
    %c0_i32 = arith.constant 0 : i32
    %c0_i32_0 = arith.constant 0 : i32
    return %1, %c0_i32 : i32, i32
  }
  func.func @transform_1(%arg0: i32, %arg1: i32) -> (i32, i32) {
    %c0_i32 = arith.constant 0 : i32
    %c0_i32_0 = arith.constant 0 : i32
    %c0_i32_1 = arith.constant 0 : i32
    return %c0_i32, %c0_i32_0 : i32, i32
  }
  func.func @transform_2(%arg0: i32, %arg1: i32) -> (i32, i32) {
    %c0_i32 = arith.constant 0 : i32
    %c0_i32_0 = arith.constant 0 : i32
    %c0_i32_1 = arith.constant 0 : i32
    return %c0_i32, %c0_i32_0 : i32, i32
  }
  func.func @transform_3(%arg0: i32, %arg1: i32) -> (i32, i32) {
    %c0_i32 = arith.constant 0 : i32
    %c0_i32_0 = arith.constant 0 : i32
    %c0_i32_1 = arith.constant 0 : i32
    return %c0_i32, %c0_i32_0 : i32, i32
  }
  func.func @transform_4(%arg0: i32, %arg1: i32) -> (i32, i32) {
    %c0_i32 = arith.constant 0 : i32
    %c0_i32_0 = arith.constant 0 : i32
    %c0_i32_1 = arith.constant 0 : i32
    return %c0_i32, %c0_i32_0 : i32, i32
  }
  func.func @transform_5(%arg0: i32, %arg1: i32) -> (i32, i32) {
    %0 = arith.muli %arg0, %arg1 : i32
    %c0_i32 = arith.constant 0 : i32
    %c0_i32_0 = arith.constant 0 : i32
    return %0, %c0_i32 : i32, i32
  }
  func.func @transform_6(%arg0: i32, %arg1: i32) -> (i32, i32) {
    %0 = arith.muli %arg0, %arg1 : i32
    %c0_i32 = arith.constant 0 : i32
    %c0_i32_0 = arith.constant 0 : i32
    return %0, %c0_i32 : i32, i32
  }
}

</mosaic_0001>

<llo_original>
// kernel: residual_forward.2
$region0: #{residual_forward.2}
  #allocation0 [shape = 'u32[]', space=smem, size = 0x4, offset = 0x4, fixed_abs, tag = 'smem constant byte address 0x4 - core index']
  #allocation1 [shape = 'u32[72,128]{1,0:T(1,128)}', space=vmem, size = 0x9000, scoped, tag = 'internal scratch']
  #allocation2 [shape = 'f32[1,256]{1,0:T(1,128)}', space=vmem, size = 0x400, scoped, tag = 'scratch operand']
  #allocation3 [shape = 'f32[1,256]{1,0:T(1,128)}', space=vmem, size = 0x400, scoped, tag = 'scratch operand']
  #allocation4 [shape = 'bf16[512,256]{1,0:T(8,128)(2,1)}', space=vmem, size = 0x40000, scoped, tag = 'scratch operand']
  %s0 = inlined_call_operand.vmem [shape: bf16[512,36], index: 0, kind: input, shape index: {}]
  %s1 = inlined_call_operand.vmem [shape: bf16[36,256], index: 1, kind: input, shape index: {}]
  %s2 = inlined_call_operand.vmem [shape: f32[1,256], index: 2, kind: input, shape index: {}]
  %s3 = inlined_call_operand.vmem [shape: f32[1,256], index: 3, kind: input, shape index: {}]
  %s4 = inlined_call_operand.vmem [shape: f32[1,256], index: 4, kind: input, shape index: {}]
  %s5 = inlined_call_operand.vmem [shape: bf16[512,256], index: 5, kind: output, shape index: {}]
  %s6 = sld [smem:[#allocation0]]
  $region65: #{residual_forward.2} parent=0
    _
  %s8 = ssub.s32 1, %s6
  %s9 = scalar_select 0, %s8, %s6
  loop: start=0, step=1, limit=4
  $region2: #{residual_forward.2} parent=0 // loop_pre_header
    _
  $region3: #{residual_forward.2} parent=0 // loop_header
    %s11 = sphi 0, %s15
    %p12 = scmp.ge.s32.totalorder %s11, 4
    %s18 = sphi 0, %s30
    %s19 = sphi 0, %s26
    %s20 = sphi 0, %s18
    %s21 = sphi 0, %s19
    %s22 = sphi 0, %s20
    %s23 = sphi 0, %s21
    %s37 = sphi 0, %s39
    %s40 = sphi 0, %s37
    %s41 = sphi 0, %s40
    %s57 = sphi 0, %s41
    %s61 = sphi 0, %s61
    %s63 = sphi 0, %s61
    %s64 = sphi 0, %s63
    %s78 = sphi 0, %s64
    %s82 = sphi 0, %s82
    %s84 = sphi 0, %s82
    %s85 = sphi 0, %s84
    %s99 = sphi 0, %s85
    %s103 = sphi 0, %s103
    %s105 = sphi 0, %s103
    %s106 = sphi 0, %s105
    %s120 = sphi 0, %s106
    %s124 = sphi 0, %s124
    %s126 = sphi 0, %s124
    %s127 = sphi 0, %s126
    %s141 = sphi 0, %s127
    %s149 = sphi 0, %s151
    %s152 = sphi 0, %s149
    %s153 = sphi 0, %s152
    %s169 = sphi 0, %s153
  $region4: #{residual_forward.2} parent=0 // loop_header_branch
    %14 = sbr.rel (%p12) target = $region8
  $region5: #{residual_forward.2} parent=0 // loop_body
    %s16 = ssub.s32 %s11, 1
    %s17 = ssub.s32 %s11, 2
    %s24 = sadd.s32 1, %s19
    %p25 = scmp.ge.s32.totalorder %s24, 1
    %s26 = scalar_select %p25, 0, %s24
    %s27 = sadd.s32 1, %s18
    %s28 = scalar_select %p25, %s27, %s18
    %p29 = scmp.ge.s32.totalorder %s28, 2
    %s30 = scalar_select %p29, 0, %s28
    %s31 = ssub.s32 1, %s18
    %s32 = smul.u32 %s31, %s19
    %s33 = ssub.s32 1, %s30
    %s34 = smul.u32 %s33, %s26
    %s35 = ssub.s32 %s32, %s34
    %p36 = scmp.eq.s32.totalorder %s35, 0
    %s38 = sadd.s32 %s37, 1
    %s39 = scalar_select %p36, %s37, %s38
    %p42 = pneg %p36
    %p43 = scmp.eq.s32.totalorder %s11, 1
    %p44 = por %p42, %p43
    %p45 = scmp.ne.s32.totalorder %s37, %s40
    %p46 = scmp.eq.s32.totalorder %s11, 0
    %p47 = por %p45, %p46
    %p48 = scmp.ne.s32.totalorder %s37, %s40
    %p49 = scmp.eq.s32.totalorder %s16, 1
    %p50 = por %p48, %p49
    %p51 = scmp.ne.s32.totalorder %s40, %s41
    %p52 = scmp.eq.s32.totalorder %s16, 0
    %p53 = por %p51, %p52
    %p54 = scmp.ne.s32.totalorder %s40, %s41
    %p55 = scmp.eq.s32.totalorder %s17, 1
    %p56 = por %p54, %p55
    %p58 = scmp.ne.s32.totalorder %s41, %s57
    %p59 = scmp.eq.s32.totalorder %s17, 0
    %p60 = por %p58, %p59
    %s62 = sadd.s32 %s61, 1
    %p65 = scmp.eq.s32.totalorder %s11, 1
    %p66 = scmp.ne.s32.totalorder %s61, %s63
    %p67 = scmp.eq.s32.totalorder %s11, 0
    %p68 = por %p66, %p67
    %p69 = scmp.ne.s32.totalorder %s61, %s63
    %p70 = scmp.eq.s32.totalorder %s16, 1
    %p71 = por %p69, %p70
    %p72 = scmp.ne.s32.totalorder %s63, %s64
    %p73 = scmp.eq.s32.totalorder %s16, 0
    %p74 = por %p72, %p73
    %p75 = scmp.ne.s32.totalorder %s63, %s64
    %p76 = scmp.eq.s32.totalorder %s17, 1
    %p77 = por %p75, %p76
    %p79 = scmp.ne.s32.totalorder %s64, %s78
    %p80 = scmp.eq.s32.totalorder %s17, 0
    %p81 = por %p79, %p80
    %s83 = sadd.s32 %s82, 1
    %p86 = scmp.eq.s32.totalorder %s11, 1
    %p87 = scmp.ne.s32.totalorder %s82, %s84
    %p88 = scmp.eq.s32.totalorder %s11, 0
    %p89 = por %p87, %p88
    %p90 = scmp.ne.s32.totalorder %s82, %s84
    %p91 = scmp.eq.s32.totalorder %s16, 1
    %p92 = por %p90, %p91
    %p93 = scmp.ne.s32.totalorder %s84, %s85
    %p94 = scmp.eq.s32.totalorder %s16, 0
    %p95 = por %p93, %p94
    %p96 = scmp.ne.s32.totalorder %s84, %s85
    %p97 = scmp.eq.s32.totalorder %s17, 1
    %p98 = por %p96, %p97
    %p100 = scmp.ne.s32.totalorder %s85, %s99
    %p101 = scmp.eq.s32.totalorder %s17, 0
    %p102 = por %p100, %p101
    %s104 = sadd.s32 %s103, 1
    %p107 = scmp.eq.s32.totalorder %s11, 1
    %p108 = scmp.ne.s32.totalorder %s103, %s105
    %p109 = scmp.eq.s32.totalorder %s11, 0
    %p110 = por %p108, %p109
    %p111 = scmp.ne.s32.totalorder %s103, %s105
    %p112 = scmp.eq.s32.totalorder %s16, 1
    %p113 = por %p111, %p112
    %p114 = scmp.ne.s32.totalorder %s105, %s106
    %p115 = scmp.eq.s32.totalorder %s16, 0
    %p116 = por %p114, %p115
    %p117 = scmp.ne.s32.totalorder %s105, %s106
    %p118 = scmp.eq.s32.totalorder %s17, 1
    %p119 = por %p117, %p118
    %p121 = scmp.ne.s32.totalorder %s106, %s120
    %p122 = scmp.eq.s32.totalorder %s17, 0
    %p123 = por %p121, %p122
    %s125 = sadd.s32 %s124, 1
    %p128 = scmp.eq.s32.totalorder %s11, 1
    %p129 = scmp.ne.s32.totalorder %s124, %s126
    %p130 = scmp.eq.s32.totalorder %s11, 0
    %p131 = por %p129, %p130
    %p132 = scmp.ne.s32.totalorder %s124, %s126
    %p133 = scmp.eq.s32.totalorder %s16, 1
    %p134 = por %p132, %p133
    %p135 = scmp.ne.s32.totalorder %s126, %s127
    %p136 = scmp.eq.s32.totalorder %s16, 0
    %p137 = por %p135, %p136
    %p138 = scmp.ne.s32.totalorder %s126, %s127
    %p139 = scmp.eq.s32.totalorder %s17, 1
    %p140 = por %p138, %p139
    %p142 = scmp.ne.s32.totalorder %s127, %s141
    %p143 = scmp.eq.s32.totalorder %s17, 0
    %p144 = por %p142, %p143
    %s145 = smul.u32 %s18, %s19
    %s146 = smul.u32 %s30, %s26
    %s147 = ssub.s32 %s145, %s146
    %p148 = scmp.eq.s32.totalorder %s147, 0
    %s150 = sadd.s32 %s149, 1
    %s151 = scalar_select %p148, %s149, %s150
    %p154 = pneg %p148
    %p155 = scmp.eq.s32.totalorder %s11, 1
    %p156 = por %p154, %p155
    %p157 = scmp.ne.s32.totalorder %s149, %s152
    %p158 = scmp.eq.s32.totalorder %s11, 0
    %p159 = por %p157, %p158
    %p160 = scmp.ne.s32.totalorder %s149, %s152
    %p161 = scmp.eq.s32.totalorder %s16, 1
    %p162 = por %p160, %p161
    %p163 = scmp.ne.s32.totalorder %s152, %s153
    %p164 = scmp.eq.s32.totalorder %s16, 0
    %p165 = por %p163, %p164
    %p166 = scmp.ne.s32.totalorder %s152, %s153
    %p167 = scmp.eq.s32.totalorder %s17, 1
    %p168 = por %p166, %p167
    %p170 = scmp.ne.s32.totalorder %s153, %s169
    %p171 = scmp.eq.s32.totalorder %s17, 0
    %p172 = por %p170, %p171
    %p173 = scmp.le.s32.totalorder 1, %s11
    %p174 = scmp.lt.s32.totalorder %s11, 3
    %p175 = pnand %p173, %p174
    %p176 = pneg %p175
    // Predicated region
    $region9: #{residual_forward.2} parent=5 // pred_check
      _
    $region10: #{residual_forward.2} parent=5 // pred_check_branch
      %178 = sbr.rel (%p175) target = $region12
    $region11: #{residual_forward.2} parent=5 // pred_region
      %s179 = ssub.s32 %s11, 1
      // Predicated region
      $region13: #{residual_forward.2} parent=11 // pred_check
        %p180 = pneg %p74
      $region14: #{residual_forward.2} parent=11 // pred_check_branch
        %182 = sbr.rel (%p180) target = $region16
      $region15: #{residual_forward.2} parent=11 // pred_region
        _
      $region16: #{residual_forward.2} parent=11 // pred_fallthru
        _
      // Predicated region
      $region17: #{residual_forward.2} parent=11 // pred_check
        %p183 = pneg %p95
      $region18: #{residual_forward.2} parent=11 // pred_check_branch
        %185 = sbr.rel (%p183) target = $region20
      $region19: #{residual_forward.2} parent=11 // pred_region
        _
      $region20: #{residual_forward.2} parent=11 // pred_fallthru
        _
      // Predicated region
      $region21: #{residual_forward.2} parent=11 // pred_check
        %p186 = pneg %p116
      $region22: #{residual_forward.2} parent=11 // pred_check_branch
        %188 = sbr.rel (%p186) target = $region24
      $region23: #{residual_forward.2} parent=11 // pred_region
        _
      $region24: #{residual_forward.2} parent=11 // pred_fallthru
        _
      // Predicated region
      $region25: #{residual_forward.2} parent=11 // pred_check
        %p189 = pneg %p137
      $region26: #{residual_forward.2} parent=11 // pred_check_branch
        %191 = sbr.rel (%p189) target = $region28
      $region27: #{residual_forward.2} parent=11 // pred_region
        _
      $region28: #{residual_forward.2} parent=11 // pred_fallthru
        _
    $region12: #{residual_forward.2} parent=5 // pred_fallthru
      _
    %p192 = scmp.lt.s32.totalorder %s11, 2
    // Predicated region
    $region29: #{residual_forward.2} parent=5 // pred_check
      %p193 = pneg %p192
    $region30: #{residual_forward.2} parent=5 // pred_check_branch
      %195 = sbr.rel (%p193) target = $region32
    $region31: #{residual_forward.2} parent=5 // pred_region
      // Predicated region
      $region33: #{residual_forward.2} parent=31 // pred_check
        %p196 = pneg %p47
      $region34: #{residual_forward.2} parent=31 // pred_check_branch
        %198 = sbr.rel (%p196) target = $region36
      $region35: #{residual_forward.2} parent=31 // pred_region
        %s199 = ssub.s32 1, %s18
        %s200 = smul.u32 %s199, %s19
        %s201 = smul.u32 64, %s200
        %p202 = scmp.lt.s32.totalorder %s201, 63
        %s203 = scalar_select %p202, %s201, 63
        %s204 = smul.addr %s203, 4
        %s205 = scalar_lea.vmem %s0, %s204
        %s206 = ssub.s32 1, %s18
        %s207 = smul.u32 %s206, %s19
        %s208 = smul.u32 64, %s207
      $region36: #{residual_forward.2} parent=31 // pred_fallthru
        _
    $region32: #{residual_forward.2} parent=5 // pred_fallthru
      _
    %p209 = scmp.le.s32.totalorder 1, %s11
    %p210 = scmp.lt.s32.totalorder %s11, 3
    %p211 = pnand %p209, %p210
    %p212 = pneg %p211
    // Predicated region
    $region37: #{residual_forward.2} parent=5 // pred_check
      _
    $region38: #{residual_forward.2} parent=5 // pred_check_branch
      %214 = sbr.rel (%p211) target = $region40
    $region39: #{residual_forward.2} parent=5 // pred_region
      %s215 = ssub.s32 %s11, 1
      %s216 = ssub.s32 1, %s20
      %s217 = smul.u32 %s216, %s21
      %s218 = smul.u32 64, %s217
      %p219 = scmp.lt.s32.totalorder %s218, 63
      %s220 = scalar_select %p219, %s218, 63
      %s221 = smul.addr %s220, 4
      %s222 = scalar_lea.vmem %s0, %s221
      %p223 = pneg %p53
      %p224 = pneg %p50
      %p225 = pneg %p74
      %p226 = pneg %p71
      %p227 = pneg %p95
      %p228 = pneg %p92
      %p229 = pneg %p116
      %p230 = pneg %p113
      %p231 = pneg %p137
      %p232 = pneg %p134
      %p233 = pneg %p165
      %p234 = pneg %p162
      %s235 = smul.u32 %s20, %s21
      %s236 = smul.u32 64, %s235
      %p237 = scmp.lt.s32.totalorder %s236, 63
      %s238 = scalar_select %p237, %s236, 63
      %s239 = smul.addr %s238, 2
      %s240 = smul.addr %s239, 4
      %s241 = scalar_lea.vmem %s5, %s240
      %s242 = ssub.s32 1, %s20
      %s243 = smul.u32 %s242, %s21
      %s244 = smul.u32 64, %s243
      %p245 = scmp.lt.s32.totalorder %s244, 63
      %s246 = scalar_select %p245, %s244, 63
      %s247 = smul.addr %s246, 4
      %s248 = scalar_lea.vmem %s0, %s247
      %s249 = ssub.s32 1, %s20
      %s250 = smul.u32 %s249, %s21
      %s251 = smul.u32 64, %s250
      %s252 = smul.u32 %s20, %s21
      %s253 = smul.u32 64, %s252
      %p254 = scmp.lt.s32.totalorder %s253, 63
      %s255 = scalar_select %p254, %s253, 63
      %s256 = smul.addr %s255, 2
      %s257 = smul.addr %s256, 4
      %s258 = scalar_lea.vmem %s5, %s257
      %s259 = smul.u32 %s20, %s21
      %s260 = smul.u32 64, %s259
      %p262 = scmp.eq.s32.totalorder %s20, 0
      %p263 = scmp.eq.s32.totalorder %s21, 0
      %p264 = pnand %p262, %p263
      %p265 = pneg %p264
      // Predicated region
      $region41: #{residual_forward.2} parent=39 // pred_check
        _
      $region42: #{residual_forward.2} parent=39 // pred_check_branch
        %267 = sbr.rel (%p264) target = $region44
      $region43: #{residual_forward.2} parent=39 // pred_region
        %v268 = vlaneseq
        %vm269 = vcmp.ge.s32.totalorder %v268, 0
        %vm270 = vcmp.lt.s32.totalorder %v268, 256
        %vm271 = vmand %vm269, %vm270
        %272 = vst.msk [vmem:[#allocation2] sm:$0x3] %vm271, 0.0
        %273 = vst.msk [vmem:[#allocation3] sm:$0x3] %vm271, 0.0
      $region44: #{residual_forward.2} parent=39 // pred_fallthru
        _
      // Predicated region
      $region45: #{residual_forward.2} parent=39 // pred_check
        %p274 = pneg %p262
      $region46: #{residual_forward.2} parent=39 // pred_check_branch
        %276 = sbr.rel (%p274) target = $region48
      $region47: #{residual_forward.2} parent=39 // pred_region
        %v277 = vld [vmem:[%s248] sm:$0xf]
        %v278 = vld [vmem:[%s248 + $0x4] sm:$0xf]
        %v279 = vld [vmem:[%s248 + $0x8] sm:$0xf]
        %v280 = vld [vmem:[%s248 + $0xc] sm:$0xf]
        %v281 = vld [vmem:[%s248 + $0x10] sm:$0xf]
        %v282 = vld [vmem:[%s248 + $0x14] sm:$0xf]
        %v283 = vld [vmem:[%s248 + $0x18] sm:$0xf]
        %v284 = vld [vmem:[%s248 + $0x1c] sm:$0xf]
        %v285 = vld [vmem:[%s248 + $0x20] sm:$0xf]
        %v286 = vld [vmem:[%s248 + $0x24] sm:$0xf]
        %v287 = vld [vmem:[%s248 + $0x28] sm:$0xf]
        %v288 = vld [vmem:[%s248 + $0x2c] sm:$0xf]
        %v289 = vld [vmem:[%s248 + $0x30] sm:$0xf]
        %v290 = vld [vmem:[%s248 + $0x34] sm:$0xf]
        %v291 = vld [vmem:[%s248 + $0x38] sm:$0xf]
        %v292 = vld [vmem:[%s248 + $0x3c] sm:$0xf]
        %v293 = vld [vmem:[%s248 + $0x40] sm:$0xf]
        %v294 = vld [vmem:[%s248 + $0x44] sm:$0xf]
        %v295 = vld [vmem:[%s248 + $0x48] sm:$0xf]
        %v296 = vld [vmem:[%s248 + $0x4c] sm:$0xf]
        %v297 = vld [vmem:[%s248 + $0x50] sm:$0xf]
        %v298 = vld [vmem:[%s248 + $0x54] sm:$0xf]
        %v299 = vld [vmem:[%s248 + $0x58] sm:$0xf]
        %v300 = vld [vmem:[%s248 + $0x5c] sm:$0xf]
        %v301 = vld [vmem:[%s248 + $0x60] sm:$0xf]
        %v302 = vld [vmem:[%s248 + $0x64] sm:$0xf]
        %v303 = vld [vmem:[%s248 + $0x68] sm:$0xf]
        %v304 = vld [vmem:[%s248 + $0x6c] sm:$0xf]
        %v305 = vld [vmem:[%s248 + $0x70] sm:$0xf]
        %v306 = vld [vmem:[%s248 + $0x74] sm:$0xf]
        %v307 = vld [vmem:[%s248 + $0x78] sm:$0xf]
        %v308 = vld [vmem:[%s248 + $0x7c] sm:$0xf]
        %v309 = vld [vmem:[%s248 + $0x80] sm:$0xf]
        %v310 = vld [vmem:[%s248 + $0x84] sm:$0xf]
        %v311 = vld [vmem:[%s248 + $0x88] sm:$0xf]
        %v312 = vld [vmem:[%s248 + $0x8c] sm:$0xf]
        %v313 = vld [vmem:[%s248 + $0x90] sm:$0xf]
        %v314 = vld [vmem:[%s248 + $0x94] sm:$0xf]
        %v315 = vld [vmem:[%s248 + $0x98] sm:$0xf]
        %v316 = vld [vmem:[%s248 + $0x9c] sm:$0xf]
        %v317 = vld [vmem:[%s248 + $0xa0] sm:$0xf]
        %v318 = vld [vmem:[%s248 + $0xa4] sm:$0xf]
        %v319 = vld [vmem:[%s248 + $0xa8] sm:$0xf]
        %v320 = vld [vmem:[%s248 + $0xac] sm:$0xf]
        %v321 = vld [vmem:[%s248 + $0xb0] sm:$0xf]
        %v322 = vld [vmem:[%s248 + $0xb4] sm:$0xf]
        %v323 = vld [vmem:[%s248 + $0xb8] sm:$0xf]
        %v324 = vld [vmem:[%s248 + $0xbc] sm:$0xf]
        %v325 = vld [vmem:[%s248 + $0xc0] sm:$0xf]
        %v326 = vld [vmem:[%s248 + $0xc4] sm:$0xf]
        %v327 = vld [vmem:[%s248 + $0xc8] sm:$0xf]
        %v328 = vld [vmem:[%s248 + $0xcc] sm:$0xf]
        %v329 = vld [vmem:[%s248 + $0xd0] sm:$0xf]
        %v330 = vld [vmem:[%s248 + $0xd4] sm:$0xf]
        %v331 = vld [vmem:[%s248 + $0xd8] sm:$0xf]
        %v332 = vld [vmem:[%s248 + $0xdc] sm:$0xf]
        %v333 = vld [vmem:[%s248 + $0xe0] sm:$0xf]
        %v334 = vld [vmem:[%s248 + $0xe4] sm:$0xf]
        %v335 = vld [vmem:[%s248 + $0xe8] sm:$0xf]
        %v336 = vld [vmem:[%s248 + $0xec] sm:$0xf]
        %v337 = vld [vmem:[%s248 + $0xf0] sm:$0xf]
        %v338 = vld [vmem:[%s248 + $0xf4] sm:$0xf]
        %v339 = vld [vmem:[%s248 + $0xf8] sm:$0xf]
        %v340 = vld [vmem:[%s248 + $0xfc] sm:$0xf]
        %v341 = vld [vmem:[%s1] sm:$0xff]
        %v342 = vld [vmem:[%s1 + $0x8] sm:$0xff]
        %v343 = vld [vmem:[%s1 + $0x10] sm:$0xff]
        %v344 = vld [vmem:[%s1 + $0x18] sm:$0xff]
        %v345 = vld [vmem:[%s1 + $0x20] sm:$0x33]
        %v410 = vunpack.c.l.b16 %v277
        %v411 = vunpack.c.l.b16 %v278
        %v412 = vunpack.c.l.b16 %v279
        %v413 = vunpack.c.l.b16 %v280
        %v414 = vunpack.c.l.b16 %v281
        %v415 = vunpack.c.l.b16 %v282
        %v416 = vunpack.c.l.b16 %v283
        %v417 = vunpack.c.l.b16 %v284
        %v418 = vunpack.c.l.b16 %v285
        %v419 = vunpack.c.l.b16 %v286
        %v420 = vunpack.c.l.b16 %v287
        %v421 = vunpack.c.l.b16 %v288
        %v422 = vunpack.c.l.b16 %v289
        %v423 = vunpack.c.l.b16 %v290
        %v424 = vunpack.c.l.b16 %v291
        %v425 = vunpack.c.l.b16 %v292
        %v426 = vunpack.c.l.b16 %v293
        %v427 = vunpack.c.l.b16 %v294
        %v428 = vunpack.c.l.b16 %v295
        %v429 = vunpack.c.l.b16 %v296
        %v430 = vunpack.c.l.b16 %v297
        %v431 = vunpack.c.l.b16 %v298
        %v432 = vunpack.c.l.b16 %v299
        %v433 = vunpack.c.l.b16 %v300
        %v434 = vunpack.c.l.b16 %v301
        %v435 = vunpack.c.l.b16 %v302
        %v436 = vunpack.c.l.b16 %v303
        %v437 = vunpack.c.l.b16 %v304
        %v438 = vunpack.c.l.b16 %v305
        %v439 = vunpack.c.l.b16 %v306
        %v440 = vunpack.c.l.b16 %v307
        %v441 = vunpack.c.l.b16 %v308
        %v442 = vunpack.c.l.b16 %v309
        %v443 = vunpack.c.l.b16 %v310
        %v444 = vunpack.c.l.b16 %v311
        %v445 = vunpack.c.l.b16 %v312
        %v446 = vunpack.c.l.b16 %v313
        %v447 = vunpack.c.l.b16 %v314
        %v448 = vunpack.c.l.b16 %v315
        %v449 = vunpack.c.l.b16 %v316
        %v450 = vunpack.c.l.b16 %v317
        %v451 = vunpack.c.l.b16 %v318
        %v452 = vunpack.c.l.b16 %v319
        %v453 = vunpack.c.l.b16 %v320
        %v454 = vunpack.c.l.b16 %v321
        %v455 = vunpack.c.l.b16 %v322
        %v456 = vunpack.c.l.b16 %v323
        %v457 = vunpack.c.l.b16 %v324
        %v458 = vunpack.c.l.b16 %v325
        %v459 = vunpack.c.l.b16 %v326
        %v460 = vunpack.c.l.b16 %v327
        %v461 = vunpack.c.l.b16 %v328
        %v462 = vunpack.c.l.b16 %v329
        %v463 = vunpack.c.l.b16 %v330
        %v464 = vunpack.c.l.b16 %v331
        %v465 = vunpack.c.l.b16 %v332
        %v466 = vunpack.c.l.b16 %v333
        %v467 = vunpack.c.l.b16 %v334
        %v468 = vunpack.c.l.b16 %v335
        %v469 = vunpack.c.l.b16 %v336
        %v470 = vunpack.c.l.b16 %v337
        %v471 = vunpack.c.l.b16 %v338
        %v472 = vunpack.c.l.b16 %v339
        %v473 = vunpack.c.l.b16 %v340
        %v474 = vpack.c.b16 %v411, %v410
        %v475 = vpack.c.b16 %v413, %v412
        %v476 = vpack.c.b16 %v415, %v414
        %v477 = vpack.c.b16 %v417, %v416
        %v478 = vpack.c.b16 %v419, %v418
        %v479 = vpack.c.b16 %v421, %v420
        %v480 = vpack.c.b16 %v423, %v422
        %v481 = vpack.c.b16 %v425, %v424
        %v482 = vpack.c.b16 %v427, %v426
        %v483 = vpack.c.b16 %v429, %v428
        %v484 = vpack.c.b16 %v431, %v430
        %v485 = vpack.c.b16 %v433, %v432
        %v486 = vpack.c.b16 %v435, %v434
        %v487 = vpack.c.b16 %v437, %v436
        %v488 = vpack.c.b16 %v439, %v438
        %v489 = vpack.c.b16 %v441, %v440
        %v490 = vpack.c.b16 %v443, %v442
        %v491 = vpack.c.b16 %v445, %v444
        %v492 = vpack.c.b16 %v447, %v446
        %v493 = vpack.c.b16 %v449, %v448
        %v494 = vpack.c.b16 %v451, %v450
        %v495 = vpack.c.b16 %v453, %v452
        %v496 = vpack.c.b16 %v455, %v454
        %v497 = vpack.c.b16 %v457, %v456
        %v498 = vpack.c.b16 %v459, %v458
        %v499 = vpack.c.b16 %v461, %v460
        %v500 = vpack.c.b16 %v463, %v462
        %v501 = vpack.c.b16 %v465, %v464
        %v502 = vpack.c.b16 %v467, %v466
        %v503 = vpack.c.b16 %v469, %v468
        %v504 = vpack.c.b16 %v471, %v470
        %v505 = vpack.c.b16 %v473, %v472
        %v511 = vunpack.c.l.b16 %v341
        %v512 = vunpack.c.h.b16 %v341
        %v513 = vunpack.c.l.b16 %v342
        %v514 = vunpack.c.h.b16 %v342
        %v515 = vunpack.c.l.b16 %v343
        %v516 = vunpack.c.h.b16 %v343
        %v517 = vunpack.c.l.b16 %v344
        %v518 = vunpack.c.h.b16 %v344
        %v519 = vunpack.c.l.b16 %v345
        %v520 = vunpack.c.h.b16 %v345
        %v521 = vpack.c.b16 %v513, %v511
        %v522 = vpack.c.b16 %v514, %v512
        %v523 = vpack.c.b16 %v517, %v515
        %v524 = vpack.c.b16 %v518, %v516
        %v525 = vpack.c.b16 %v519, %v519
        %v526 = vpack.c.b16 %v520, %v520
        %vm531 = vcmask 293888
        %v533 = vsel %vm531, %v474, 0
        %v536 = vsel %vm531, %v475, 0
        %v539 = vsel %vm531, %v476, 0
        %v542 = vsel %vm531, %v477, 0
        %v545 = vsel %vm531, %v478, 0
        %v548 = vsel %vm531, %v479, 0
        %v551 = vsel %vm531, %v480, 0
        %v554 = vsel %vm531, %v481, 0
        %v557 = vsel %vm531, %v482, 0
        %v560 = vsel %vm531, %v483, 0
        %v563 = vsel %vm531, %v484, 0
        %v566 = vsel %vm531, %v485, 0
        %v569 = vsel %vm531, %v486, 0
        %v572 = vsel %vm531, %v487, 0
        %v575 = vsel %vm531, %v488, 0
        %v578 = vsel %vm531, %v489, 0
        %v581 = vsel %vm531, %v490, 0
        %v584 = vsel %vm531, %v491, 0
        %v587 = vsel %vm531, %v492, 0
        %v590 = vsel %vm531, %v493, 0
        %v593 = vsel %vm531, %v494, 0
        %v596 = vsel %vm531, %v495, 0
        %v599 = vsel %vm531, %v496, 0
        %v602 = vsel %vm531, %v497, 0
        %v605 = vsel %vm531, %v498, 0
        %v608 = vsel %vm531, %v499, 0
        %v611 = vsel %vm531, %v500, 0
        %v614 = vsel %vm531, %v501, 0
        %v617 = vsel %vm531, %v502, 0
        %v620 = vsel %vm531, %v503, 0
        %v623 = vsel %vm531, %v504, 0
        %v626 = vsel %vm531, %v505, 0
        %vm628 = vcmask 1041408
        %v630 = vsel %vm628, %v525, 0
        %v633 = vsel %vm628, %v526, 0
        %635 = vmatpush.bf16.msra.mxu0 0
        %636 = vmatpush.bf16.msra.mxu0 0
        %637 = vmatpush.bf16.msra.mxu0 0
        %638 = vmatpush.bf16.msra.mxu0 0
        %639 = vmatpush.bf16.msra.mxu0 0
        %640 = vmatpush.bf16.msra.mxu0 %v630
        %641 = vmatpush.bf16.msra.mxu0 %v523
        %642 = vmatpush.bf16.msra.mxu0 %v521
        %643 = vmatmul.bf16.gmra.mxu0 %v533
        %v644 = vpop.f32.mrf.mxu0
        %v645 = vadd.f32 0.0, %v644
        %v646 = vpop.f32.mrf.mxu0
        %v647 = vadd.f32 0.0, %v646
        %648 = vmatmul.bf16.gmra.mxu0 %v536
        %v649 = vpop.f32.mrf.mxu0
        %v650 = vadd.f32 0.0, %v649
        %v651 = vpop.f32.mrf.mxu0
        %v652 = vadd.f32 0.0, %v651
        %653 = vmatmul.bf16.gmra.mxu0 %v539
        %v654 = vpop.f32.mrf.mxu0
        %v655 = vadd.f32 0.0, %v654
        %v656 = vpop.f32.mrf.mxu0
        %v657 = vadd.f32 0.0, %v656
        %658 = vmatmul.bf16.gmra.mxu0 %v542
        %v659 = vpop.f32.mrf.mxu0
        %v660 = vadd.f32 0.0, %v659
        %v661 = vpop.f32.mrf.mxu0
        %v662 = vadd.f32 0.0, %v661
        %663 = vmatmul.bf16.gmra.mxu0 %v545
        %v664 = vpop.f32.mrf.mxu0
        %v665 = vadd.f32 0.0, %v664
        %v666 = vpop.f32.mrf.mxu0
        %v667 = vadd.f32 0.0, %v666
        %668 = vmatmul.bf16.gmra.mxu0 %v548
        %v669 = vpop.f32.mrf.mxu0
        %v670 = vadd.f32 0.0, %v669
        %v671 = vpop.f32.mrf.mxu0
        %v672 = vadd.f32 0.0, %v671
        %673 = vmatmul.bf16.gmra.mxu0 %v551
        %v674 = vpop.f32.mrf.mxu0
        %v675 = vadd.f32 0.0, %v674
        %v676 = vpop.f32.mrf.mxu0
        %v677 = vadd.f32 0.0, %v676
        %678 = vmatmul.bf16.gmra.mxu0 %v554
        %v679 = vpop.f32.mrf.mxu0
        %v680 = vadd.f32 0.0, %v679
        %v681 = vpop.f32.mrf.mxu0
        %v682 = vadd.f32 0.0, %v681
        %683 = vmatmul.bf16.gmra.mxu0 %v557
        %v684 = vpop.f32.mrf.mxu0
        %v685 = vadd.f32 0.0, %v684
        %v686 = vpop.f32.mrf.mxu0
        %v687 = vadd.f32 0.0, %v686
        %688 = vmatmul.bf16.gmra.mxu0 %v560
        %v689 = vpop.f32.mrf.mxu0
        %v690 = vadd.f32 0.0, %v689
        %v691 = vpop.f32.mrf.mxu0
        %v692 = vadd.f32 0.0, %v691
        %693 = vmatmul.bf16.gmra.mxu0 %v563
        %v694 = vpop.f32.mrf.mxu0
        %v695 = vadd.f32 0.0, %v694
        %v696 = vpop.f32.mrf.mxu0
        %v697 = vadd.f32 0.0, %v696
        %698 = vmatmul.bf16.gmra.mxu0 %v566
        %v699 = vpop.f32.mrf.mxu0
        %v700 = vadd.f32 0.0, %v699
        %v701 = vpop.f32.mrf.mxu0
        %v702 = vadd.f32 0.0, %v701
        %703 = vmatmul.bf16.gmra.mxu0 %v569
        %v704 = vpop.f32.mrf.mxu0
        %v705 = vadd.f32 0.0, %v704
        %v706 = vpop.f32.mrf.mxu0
        %v707 = vadd.f32 0.0, %v706
        %708 = vmatmul.bf16.gmra.mxu0 %v572
        %v709 = vpop.f32.mrf.mxu0
        %v710 = vadd.f32 0.0, %v709
        %v711 = vpop.f32.mrf.mxu0
        %v712 = vadd.f32 0.0, %v711
        %713 = vmatmul.bf16.gmra.mxu0 %v575
        %v714 = vpop.f32.mrf.mxu0
        %v715 = vadd.f32 0.0, %v714
        %v716 = vpop.f32.mrf.mxu0
        %v717 = vadd.f32 0.0, %v716
        %718 = vmatmul.bf16.gmra.mxu0 %v578
        %v719 = vpop.f32.mrf.mxu0
        %v720 = vadd.f32 0.0, %v719
        %v721 = vpop.f32.mrf.mxu0
        %v722 = vadd.f32 0.0, %v721
        %723 = vmatmul.bf16.gmra.mxu0 %v581
        %v724 = vpop.f32.mrf.mxu0
        %v725 = vadd.f32 0.0, %v724
        %v726 = vpop.f32.mrf.mxu0
        %v727 = vadd.f32 0.0, %v726
        %728 = vmatmul.bf16.gmra.mxu0 %v584
        %v729 = vpop.f32.mrf.mxu0
        %v730 = vadd.f32 0.0, %v729
        %v731 = vpop.f32.mrf.mxu0
        %v732 = vadd.f32 0.0, %v731
        %733 = vmatmul.bf16.gmra.mxu0 %v587
        %v734 = vpop.f32.mrf.mxu0
        %v735 = vadd.f32 0.0, %v734
        %v736 = vpop.f32.mrf.mxu0
        %v737 = vadd.f32 0.0, %v736
        %738 = vmatmul.bf16.gmra.mxu0 %v590
        %v739 = vpop.f32.mrf.mxu0
        %v740 = vadd.f32 0.0, %v739
        %v741 = vpop.f32.mrf.mxu0
        %v742 = vadd.f32 0.0, %v741
        %743 = vmatmul.bf16.gmra.mxu0 %v593
        %v744 = vpop.f32.mrf.mxu0
        %v745 = vadd.f32 0.0, %v744
        %v746 = vpop.f32.mrf.mxu0
        %v747 = vadd.f32 0.0, %v746
        %748 = vmatmul.bf16.gmra.mxu0 %v596
        %v749 = vpop.f32.mrf.mxu0
        %v750 = vadd.f32 0.0, %v749
        %v751 = vpop.f32.mrf.mxu0
        %v752 = vadd.f32 0.0, %v751
        %753 = vmatmul.bf16.gmra.mxu0 %v599
        %v754 = vpop.f32.mrf.mxu0
        %v755 = vadd.f32 0.0, %v754
        %v756 = vpop.f32.mrf.mxu0
        %v757 = vadd.f32 0.0, %v756
        %758 = vmatmul.bf16.gmra.mxu0 %v602
        %v759 = vpop.f32.mrf.mxu0
        %v760 = vadd.f32 0.0, %v759
        %v761 = vpop.f32.mrf.mxu0
        %v762 = vadd.f32 0.0, %v761
        %763 = vmatmul.bf16.gmra.mxu0 %v605
        %v764 = vpop.f32.mrf.mxu0
        %v765 = vadd.f32 0.0, %v764
        %v766 = vpop.f32.mrf.mxu0
        %v767 = vadd.f32 0.0, %v766
        %768 = vmatmul.bf16.gmra.mxu0 %v608
        %v769 = vpop.f32.mrf.mxu0
        %v770 = vadd.f32 0.0, %v769
        %v771 = vpop.f32.mrf.mxu0
        %v772 = vadd.f32 0.0, %v771
        %773 = vmatmul.bf16.gmra.mxu0 %v611
        %v774 = vpop.f32.mrf.mxu0
        %v775 = vadd.f32 0.0, %v774
        %v776 = vpop.f32.mrf.mxu0
        %v777 = vadd.f32 0.0, %v776
        %778 = vmatmul.bf16.gmra.mxu0 %v614
        %v779 = vpop.f32.mrf.mxu0
        %v780 = vadd.f32 0.0, %v779
        %v781 = vpop.f32.mrf.mxu0
        %v782 = vadd.f32 0.0, %v781
        %783 = vmatmul.bf16.gmra.mxu0 %v617
        %v784 = vpop.f32.mrf.mxu0
        %v785 = vadd.f32 0.0, %v784
        %v786 = vpop.f32.mrf.mxu0
        %v787 = vadd.f32 0.0, %v786
        %788 = vmatmul.bf16.gmra.mxu0 %v620
        %v789 = vpop.f32.mrf.mxu0
        %v790 = vadd.f32 0.0, %v789
        %v791 = vpop.f32.mrf.mxu0
        %v792 = vadd.f32 0.0, %v791
        %793 = vmatmul.bf16.gmra.mxu0 %v623
        %v794 = vpop.f32.mrf.mxu0
        %v795 = vadd.f32 0.0, %v794
        %v796 = vpop.f32.mrf.mxu0
        %v797 = vadd.f32 0.0, %v796
        %798 = vmatmul.bf16.gmra.mxu0 %v626
        %v799 = vpop.f32.mrf.mxu0
        %v800 = vadd.f32 0.0, %v799
        %v801 = vpop.f32.mrf.mxu0
        %v802 = vadd.f32 0.0, %v801
        %803 = vdwg.mxu0
        %804 = vmatpush.bf16.msra.mxu0 0
        %805 = vmatpush.bf16.msra.mxu0 0
        %806 = vmatpush.bf16.msra.mxu0 0
        %807 = vmatpush.bf16.msra.mxu0 0
        %808 = vmatpush.bf16.msra.mxu0 0
        %809 = vmatpush.bf16.msra.mxu0 %v633
        %810 = vmatpush.bf16.msra.mxu0 %v524
        %811 = vmatpush.bf16.msra.mxu0 %v522
        %812 = vmatmul.bf16.gmra.mxu0 %v533
        %v813 = vpop.f32.mrf.mxu0
        %v814 = vadd.f32 0.0, %v813
        %v815 = vpop.f32.mrf.mxu0
        %v816 = vadd.f32 0.0, %v815
        %817 = vmatmul.bf16.gmra.mxu0 %v536
        %v818 = vpop.f32.mrf.mxu0
        %v819 = vadd.f32 0.0, %v818
        %v820 = vpop.f32.mrf.mxu0
        %v821 = vadd.f32 0.0, %v820
        %822 = vmatmul.bf16.gmra.mxu0 %v539
        %v823 = vpop.f32.mrf.mxu0
        %v824 = vadd.f32 0.0, %v823
        %v825 = vpop.f32.mrf.mxu0
        %v826 = vadd.f32 0.0, %v825
        %827 = vmatmul.bf16.gmra.mxu0 %v542
        %v828 = vpop.f32.mrf.mxu0
        %v829 = vadd.f32 0.0, %v828
        %v830 = vpop.f32.mrf.mxu0
        %v831 = vadd.f32 0.0, %v830
        %832 = vmatmul.bf16.gmra.mxu0 %v545
        %v833 = vpop.f32.mrf.mxu0
        %v834 = vadd.f32 0.0, %v833
        %v835 = vpop.f32.mrf.mxu0
        %v836 = vadd.f32 0.0, %v835
        %837 = vmatmul.bf16.gmra.mxu0 %v548
        %v838 = vpop.f32.mrf.mxu0
        %v839 = vadd.f32 0.0, %v838
        %v840 = vpop.f32.mrf.mxu0
        %v841 = vadd.f32 0.0, %v840
        %842 = vmatmul.bf16.gmra.mxu0 %v551
        %v843 = vpop.f32.mrf.mxu0
        %v844 = vadd.f32 0.0, %v843
        %v845 = vpop.f32.mrf.mxu0
        %v846 = vadd.f32 0.0, %v845
        %847 = vmatmul.bf16.gmra.mxu0 %v554
        %v848 = vpop.f32.mrf.mxu0
        %v849 = vadd.f32 0.0, %v848
        %v850 = vpop.f32.mrf.mxu0
        %v851 = vadd.f32 0.0, %v850
        %852 = vmatmul.bf16.gmra.mxu0 %v557
        %v853 = vpop.f32.mrf.mxu0
        %v854 = vadd.f32 0.0, %v853
        %v855 = vpop.f32.mrf.mxu0
        %v856 = vadd.f32 0.0, %v855
        %857 = vmatmul.bf16.gmra.mxu0 %v560
        %v858 = vpop.f32.mrf.mxu0
        %v859 = vadd.f32 0.0, %v858
        %v860 = vpop.f32.mrf.mxu0
        %v861 = vadd.f32 0.0, %v860
        %862 = vmatmul.bf16.gmra.mxu0 %v563
        %v863 = vpop.f32.mrf.mxu0
        %v864 = vadd.f32 0.0, %v863
        %v865 = vpop.f32.mrf.mxu0
        %v866 = vadd.f32 0.0, %v865
        %867 = vmatmul.bf16.gmra.mxu0 %v566
        %v868 = vpop.f32.mrf.mxu0
        %v869 = vadd.f32 0.0, %v868
        %v870 = vpop.f32.mrf.mxu0
        %v871 = vadd.f32 0.0, %v870
        %872 = vmatmul.bf16.gmra.mxu0 %v569
        %v873 = vpop.f32.mrf.mxu0
        %v874 = vadd.f32 0.0, %v873
        %v875 = vpop.f32.mrf.mxu0
        %v876 = vadd.f32 0.0, %v875
        %877 = vmatmul.bf16.gmra.mxu0 %v572
        %v878 = vpop.f32.mrf.mxu0
        %v879 = vadd.f32 0.0, %v878
        %v880 = vpop.f32.mrf.mxu0
        %v881 = vadd.f32 0.0, %v880
        %882 = vmatmul.bf16.gmra.mxu0 %v575
        %v883 = vpop.f32.mrf.mxu0
        %v884 = vadd.f32 0.0, %v883
        %v885 = vpop.f32.mrf.mxu0
        %v886 = vadd.f32 0.0, %v885
        %887 = vmatmul.bf16.gmra.mxu0 %v578
        %v888 = vpop.f32.mrf.mxu0
        %v889 = vadd.f32 0.0, %v888
        %v890 = vpop.f32.mrf.mxu0
        %v891 = vadd.f32 0.0, %v890
        %892 = vmatmul.bf16.gmra.mxu0 %v581
        %v893 = vpop.f32.mrf.mxu0
        %v894 = vadd.f32 0.0, %v893
        %v895 = vpop.f32.mrf.mxu0
        %v896 = vadd.f32 0.0, %v895
        %897 = vmatmul.bf16.gmra.mxu0 %v584
        %v898 = vpop.f32.mrf.mxu0
        %v899 = vadd.f32 0.0, %v898
        %v900 = vpop.f32.mrf.mxu0
        %v901 = vadd.f32 0.0, %v900
        %902 = vmatmul.bf16.gmra.mxu0 %v587
        %v903 = vpop.f32.mrf.mxu0
        %v904 = vadd.f32 0.0, %v903
        %v905 = vpop.f32.mrf.mxu0
        %v906 = vadd.f32 0.0, %v905
        %907 = vmatmul.bf16.gmra.mxu0 %v590
        %v908 = vpop.f32.mrf.mxu0
        %v909 = vadd.f32 0.0, %v908
        %v910 = vpop.f32.mrf.mxu0
        %v911 = vadd.f32 0.0, %v910
        %912 = vmatmul.bf16.gmra.mxu0 %v593
        %v913 = vpop.f32.mrf.mxu0
        %v914 = vadd.f32 0.0, %v913
        %v915 = vpop.f32.mrf.mxu0
        %v916 = vadd.f32 0.0, %v915
        %917 = vmatmul.bf16.gmra.mxu0 %v596
        %v918 = vpop.f32.mrf.mxu0
        %v919 = vadd.f32 0.0, %v918
        %v920 = vpop.f32.mrf.mxu0
        %v921 = vadd.f32 0.0, %v920
        %922 = vmatmul.bf16.gmra.mxu0 %v599
        %v923 = vpop.f32.mrf.mxu0
        %v924 = vadd.f32 0.0, %v923
        %v925 = vpop.f32.mrf.mxu0
        %v926 = vadd.f32 0.0, %v925
        %927 = vmatmul.bf16.gmra.mxu0 %v602
        %v928 = vpop.f32.mrf.mxu0
        %v929 = vadd.f32 0.0, %v928
        %v930 = vpop.f32.mrf.mxu0
        %v931 = vadd.f32 0.0, %v930
        %932 = vmatmul.bf16.gmra.mxu0 %v605
        %v933 = vpop.f32.mrf.mxu0
        %v934 = vadd.f32 0.0, %v933
        %v935 = vpop.f32.mrf.mxu0
        %v936 = vadd.f32 0.0, %v935
        %937 = vmatmul.bf16.gmra.mxu0 %v608
        %v938 = vpop.f32.mrf.mxu0
        %v939 = vadd.f32 0.0, %v938
        %v940 = vpop.f32.mrf.mxu0
        %v941 = vadd.f32 0.0, %v940
        %942 = vmatmul.bf16.gmra.mxu0 %v611
        %v943 = vpop.f32.mrf.mxu0
        %v944 = vadd.f32 0.0, %v943
        %v945 = vpop.f32.mrf.mxu0
        %v946 = vadd.f32 0.0, %v945
        %947 = vmatmul.bf16.gmra.mxu0 %v614
        %v948 = vpop.f32.mrf.mxu0
        %v949 = vadd.f32 0.0, %v948
        %v950 = vpop.f32.mrf.mxu0
        %v951 = vadd.f32 0.0, %v950
        %952 = vmatmul.bf16.gmra.mxu0 %v617
        %v953 = vpop.f32.mrf.mxu0
        %v954 = vadd.f32 0.0, %v953
        %v955 = vpop.f32.mrf.mxu0
        %v956 = vadd.f32 0.0, %v955
        %957 = vmatmul.bf16.gmra.mxu0 %v620
        %v958 = vpop.f32.mrf.mxu0
        %v959 = vadd.f32 0.0, %v958
        %v960 = vpop.f32.mrf.mxu0
        %v961 = vadd.f32 0.0, %v960
        %962 = vmatmul.bf16.gmra.mxu0 %v623
        %v963 = vpop.f32.mrf.mxu0
        %v964 = vadd.f32 0.0, %v963
        %v965 = vpop.f32.mrf.mxu0
        %v966 = vadd.f32 0.0, %v965
        %967 = vmatmul.bf16.gmra.mxu0 %v626
        %v968 = vpop.f32.mrf.mxu0
        %v969 = vadd.f32 0.0, %v968
        %v970 = vpop.f32.mrf.mxu0
        %v971 = vadd.f32 0.0, %v970
        %972 = vdwg.mxu0
        %s973 = smul.u32 %s21, 512
        %v974 = vpack.c.bf16 %v814, %v645
        %v975 = vpack.c.bf16 %v816, %v647
        %v976 = vpack.c.bf16 %v819, %v650
        %v977 = vpack.c.bf16 %v821, %v652
        %v978 = vpack.c.bf16 %v824, %v655
        %v979 = vpack.c.bf16 %v826, %v657
        %v980 = vpack.c.bf16 %v829, %v660
        %v981 = vpack.c.bf16 %v831, %v662
        %v982 = vpack.c.bf16 %v834, %v665
        %v983 = vpack.c.bf16 %v836, %v667
        %v984 = vpack.c.bf16 %v839, %v670
        %v985 = vpack.c.bf16 %v841, %v672
        %v986 = vpack.c.bf16 %v844, %v675
        %v987 = vpack.c.bf16 %v846, %v677
        %v988 = vpack.c.bf16 %v849, %v680
        %v989 = vpack.c.bf16 %v851, %v682
        %v990 = vpack.c.bf16 %v854, %v685
        %v991 = vpack.c.bf16 %v856, %v687
        %v992 = vpack.c.bf16 %v859, %v690
        %v993 = vpack.c.bf16 %v861, %v692
        %v994 = vpack.c.bf16 %v864, %v695
        %v995 = vpack.c.bf16 %v866, %v697
        %v996 = vpack.c.bf16 %v869, %v700
        %v997 = vpack.c.bf16 %v871, %v702
        %v998 = vpack.c.bf16 %v874, %v705
        %v999 = vpack.c.bf16 %v876, %v707
        %v1000 = vpack.c.bf16 %v879, %v710
        %v1001 = vpack.c.bf16 %v881, %v712
        %v1002 = vpack.c.bf16 %v884, %v715
        %v1003 = vpack.c.bf16 %v886, %v717
        %v1004 = vpack.c.bf16 %v889, %v720
        %v1005 = vpack.c.bf16 %v891, %v722
        %v1006 = vpack.c.bf16 %v894, %v725
        %v1007 = vpack.c.bf16 %v896, %v727
        %v1008 = vpack.c.bf16 %v899, %v730
        %v1009 = vpack.c.bf16 %v901, %v732
        %v1010 = vpack.c.bf16 %v904, %v735
        %v1011 = vpack.c.bf16 %v906, %v737
        %v1012 = vpack.c.bf16 %v909, %v740
        %v1013 = vpack.c.bf16 %v911, %v742
        %v1014 = vpack.c.bf16 %v914, %v745
        %v1015 = vpack.c.bf16 %v916, %v747
        %v1016 = vpack.c.bf16 %v919, %v750
        %v1017 = vpack.c.bf16 %v921, %v752
        %v1018 = vpack.c.bf16 %v924, %v755
        %v1019 = vpack.c.bf16 %v926, %v757
        %v1020 = vpack.c.bf16 %v929, %v760
        %v1021 = vpack.c.bf16 %v931, %v762
        %v1022 = vpack.c.bf16 %v934, %v765
        %v1023 = vpack.c.bf16 %v936, %v767
        %v1024 = vpack.c.bf16 %v939, %v770
        %v1025 = vpack.c.bf16 %v941, %v772
        %v1026 = vpack.c.bf16 %v944, %v775
        %v1027 = vpack.c.bf16 %v946, %v777
        %v1028 = vpack.c.bf16 %v949, %v780
        %v1029 = vpack.c.bf16 %v951, %v782
        %v1030 = vpack.c.bf16 %v954, %v785
        %v1031 = vpack.c.bf16 %v956, %v787
        %v1032 = vpack.c.bf16 %v959, %v790
        %v1033 = vpack.c.bf16 %v961, %v792
        %v1034 = vpack.c.bf16 %v964, %v795
        %v1035 = vpack.c.bf16 %v966, %v797
        %v1036 = vpack.c.bf16 %v969, %v800
        %v1037 = vpack.c.bf16 %v971, %v802
        %s1038 = sshra.s32 %s973, 3
        %s1039 = sand.u32 %s973, 7
        %s1040 = smul.u32 %s1038, 2
        %s1041 = smul.addr %s1040, 4
        %s1042 = scalar_lea.vmem [#allocation4], %s1041
        %1043 = vst [vmem:[%s1042] sm:$0xff] %v974
        %1044 = vst [vmem:[%s1042 + $0x8] sm:$0xff] %v975
        %1045 = vst [vmem:[%s1042 + $0x10] sm:$0xff] %v976
        %1046 = vst [vmem:[%s1042 + $0x18] sm:$0xff] %v977
        %1047 = vst [vmem:[%s1042 + $0x20] sm:$0xff] %v978
        %1048 = vst [vmem:[%s1042 + $0x28] sm:$0xff] %v979
        %1049 = vst [vmem:[%s1042 + $0x30] sm:$0xff] %v980
        %1050 = vst [vmem:[%s1042 + $0x38] sm:$0xff] %v981
        %1051 = vst [vmem:[%s1042 + $0x40] sm:$0xff] %v982
        %1052 = vst [vmem:[%s1042 + $0x48] sm:$0xff] %v983
        %1053 = vst [vmem:[%s1042 + $0x50] sm:$0xff] %v984
        %1054 = vst [vmem:[%s1042 + $0x58] sm:$0xff] %v985
        %1055 = vst [vmem:[%s1042 + $0x60] sm:$0xff] %v986
        %1056 = vst [vmem:[%s1042 + $0x68] sm:$0xff] %v987
        %1057 = vst [vmem:[%s1042 + $0x70] sm:$0xff] %v988
        %1058 = vst [vmem:[%s1042 + $0x78] sm:$0xff] %v989
        %1059 = vst [vmem:[%s1042 + $0x80] sm:$0xff] %v990
        %1060 = vst [vmem:[%s1042 + $0x88] sm:$0xff] %v991
        %1061 = vst [vmem:[%s1042 + $0x90] sm:$0xff] %v992
        %1062 = vst [vmem:[%s1042 + $0x98] sm:$0xff] %v993
        %1063 = vst [vmem:[%s1042 + $0xa0] sm:$0xff] %v994
        %1064 = vst [vmem:[%s1042 + $0xa8] sm:$0xff] %v995
        %1065 = vst [vmem:[%s1042 + $0xb0] sm:$0xff] %v996
        %1066 = vst [vmem:[%s1042 + $0xb8] sm:$0xff] %v997
        %1067 = vst [vmem:[%s1042 + $0xc0] sm:$0xff] %v998
        %1068 = vst [vmem:[%s1042 + $0xc8] sm:$0xff] %v999
        %1069 = vst [vmem:[%s1042 + $0xd0] sm:$0xff] %v1000
        %1070 = vst [vmem:[%s1042 + $0xd8] sm:$0xff] %v1001
        %1071 = vst [vmem:[%s1042 + $0xe0] sm:$0xff] %v1002
        %1072 = vst [vmem:[%s1042 + $0xe8] sm:$0xff] %v1003
        %1073 = vst [vmem:[%s1042 + $0xf0] sm:$0xff] %v1004
        %1074 = vst [vmem:[%s1042 + $0xf8] sm:$0xff] %v1005
        %1075 = vst [vmem:[%s1042 + $0x100] sm:$0xff] %v1006
        %1076 = vst [vmem:[%s1042 + $0x108] sm:$0xff] %v1007
        %1077 = vst [vmem:[%s1042 + $0x110] sm:$0xff] %v1008
        %1078 = vst [vmem:[%s1042 + $0x118] sm:$0xff] %v1009
        %1079 = vst [vmem:[%s1042 + $0x120] sm:$0xff] %v1010
        %1080 = vst [vmem:[%s1042 + $0x128] sm:$0xff] %v1011
        %1081 = vst [vmem:[%s1042 + $0x130] sm:$0xff] %v1012
        %1082 = vst [vmem:[%s1042 + $0x138] sm:$0xff] %v1013
        %1083 = vst [vmem:[%s1042 + $0x140] sm:$0xff] %v1014
        %1084 = vst [vmem:[%s1042 + $0x148] sm:$0xff] %v1015
        %1085 = vst [vmem:[%s1042 + $0x150] sm:$0xff] %v1016
        %1086 = vst [vmem:[%s1042 + $0x158] sm:$0xff] %v1017
        %1087 = vst [vmem:[%s1042 + $0x160] sm:$0xff] %v1018
        %1088 = vst [vmem:[%s1042 + $0x168] sm:$0xff] %v1019
        %1089 = vst [vmem:[%s1042 + $0x170] sm:$0xff] %v1020
        %1090 = vst [vmem:[%s1042 + $0x178] sm:$0xff] %v1021
        %1091 = vst [vmem:[%s1042 + $0x180] sm:$0xff] %v1022
        %1092 = vst [vmem:[%s1042 + $0x188] sm:$0xff] %v1023
        %1093 = vst [vmem:[%s1042 + $0x190] sm:$0xff] %v1024
        %1094 = vst [vmem:[%s1042 + $0x198] sm:$0xff] %v1025
        %1095 = vst [vmem:[%s1042 + $0x1a0] sm:$0xff] %v1026
        %1096 = vst [vmem:[%s1042 + $0x1a8] sm:$0xff] %v1027
        %1097 = vst [vmem:[%s1042 + $0x1b0] sm:$0xff] %v1028
        %1098 = vst [vmem:[%s1042 + $0x1b8] sm:$0xff] %v1029
        %1099 = vst [vmem:[%s1042 + $0x1c0] sm:$0xff] %v1030
        %1100 = vst [vmem:[%s1042 + $0x1c8] sm:$0xff] %v1031
        %1101 = vst [vmem:[%s1042 + $0x1d0] sm:$0xff] %v1032
        %1102 = vst [vmem:[%s1042 + $0x1d8] sm:$0xff] %v1033
        %1103 = vst [vmem:[%s1042 + $0x1e0] sm:$0xff] %v1034
        %1104 = vst [vmem:[%s1042 + $0x1e8] sm:$0xff] %v1035
        %1105 = vst [vmem:[%s1042 + $0x1f0] sm:$0xff] %v1036
        %1106 = vst [vmem:[%s1042 + $0x1f8] sm:$0xff] %v1037
        %v1107 = vld [vmem:[#allocation2] sm:$0x3]
        %v1108 = vadd.f32 %v645, %v647
        %v1109 = vadd.f32 %v1108, %v650
        %v1110 = vadd.f32 %v1109, %v652
        %v1111 = vadd.f32 %v1110, %v655
        %v1112 = vadd.f32 %v1111, %v657
        %v1113 = vadd.f32 %v1112, %v660
        %v1114 = vadd.f32 %v1113, %v662
        %v1115 = vadd.f32 %v1114, %v665
        %v1116 = vadd.f32 %v1115, %v667
        %v1117 = vadd.f32 %v1116, %v670
        %v1118 = vadd.f32 %v1117, %v672
        %v1119 = vadd.f32 %v1118, %v675
        %v1120 = vadd.f32 %v1119, %v677
        %v1121 = vadd.f32 %v1120, %v680
        %v1122 = vadd.f32 %v1121, %v682
        %v1123 = vadd.f32 %v1122, %v685
        %v1124 = vadd.f32 %v1123, %v687
        %v1125 = vadd.f32 %v1124, %v690
        %v1126 = vadd.f32 %v1125, %v692
        %v1127 = vadd.f32 %v1126, %v695
        %v1128 = vadd.f32 %v1127, %v697
        %v1129 = vadd.f32 %v1128, %v700
        %v1130 = vadd.f32 %v1129, %v702
        %v1131 = vadd.f32 %v1130, %v705
        %v1132 = vadd.f32 %v1131, %v707
        %v1133 = vadd.f32 %v1132, %v710
        %v1134 = vadd.f32 %v1133, %v712
        %v1135 = vadd.f32 %v1134, %v715
        %v1136 = vadd.f32 %v1135, %v717
        %v1137 = vadd.f32 %v1136, %v720
        %v1138 = vadd.f32 %v1137, %v722
        %v1139 = vadd.f32 %v1138, %v725
        %v1140 = vadd.f32 %v1139, %v727
        %v1141 = vadd.f32 %v1140, %v730
        %v1142 = vadd.f32 %v1141, %v732
        %v1143 = vadd.f32 %v1142, %v735
        %v1144 = vadd.f32 %v1143, %v737
        %v1145 = vadd.f32 %v1144, %v740
        %v1146 = vadd.f32 %v1145, %v742
        %v1147 = vadd.f32 %v1146, %v745
        %v1148 = vadd.f32 %v1147, %v747
        %v1149 = vadd.f32 %v1148, %v750
        %v1150 = vadd.f32 %v1149, %v752
        %v1151 = vadd.f32 %v1150, %v755
        %v1152 = vadd.f32 %v1151, %v757
        %v1153 = vadd.f32 %v1152, %v760
        %v1154 = vadd.f32 %v1153, %v762
        %v1155 = vadd.f32 %v1154, %v765
        %v1156 = vadd.f32 %v1155, %v767
        %v1157 = vadd.f32 %v1156, %v770
        %v1158 = vadd.f32 %v1157, %v772
        %v1159 = vadd.f32 %v1158, %v775
        %v1160 = vadd.f32 %v1159, %v777
        %v1161 = vadd.f32 %v1160, %v780
        %v1162 = vadd.f32 %v1161, %v782
        %v1163 = vadd.f32 %v1162, %v785
        %v1164 = vadd.f32 %v1163, %v787
        %v1165 = vadd.f32 %v1164, %v790
        %v1166 = vadd.f32 %v1165, %v792
        %v1167 = vadd.f32 %v1166, %v795
        %v1168 = vadd.f32 %v1167, %v797
        %v1169 = vadd.f32 %v1168, %v800
        %v1170 = vadd.f32 %v1169, %v802
        %v1171 = vrot.slane %v1170, 4
        %v1172 = vadd.f32 %v1170, %v1171
        %v1173 = vrot.slane %v1172, 2
        %v1174 = vadd.f32 %v1172, %v1173
        %v1175 = vrot.slane %v1174, 1
        %v1176 = vadd.f32 %v1174, %v1175
        %v1177 = vadd.f32 %v814, %v816
        %v1178 = vadd.f32 %v1177, %v819
        %v1179 = vadd.f32 %v1178, %v821
        %v1180 = vadd.f32 %v1179, %v824
        %v1181 = vadd.f32 %v1180, %v826
        %v1182 = vadd.f32 %v1181, %v829
        %v1183 = vadd.f32 %v1182, %v831
        %v1184 = vadd.f32 %v1183, %v834
        %v1185 = vadd.f32 %v1184, %v836
        %v1186 = vadd.f32 %v1185, %v839
        %v1187 = vadd.f32 %v1186, %v841
        %v1188 = vadd.f32 %v1187, %v844
        %v1189 = vadd.f32 %v1188, %v846
        %v1190 = vadd.f32 %v1189, %v849
        %v1191 = vadd.f32 %v1190, %v851
        %v1192 = vadd.f32 %v1191, %v854
        %v1193 = vadd.f32 %v1192, %v856
        %v1194 = vadd.f32 %v1193, %v859
        %v1195 = vadd.f32 %v1194, %v861
        %v1196 = vadd.f32 %v1195, %v864
        %v1197 = vadd.f32 %v1196, %v866
        %v1198 = vadd.f32 %v1197, %v869
        %v1199 = vadd.f32 %v1198, %v871
        %v1200 = vadd.f32 %v1199, %v874
        %v1201 = vadd.f32 %v1200, %v876
        %v1202 = vadd.f32 %v1201, %v879
        %v1203 = vadd.f32 %v1202, %v881
        %v1204 = vadd.f32 %v1203, %v884
        %v1205 = vadd.f32 %v1204, %v886
        %v1206 = vadd.f32 %v1205, %v889
        %v1207 = vadd.f32 %v1206, %v891
        %v1208 = vadd.f32 %v1207, %v894
        %v1209 = vadd.f32 %v1208, %v896
        %v1210 = vadd.f32 %v1209, %v899
        %v1211 = vadd.f32 %v1210, %v901
        %v1212 = vadd.f32 %v1211, %v904
        %v1213 = vadd.f32 %v1212, %v906
        %v1214 = vadd.f32 %v1213, %v909
        %v1215 = vadd.f32 %v1214, %v911
        %v1216 = vadd.f32 %v1215, %v914
        %v1217 = vadd.f32 %v1216, %v916
        %v1218 = vadd.f32 %v1217, %v919
        %v1219 = vadd.f32 %v1218, %v921
        %v1220 = vadd.f32 %v1219, %v924
        %v1221 = vadd.f32 %v1220, %v926
        %v1222 = vadd.f32 %v1221, %v929
        %v1223 = vadd.f32 %v1222, %v931
        %v1224 = vadd.f32 %v1223, %v934
        %v1225 = vadd.f32 %v1224, %v936
        %v1226 = vadd.f32 %v1225, %v939
        %v1227 = vadd.f32 %v1226, %v941
        %v1228 = vadd.f32 %v1227, %v944
        %v1229 = vadd.f32 %v1228, %v946
        %v1230 = vadd.f32 %v1229, %v949
        %v1231 = vadd.f32 %v1230, %v951
        %v1232 = vadd.f32 %v1231, %v954
        %v1233 = vadd.f32 %v1232, %v956
        %v1234 = vadd.f32 %v1233, %v959
        %v1235 = vadd.f32 %v1234, %v961
        %v1236 = vadd.f32 %v1235, %v964
        %v1237 = vadd.f32 %v1236, %v966
        %v1238 = vadd.f32 %v1237, %v969
        %v1239 = vadd.f32 %v1238, %v971
        %v1240 = vrot.slane %v1239, 4
        %v1241 = vadd.f32 %v1239, %v1240
        %v1242 = vrot.slane %v1241, 2
        %v1243 = vadd.f32 %v1241, %v1242
        %v1244 = vrot.slane %v1243, 1
        %v1245 = vadd.f32 %v1243, %v1244
        %v1248 = vrot.slane %v1245, 7
        %vm1249 = vcmask 1040384
        %v1250 = vsel %vm1249, %v1176, %v1248
        %v1252 = vadd.f32 %v1107, %v1250
        %v1253 = vlaneseq
        %vm1254 = vcmp.ge.s32.totalorder %v1253, 0
        %vm1255 = vcmp.lt.s32.totalorder %v1253, 256
        %vm1256 = vmand %vm1254, %vm1255
        %1257 = vst.msk [vmem:[#allocation2] sm:$0x3] %vm1256, %v1252
        %v1258 = vld [vmem:[#allocation3] sm:$0x3]
        %v1259 = vmul.f32 %v645, %v645
        %v1260 = vmul.f32 %v814, %v814
        %v1261 = vmul.f32 %v647, %v647
        %v1262 = vmul.f32 %v816, %v816
        %v1263 = vmul.f32 %v650, %v650
        %v1264 = vmul.f32 %v819, %v819
        %v1265 = vmul.f32 %v652, %v652
        %v1266 = vmul.f32 %v821, %v821
        %v1267 = vmul.f32 %v655, %v655
        %v1268 = vmul.f32 %v824, %v824
        %v1269 = vmul.f32 %v657, %v657
        %v1270 = vmul.f32 %v826, %v826
        %v1271 = vmul.f32 %v660, %v660
        %v1272 = vmul.f32 %v829, %v829
        %v1273 = vmul.f32 %v662, %v662
        %v1274 = vmul.f32 %v831, %v831
        %v1275 = vmul.f32 %v665, %v665
        %v1276 = vmul.f32 %v834, %v834
        %v1277 = vmul.f32 %v667, %v667
        %v1278 = vmul.f32 %v836, %v836
        %v1279 = vmul.f32 %v670, %v670
        %v1280 = vmul.f32 %v839, %v839
        %v1281 = vmul.f32 %v672, %v672
        %v1282 = vmul.f32 %v841, %v841
        %v1283 = vmul.f32 %v675, %v675
        %v1284 = vmul.f32 %v844, %v844
        %v1285 = vmul.f32 %v677, %v677
        %v1286 = vmul.f32 %v846, %v846
        %v1287 = vmul.f32 %v680, %v680
        %v1288 = vmul.f32 %v849, %v849
        %v1289 = vmul.f32 %v682, %v682
        %v1290 = vmul.f32 %v851, %v851
        %v1291 = vmul.f32 %v685, %v685
        %v1292 = vmul.f32 %v854, %v854
        %v1293 = vmul.f32 %v687, %v687
        %v1294 = vmul.f32 %v856, %v856
        %v1295 = vmul.f32 %v690, %v690
        %v1296 = vmul.f32 %v859, %v859
        %v1297 = vmul.f32 %v692, %v692
        %v1298 = vmul.f32 %v861, %v861
        %v1299 = vmul.f32 %v695, %v695
        %v1300 = vmul.f32 %v864, %v864
        %v1301 = vmul.f32 %v697, %v697
        %v1302 = vmul.f32 %v866, %v866
        %v1303 = vmul.f32 %v700, %v700
        %v1304 = vmul.f32 %v869, %v869
        %v1305 = vmul.f32 %v702, %v702
        %v1306 = vmul.f32 %v871, %v871
        %v1307 = vmul.f32 %v705, %v705
        %v1308 = vmul.f32 %v874, %v874
        %v1309 = vmul.f32 %v707, %v707
        %v1310 = vmul.f32 %v876, %v876
        %v1311 = vmul.f32 %v710, %v710
        %v1312 = vmul.f32 %v879, %v879
        %v1313 = vmul.f32 %v712, %v712
        %v1314 = vmul.f32 %v881, %v881
        %v1315 = vmul.f32 %v715, %v715
        %v1316 = vmul.f32 %v884, %v884
        %v1317 = vmul.f32 %v717, %v717
        %v1318 = vmul.f32 %v886, %v886
        %v1319 = vmul.f32 %v720, %v720
        %v1320 = vmul.f32 %v889, %v889
        %v1321 = vmul.f32 %v722, %v722
        %v1322 = vmul.f32 %v891, %v891
        %v1323 = vmul.f32 %v725, %v725
        %v1324 = vmul.f32 %v894, %v894
        %v1325 = vmul.f32 %v727, %v727
        %v1326 = vmul.f32 %v896, %v896
        %v1327 = vmul.f32 %v730, %v730
        %v1328 = vmul.f32 %v899, %v899
        %v1329 = vmul.f32 %v732, %v732
        %v1330 = vmul.f32 %v901, %v901
        %v1331 = vmul.f32 %v735, %v735
        %v1332 = vmul.f32 %v904, %v904
        %v1333 = vmul.f32 %v737, %v737
        %v1334 = vmul.f32 %v906, %v906
        %v1335 = vmul.f32 %v740, %v740
        %v1336 = vmul.f32 %v909, %v909
        %v1337 = vmul.f32 %v742, %v742
        %v1338 = vmul.f32 %v911, %v911
        %v1339 = vmul.f32 %v745, %v745
        %v1340 = vmul.f32 %v914, %v914
        %v1341 = vmul.f32 %v747, %v747
        %v1342 = vmul.f32 %v916, %v916
        %v1343 = vmul.f32 %v750, %v750
        %v1344 = vmul.f32 %v919, %v919
        %v1345 = vmul.f32 %v752, %v752
        %v1346 = vmul.f32 %v921, %v921
        %v1347 = vmul.f32 %v755, %v755
        %v1348 = vmul.f32 %v924, %v924
        %v1349 = vmul.f32 %v757, %v757
        %v1350 = vmul.f32 %v926, %v926
        %v1351 = vmul.f32 %v760, %v760
        %v1352 = vmul.f32 %v929, %v929
        %v1353 = vmul.f32 %v762, %v762
        %v1354 = vmul.f32 %v931, %v931
        %v1355 = vmul.f32 %v765, %v765
        %v1356 = vmul.f32 %v934, %v934
        %v1357 = vmul.f32 %v767, %v767
        %v1358 = vmul.f32 %v936, %v936
        %v1359 = vmul.f32 %v770, %v770
        %v1360 = vmul.f32 %v939, %v939
        %v1361 = vmul.f32 %v772, %v772
        %v1362 = vmul.f32 %v941, %v941
        %v1363 = vmul.f32 %v775, %v775
        %v1364 = vmul.f32 %v944, %v944
        %v1365 = vmul.f32 %v777, %v777
        %v1366 = vmul.f32 %v946, %v946
        %v1367 = vmul.f32 %v780, %v780
        %v1368 = vmul.f32 %v949, %v949
        %v1369 = vmul.f32 %v782, %v782
        %v1370 = vmul.f32 %v951, %v951
        %v1371 = vmul.f32 %v785, %v785
        %v1372 = vmul.f32 %v954, %v954
        %v1373 = vmul.f32 %v787, %v787
        %v1374 = vmul.f32 %v956, %v956
        %v1375 = vmul.f32 %v790, %v790
        %v1376 = vmul.f32 %v959, %v959
        %v1377 = vmul.f32 %v792, %v792
        %v1378 = vmul.f32 %v961, %v961
        %v1379 = vmul.f32 %v795, %v795
        %v1380 = vmul.f32 %v964, %v964
        %v1381 = vmul.f32 %v797, %v797
        %v1382 = vmul.f32 %v966, %v966
        %v1383 = vmul.f32 %v800, %v800
        %v1384 = vmul.f32 %v969, %v969
        %v1385 = vmul.f32 %v802, %v802
        %v1386 = vmul.f32 %v971, %v971
        %v1387 = vadd.f32 %v1259, %v1261
        %v1388 = vadd.f32 %v1387, %v1263
        %v1389 = vadd.f32 %v1388, %v1265
        %v1390 = vadd.f32 %v1389, %v1267
        %v1391 = vadd.f32 %v1390, %v1269
        %v1392 = vadd.f32 %v1391, %v1271
        %v1393 = vadd.f32 %v1392, %v1273
        %v1394 = vadd.f32 %v1393, %v1275
        %v1395 = vadd.f32 %v1394, %v1277
        %v1396 = vadd.f32 %v1395, %v1279
        %v1397 = vadd.f32 %v1396, %v1281
        %v1398 = vadd.f32 %v1397, %v1283
        %v1399 = vadd.f32 %v1398, %v1285
        %v1400 = vadd.f32 %v1399, %v1287
        %v1401 = vadd.f32 %v1400, %v1289
        %v1402 = vadd.f32 %v1401, %v1291
        %v1403 = vadd.f32 %v1402, %v1293
        %v1404 = vadd.f32 %v1403, %v1295
        %v1405 = vadd.f32 %v1404, %v1297
        %v1406 = vadd.f32 %v1405, %v1299
        %v1407 = vadd.f32 %v1406, %v1301
        %v1408 = vadd.f32 %v1407, %v1303
        %v1409 = vadd.f32 %v1408, %v1305
        %v1410 = vadd.f32 %v1409, %v1307
        %v1411 = vadd.f32 %v1410, %v1309
        %v1412 = vadd.f32 %v1411, %v1311
        %v1413 = vadd.f32 %v1412, %v1313
        %v1414 = vadd.f32 %v1413, %v1315
        %v1415 = vadd.f32 %v1414, %v1317
        %v1416 = vadd.f32 %v1415, %v1319
        %v1417 = vadd.f32 %v1416, %v1321
        %v1418 = vadd.f32 %v1417, %v1323
        %v1419 = vadd.f32 %v1418, %v1325
        %v1420 = vadd.f32 %v1419, %v1327
        %v1421 = vadd.f32 %v1420, %v1329
        %v1422 = vadd.f32 %v1421, %v1331
        %v1423 = vadd.f32 %v1422, %v1333
        %v1424 = vadd.f32 %v1423, %v1335
        %v1425 = vadd.f32 %v1424, %v1337
        %v1426 = vadd.f32 %v1425, %v1339
        %v1427 = vadd.f32 %v1426, %v1341
        %v1428 = vadd.f32 %v1427, %v1343
        %v1429 = vadd.f32 %v1428, %v1345
        %v1430 = vadd.f32 %v1429, %v1347
        %v1431 = vadd.f32 %v1430, %v1349
        %v1432 = vadd.f32 %v1431, %v1351
        %v1433 = vadd.f32 %v1432, %v1353
        %v1434 = vadd.f32 %v1433, %v1355
        %v1435 = vadd.f32 %v1434, %v1357
        %v1436 = vadd.f32 %v1435, %v1359
        %v1437 = vadd.f32 %v1436, %v1361
        %v1438 = vadd.f32 %v1437, %v1363
        %v1439 = vadd.f32 %v1438, %v1365
        %v1440 = vadd.f32 %v1439, %v1367
        %v1441 = vadd.f32 %v1440, %v1369
        %v1442 = vadd.f32 %v1441, %v1371
        %v1443 = vadd.f32 %v1442, %v1373
        %v1444 = vadd.f32 %v1443, %v1375
        %v1445 = vadd.f32 %v1444, %v1377
        %v1446 = vadd.f32 %v1445, %v1379
        %v1447 = vadd.f32 %v1446, %v1381
        %v1448 = vadd.f32 %v1447, %v1383
        %v1449 = vadd.f32 %v1448, %v1385
        %v1450 = vrot.slane %v1449, 4
        %v1451 = vadd.f32 %v1449, %v1450
        %v1452 = vrot.slane %v1451, 2
        %v1453 = vadd.f32 %v1451, %v1452
        %v1454 = vrot.slane %v1453, 1
        %v1455 = vadd.f32 %v1453, %v1454
        %v1456 = vadd.f32 %v1260, %v1262
        %v1457 = vadd.f32 %v1456, %v1264
        %v1458 = vadd.f32 %v1457, %v1266
        %v1459 = vadd.f32 %v1458, %v1268
        %v1460 = vadd.f32 %v1459, %v1270
        %v1461 = vadd.f32 %v1460, %v1272
        %v1462 = vadd.f32 %v1461, %v1274
        %v1463 = vadd.f32 %v1462, %v1276
        %v1464 = vadd.f32 %v1463, %v1278
        %v1465 = vadd.f32 %v1464, %v1280
        %v1466 = vadd.f32 %v1465, %v1282
        %v1467 = vadd.f32 %v1466, %v1284
        %v1468 = vadd.f32 %v1467, %v1286
        %v1469 = vadd.f32 %v1468, %v1288
        %v1470 = vadd.f32 %v1469, %v1290
        %v1471 = vadd.f32 %v1470, %v1292
        %v1472 = vadd.f32 %v1471, %v1294
        %v1473 = vadd.f32 %v1472, %v1296
        %v1474 = vadd.f32 %v1473, %v1298
        %v1475 = vadd.f32 %v1474, %v1300
        %v1476 = vadd.f32 %v1475, %v1302
        %v1477 = vadd.f32 %v1476, %v1304
        %v1478 = vadd.f32 %v1477, %v1306
        %v1479 = vadd.f32 %v1478, %v1308
        %v1480 = vadd.f32 %v1479, %v1310
        %v1481 = vadd.f32 %v1480, %v1312
        %v1482 = vadd.f32 %v1481, %v1314
        %v1483 = vadd.f32 %v1482, %v1316
        %v1484 = vadd.f32 %v1483, %v1318
        %v1485 = vadd.f32 %v1484, %v1320
        %v1486 = vadd.f32 %v1485, %v1322
        %v1487 = vadd.f32 %v1486, %v1324
        %v1488 = vadd.f32 %v1487, %v1326
        %v1489 = vadd.f32 %v1488, %v1328
        %v1490 = vadd.f32 %v1489, %v1330
        %v1491 = vadd.f32 %v1490, %v1332
        %v1492 = vadd.f32 %v1491, %v1334
        %v1493 = vadd.f32 %v1492, %v1336
        %v1494 = vadd.f32 %v1493, %v1338
        %v1495 = vadd.f32 %v1494, %v1340
        %v1496 = vadd.f32 %v1495, %v1342
        %v1497 = vadd.f32 %v1496, %v1344
        %v1498 = vadd.f32 %v1497, %v1346
        %v1499 = vadd.f32 %v1498, %v1348
        %v1500 = vadd.f32 %v1499, %v1350
        %v1501 = vadd.f32 %v1500, %v1352
        %v1502 = vadd.f32 %v1501, %v1354
        %v1503 = vadd.f32 %v1502, %v1356
        %v1504 = vadd.f32 %v1503, %v1358
        %v1505 = vadd.f32 %v1504, %v1360
        %v1506 = vadd.f32 %v1505, %v1362
        %v1507 = vadd.f32 %v1506, %v1364
        %v1508 = vadd.f32 %v1507, %v1366
        %v1509 = vadd.f32 %v1508, %v1368
        %v1510 = vadd.f32 %v1509, %v1370
        %v1511 = vadd.f32 %v1510, %v1372
        %v1512 = vadd.f32 %v1511, %v1374
        %v1513 = vadd.f32 %v1512, %v1376
        %v1514 = vadd.f32 %v1513, %v1378
        %v1515 = vadd.f32 %v1514, %v1380
        %v1516 = vadd.f32 %v1515, %v1382
        %v1517 = vadd.f32 %v1516, %v1384
        %v1518 = vadd.f32 %v1517, %v1386
        %v1519 = vrot.slane %v1518, 4
        %v1520 = vadd.f32 %v1518, %v1519
        %v1521 = vrot.slane %v1520, 2
        %v1522 = vadd.f32 %v1520, %v1521
        %v1523 = vrot.slane %v1522, 1
        %v1524 = vadd.f32 %v1522, %v1523
        %v1527 = vrot.slane %v1524, 7
        %v1528 = vsel %vm1249, %v1455, %v1527
        %v1530 = vadd.f32 %v1258, %v1528
        %1531 = vst.msk [vmem:[#allocation3] sm:$0x3] %vm1256, %v1530
      $region48: #{residual_forward.2} parent=39 // pred_fallthru
        _
      %p1532 = scmp.eq.s32.totalorder %s20, 1
      // Predicated region
      $region49: #{residual_forward.2} parent=39 // pred_check
        %p1533 = pneg %p1532
      $region50: #{residual_forward.2} parent=39 // pred_check_branch
        %1535 = sbr.rel (%p1533) target = $region52
      $region51: #{residual_forward.2} parent=39 // pred_region
        %s1536 = smul.u32 %s21, 512
        %s1537 = sshra.s32 %s1536, 3
        %s1538 = sand.u32 %s1536, 7
        %s1539 = smul.u32 %s1537, 2
        %s1540 = smul.addr %s1539, 4
        %s1541 = scalar_lea.vmem [#allocation4], %s1540
        %v1542 = vld [vmem:[%s1541] sm:$0xff]
        %v1543 = vld [vmem:[%s1541 + $0x8] sm:$0xff]
        %v1544 = vld [vmem:[%s1541 + $0x10] sm:$0xff]
        %v1545 = vld [vmem:[%s1541 + $0x18] sm:$0xff]
        %v1546 = vld [vmem:[%s1541 + $0x20] sm:$0xff]
        %v1547 = vld [vmem:[%s1541 + $0x28] sm:$0xff]
        %v1548 = vld [vmem:[%s1541 + $0x30] sm:$0xff]
        %v1549 = vld [vmem:[%s1541 + $0x38] sm:$0xff]
        %v1550 = vld [vmem:[%s1541 + $0x40] sm:$0xff]
        %v1551 = vld [vmem:[%s1541 + $0x48] sm:$0xff]
        %v1552 = vld [vmem:[%s1541 + $0x50] sm:$0xff]
        %v1553 = vld [vmem:[%s1541 + $0x58] sm:$0xff]
        %v1554 = vld [vmem:[%s1541 + $0x60] sm:$0xff]
        %v1555 = vld [vmem:[%s1541 + $0x68] sm:$0xff]
        %v1556 = vld [vmem:[%s1541 + $0x70] sm:$0xff]
        %v1557 = vld [vmem:[%s1541 + $0x78] sm:$0xff]
        %v1558 = vld [vmem:[%s1541 + $0x80] sm:$0xff]
        %v1559 = vld [vmem:[%s1541 + $0x88] sm:$0xff]
        %v1560 = vld [vmem:[%s1541 + $0x90] sm:$0xff]
        %v1561 = vld [vmem:[%s1541 + $0x98] sm:$0xff]
        %v1562 = vld [vmem:[%s1541 + $0xa0] sm:$0xff]
        %v1563 = vld [vmem:[%s1541 + $0xa8] sm:$0xff]
        %v1564 = vld [vmem:[%s1541 + $0xb0] sm:$0xff]
        %v1565 = vld [vmem:[%s1541 + $0xb8] sm:$0xff]
        %v1566 = vld [vmem:[%s1541 + $0xc0] sm:$0xff]
        %v1567 = vld [vmem:[%s1541 + $0xc8] sm:$0xff]
        %v1568 = vld [vmem:[%s1541 + $0xd0] sm:$0xff]
        %v1569 = vld [vmem:[%s1541 + $0xd8] sm:$0xff]
        %v1570 = vld [vmem:[%s1541 + $0xe0] sm:$0xff]
        %v1571 = vld [vmem:[%s1541 + $0xe8] sm:$0xff]
        %v1572 = vld [vmem:[%s1541 + $0xf0] sm:$0xff]
        %v1573 = vld [vmem:[%s1541 + $0xf8] sm:$0xff]
        %v1574 = vld [vmem:[%s1541 + $0x100] sm:$0xff]
        %v1575 = vld [vmem:[%s1541 + $0x108] sm:$0xff]
        %v1576 = vld [vmem:[%s1541 + $0x110] sm:$0xff]
        %v1577 = vld [vmem:[%s1541 + $0x118] sm:$0xff]
        %v1578 = vld [vmem:[%s1541 + $0x120] sm:$0xff]
        %v1579 = vld [vmem:[%s1541 + $0x128] sm:$0xff]
        %v1580 = vld [vmem:[%s1541 + $0x130] sm:$0xff]
        %v1581 = vld [vmem:[%s1541 + $0x138] sm:$0xff]
        %v1582 = vld [vmem:[%s1541 + $0x140] sm:$0xff]
        %v1583 = vld [vmem:[%s1541 + $0x148] sm:$0xff]
        %v1584 = vld [vmem:[%s1541 + $0x150] sm:$0xff]
        %v1585 = vld [vmem:[%s1541 + $0x158] sm:$0xff]
        %v1586 = vld [vmem:[%s1541 + $0x160] sm:$0xff]
        %v1587 = vld [vmem:[%s1541 + $0x168] sm:$0xff]
        %v1588 = vld [vmem:[%s1541 + $0x170] sm:$0xff]
        %v1589 = vld [vmem:[%s1541 + $0x178] sm:$0xff]
        %v1590 = vld [vmem:[%s1541 + $0x180] sm:$0xff]
        %v1591 = vld [vmem:[%s1541 + $0x188] sm:$0xff]
        %v1592 = vld [vmem:[%s1541 + $0x190] sm:$0xff]
        %v1593 = vld [vmem:[%s1541 + $0x198] sm:$0xff]
        %v1594 = vld [vmem:[%s1541 + $0x1a0] sm:$0xff]
        %v1595 = vld [vmem:[%s1541 + $0x1a8] sm:$0xff]
        %v1596 = vld [vmem:[%s1541 + $0x1b0] sm:$0xff]
        %v1597 = vld [vmem:[%s1541 + $0x1b8] sm:$0xff]
        %v1598 = vld [vmem:[%s1541 + $0x1c0] sm:$0xff]
        %v1599 = vld [vmem:[%s1541 + $0x1c8] sm:$0xff]
        %v1600 = vld [vmem:[%s1541 + $0x1d0] sm:$0xff]
        %v1601 = vld [vmem:[%s1541 + $0x1d8] sm:$0xff]
        %v1602 = vld [vmem:[%s1541 + $0x1e0] sm:$0xff]
        %v1603 = vld [vmem:[%s1541 + $0x1e8] sm:$0xff]
        %v1604 = vld [vmem:[%s1541 + $0x1f0] sm:$0xff]
        %v1605 = vld [vmem:[%s1541 + $0x1f8] sm:$0xff]
        %v1606 = vunpack.c.l.bf16 %v1542
        %v1607 = vunpack.c.h.bf16 %v1542
        %v1608 = vunpack.c.l.bf16 %v1543
        %v1609 = vunpack.c.h.bf16 %v1543
        %v1610 = vunpack.c.l.bf16 %v1544
        %v1611 = vunpack.c.h.bf16 %v1544
        %v1612 = vunpack.c.l.bf16 %v1545
        %v1613 = vunpack.c.h.bf16 %v1545
        %v1614 = vunpack.c.l.bf16 %v1546
        %v1615 = vunpack.c.h.bf16 %v1546
        %v1616 = vunpack.c.l.bf16 %v1547
        %v1617 = vunpack.c.h.bf16 %v1547
        %v1618 = vunpack.c.l.bf16 %v1548
        %v1619 = vunpack.c.h.bf16 %v1548
        %v1620 = vunpack.c.l.bf16 %v1549
        %v1621 = vunpack.c.h.bf16 %v1549
        %v1622 = vunpack.c.l.bf16 %v1550
        %v1623 = vunpack.c.h.bf16 %v1550
        %v1624 = vunpack.c.l.bf16 %v1551
        %v1625 = vunpack.c.h.bf16 %v1551
        %v1626 = vunpack.c.l.bf16 %v1552
        %v1627 = vunpack.c.h.bf16 %v1552
        %v1628 = vunpack.c.l.bf16 %v1553
        %v1629 = vunpack.c.h.bf16 %v1553
        %v1630 = vunpack.c.l.bf16 %v1554
        %v1631 = vunpack.c.h.bf16 %v1554
        %v1632 = vunpack.c.l.bf16 %v1555
        %v1633 = vunpack.c.h.bf16 %v1555
        %v1634 = vunpack.c.l.bf16 %v1556
        %v1635 = vunpack.c.h.bf16 %v1556
        %v1636 = vunpack.c.l.bf16 %v1557
        %v1637 = vunpack.c.h.bf16 %v1557
        %v1638 = vunpack.c.l.bf16 %v1558
        %v1639 = vunpack.c.h.bf16 %v1558
        %v1640 = vunpack.c.l.bf16 %v1559
        %v1641 = vunpack.c.h.bf16 %v1559
        %v1642 = vunpack.c.l.bf16 %v1560
        %v1643 = vunpack.c.h.bf16 %v1560
        %v1644 = vunpack.c.l.bf16 %v1561
        %v1645 = vunpack.c.h.bf16 %v1561
        %v1646 = vunpack.c.l.bf16 %v1562
        %v1647 = vunpack.c.h.bf16 %v1562
        %v1648 = vunpack.c.l.bf16 %v1563
        %v1649 = vunpack.c.h.bf16 %v1563
        %v1650 = vunpack.c.l.bf16 %v1564
        %v1651 = vunpack.c.h.bf16 %v1564
        %v1652 = vunpack.c.l.bf16 %v1565
        %v1653 = vunpack.c.h.bf16 %v1565
        %v1654 = vunpack.c.l.bf16 %v1566
        %v1655 = vunpack.c.h.bf16 %v1566
        %v1656 = vunpack.c.l.bf16 %v1567
        %v1657 = vunpack.c.h.bf16 %v1567
        %v1658 = vunpack.c.l.bf16 %v1568
        %v1659 = vunpack.c.h.bf16 %v1568
        %v1660 = vunpack.c.l.bf16 %v1569
        %v1661 = vunpack.c.h.bf16 %v1569
        %v1662 = vunpack.c.l.bf16 %v1570
        %v1663 = vunpack.c.h.bf16 %v1570
        %v1664 = vunpack.c.l.bf16 %v1571
        %v1665 = vunpack.c.h.bf16 %v1571
        %v1666 = vunpack.c.l.bf16 %v1572
        %v1667 = vunpack.c.h.bf16 %v1572
        %v1668 = vunpack.c.l.bf16 %v1573
        %v1669 = vunpack.c.h.bf16 %v1573
        %v1670 = vunpack.c.l.bf16 %v1574
        %v1671 = vunpack.c.h.bf16 %v1574
        %v1672 = vunpack.c.l.bf16 %v1575
        %v1673 = vunpack.c.h.bf16 %v1575
        %v1674 = vunpack.c.l.bf16 %v1576
        %v1675 = vunpack.c.h.bf16 %v1576
        %v1676 = vunpack.c.l.bf16 %v1577
        %v1677 = vunpack.c.h.bf16 %v1577
        %v1678 = vunpack.c.l.bf16 %v1578
        %v1679 = vunpack.c.h.bf16 %v1578
        %v1680 = vunpack.c.l.bf16 %v1579
        %v1681 = vunpack.c.h.bf16 %v1579
        %v1682 = vunpack.c.l.bf16 %v1580
        %v1683 = vunpack.c.h.bf16 %v1580
        %v1684 = vunpack.c.l.bf16 %v1581
        %v1685 = vunpack.c.h.bf16 %v1581
        %v1686 = vunpack.c.l.bf16 %v1582
        %v1687 = vunpack.c.h.bf16 %v1582
        %v1688 = vunpack.c.l.bf16 %v1583
        %v1689 = vunpack.c.h.bf16 %v1583
        %v1690 = vunpack.c.l.bf16 %v1584
        %v1691 = vunpack.c.h.bf16 %v1584
        %v1692 = vunpack.c.l.bf16 %v1585
        %v1693 = vunpack.c.h.bf16 %v1585
        %v1694 = vunpack.c.l.bf16 %v1586
        %v1695 = vunpack.c.h.bf16 %v1586
        %v1696 = vunpack.c.l.bf16 %v1587
        %v1697 = vunpack.c.h.bf16 %v1587
        %v1698 = vunpack.c.l.bf16 %v1588
        %v1699 = vunpack.c.h.bf16 %v1588
        %v1700 = vunpack.c.l.bf16 %v1589
        %v1701 = vunpack.c.h.bf16 %v1589
        %v1702 = vunpack.c.l.bf16 %v1590
        %v1703 = vunpack.c.h.bf16 %v1590
        %v1704 = vunpack.c.l.bf16 %v1591
        %v1705 = vunpack.c.h.bf16 %v1591
        %v1706 = vunpack.c.l.bf16 %v1592
        %v1707 = vunpack.c.h.bf16 %v1592
        %v1708 = vunpack.c.l.bf16 %v1593
        %v1709 = vunpack.c.h.bf16 %v1593
        %v1710 = vunpack.c.l.bf16 %v1594
        %v1711 = vunpack.c.h.bf16 %v1594
        %v1712 = vunpack.c.l.bf16 %v1595
        %v1713 = vunpack.c.h.bf16 %v1595
        %v1714 = vunpack.c.l.bf16 %v1596
        %v1715 = vunpack.c.h.bf16 %v1596
        %v1716 = vunpack.c.l.bf16 %v1597
        %v1717 = vunpack.c.h.bf16 %v1597
        %v1718 = vunpack.c.l.bf16 %v1598
        %v1719 = vunpack.c.h.bf16 %v1598
        %v1720 = vunpack.c.l.bf16 %v1599
        %v1721 = vunpack.c.h.bf16 %v1599
        %v1722 = vunpack.c.l.bf16 %v1600
        %v1723 = vunpack.c.h.bf16 %v1600
        %v1724 = vunpack.c.l.bf16 %v1601
        %v1725 = vunpack.c.h.bf16 %v1601
        %v1726 = vunpack.c.l.bf16 %v1602
        %v1727 = vunpack.c.h.bf16 %v1602
        %v1728 = vunpack.c.l.bf16 %v1603
        %v1729 = vunpack.c.h.bf16 %v1603
        %v1730 = vunpack.c.l.bf16 %v1604
        %v1731 = vunpack.c.h.bf16 %v1604
        %v1732 = vunpack.c.l.bf16 %v1605
        %v1733 = vunpack.c.h.bf16 %v1605
        %v1734 = vld [vmem:[#allocation2] sm:$0x3]
        %v1735 = vmul.f32 %v1734, 0.001953125
        %v1736 = vld [vmem:[#allocation3] sm:$0x3]
        %v1737 = vmul.f32 %v1736, 0.001953125
        %v1738 = vmul.f32 %v1735, %v1735
        %v1739 = vsub.f32 %v1737, %v1738
        %v1740 = vmax.f32 %v1739, 0.0
        %v1741 = vld [vmem:[%s2] sm:$0x3]
        %v1742 = vadd.f32 %v1740, 1e-05
        %v1743 = vrsqrt.pop %v1742
        %v1744 = vmul.f32 %v1743, %v1742
        %v1745 = vmul.f32 %v1744, %v1743
        %v1746 = vmul.f32 0.5, %v1745
        %v1747 = vsub.f32 1.5, %v1746
        %v1748 = vmul.f32 %v1743, %v1747
        %vm1749 = vweird.f32 %v1742
        %vm1750 = vweird.f32 %v1743
        %vm1751 = vmor %vm1749, %vm1750
        %v1752 = vsel %vm1751, %v1743, %v1748
        %v1753 = vmul.f32 %v1741, %v1752
        %v1754 = vld [vmem:[%s3] sm:$0x3]
        %v1755 = vmul.f32 %v1735, %v1753
        %v1756 = vsub.f32 %v1754, %v1755
        %v1758 = vperm.slane %v1753, 0
        %v1759 = vperm.slane %v1753, 1
        %v1762 = vmul.f32 %v1606, %v1758
        %v1763 = vmul.f32 %v1607, %v1759
        %v1764 = vmul.f32 %v1608, %v1758
        %v1765 = vmul.f32 %v1609, %v1759
        %v1766 = vmul.f32 %v1610, %v1758
        %v1767 = vmul.f32 %v1611, %v1759
        %v1768 = vmul.f32 %v1612, %v1758
        %v1769 = vmul.f32 %v1613, %v1759
        %v1770 = vmul.f32 %v1614, %v1758
        %v1771 = vmul.f32 %v1615, %v1759
        %v1772 = vmul.f32 %v1616, %v1758
        %v1773 = vmul.f32 %v1617, %v1759
        %v1774 = vmul.f32 %v1618, %v1758
        %v1775 = vmul.f32 %v1619, %v1759
        %v1776 = vmul.f32 %v1620, %v1758
        %v1777 = vmul.f32 %v1621, %v1759
        %v1778 = vmul.f32 %v1622, %v1758
        %v1779 = vmul.f32 %v1623, %v1759
        %v1780 = vmul.f32 %v1624, %v1758
        %v1781 = vmul.f32 %v1625, %v1759
        %v1782 = vmul.f32 %v1626, %v1758
        %v1783 = vmul.f32 %v1627, %v1759
        %v1784 = vmul.f32 %v1628, %v1758
        %v1785 = vmul.f32 %v1629, %v1759
        %v1786 = vmul.f32 %v1630, %v1758
        %v1787 = vmul.f32 %v1631, %v1759
        %v1788 = vmul.f32 %v1632, %v1758
        %v1789 = vmul.f32 %v1633, %v1759
        %v1790 = vmul.f32 %v1634, %v1758
        %v1791 = vmul.f32 %v1635, %v1759
        %v1792 = vmul.f32 %v1636, %v1758
        %v1793 = vmul.f32 %v1637, %v1759
        %v1794 = vmul.f32 %v1638, %v1758
        %v1795 = vmul.f32 %v1639, %v1759
        %v1796 = vmul.f32 %v1640, %v1758
        %v1797 = vmul.f32 %v1641, %v1759
        %v1798 = vmul.f32 %v1642, %v1758
        %v1799 = vmul.f32 %v1643, %v1759
        %v1800 = vmul.f32 %v1644, %v1758
        %v1801 = vmul.f32 %v1645, %v1759
        %v1802 = vmul.f32 %v1646, %v1758
        %v1803 = vmul.f32 %v1647, %v1759
        %v1804 = vmul.f32 %v1648, %v1758
        %v1805 = vmul.f32 %v1649, %v1759
        %v1806 = vmul.f32 %v1650, %v1758
        %v1807 = vmul.f32 %v1651, %v1759
        %v1808 = vmul.f32 %v1652, %v1758
        %v1809 = vmul.f32 %v1653, %v1759
        %v1810 = vmul.f32 %v1654, %v1758
        %v1811 = vmul.f32 %v1655, %v1759
        %v1812 = vmul.f32 %v1656, %v1758
        %v1813 = vmul.f32 %v1657, %v1759
        %v1814 = vmul.f32 %v1658, %v1758
        %v1815 = vmul.f32 %v1659, %v1759
        %v1816 = vmul.f32 %v1660, %v1758
        %v1817 = vmul.f32 %v1661, %v1759
        %v1818 = vmul.f32 %v1662, %v1758
        %v1819 = vmul.f32 %v1663, %v1759
        %v1820 = vmul.f32 %v1664, %v1758
        %v1821 = vmul.f32 %v1665, %v1759
        %v1822 = vmul.f32 %v1666, %v1758
        %v1823 = vmul.f32 %v1667, %v1759
        %v1824 = vmul.f32 %v1668, %v1758
        %v1825 = vmul.f32 %v1669, %v1759
        %v1826 = vmul.f32 %v1670, %v1758
        %v1827 = vmul.f32 %v1671, %v1759
        %v1828 = vmul.f32 %v1672, %v1758
        %v1829 = vmul.f32 %v1673, %v1759
        %v1830 = vmul.f32 %v1674, %v1758
        %v1831 = vmul.f32 %v1675, %v1759
        %v1832 = vmul.f32 %v1676, %v1758
        %v1833 = vmul.f32 %v1677, %v1759
        %v1834 = vmul.f32 %v1678, %v1758
        %v1835 = vmul.f32 %v1679, %v1759
        %v1836 = vmul.f32 %v1680, %v1758
        %v1837 = vmul.f32 %v1681, %v1759
        %v1838 = vmul.f32 %v1682, %v1758
        %v1839 = vmul.f32 %v1683, %v1759
        %v1840 = vmul.f32 %v1684, %v1758
        %v1841 = vmul.f32 %v1685, %v1759
        %v1842 = vmul.f32 %v1686, %v1758
        %v1843 = vmul.f32 %v1687, %v1759
        %v1844 = vmul.f32 %v1688, %v1758
        %v1845 = vmul.f32 %v1689, %v1759
        %v1846 = vmul.f32 %v1690, %v1758
        %v1847 = vmul.f32 %v1691, %v1759
        %v1848 = vmul.f32 %v1692, %v1758
        %v1849 = vmul.f32 %v1693, %v1759
        %v1850 = vmul.f32 %v1694, %v1758
        %v1851 = vmul.f32 %v1695, %v1759
        %v1852 = vmul.f32 %v1696, %v1758
        %v1853 = vmul.f32 %v1697, %v1759
        %v1854 = vmul.f32 %v1698, %v1758
        %v1855 = vmul.f32 %v1699, %v1759
        %v1856 = vmul.f32 %v1700, %v1758
        %v1857 = vmul.f32 %v1701, %v1759
        %v1858 = vmul.f32 %v1702, %v1758
        %v1859 = vmul.f32 %v1703, %v1759
        %v1860 = vmul.f32 %v1704, %v1758
        %v1861 = vmul.f32 %v1705, %v1759
        %v1862 = vmul.f32 %v1706, %v1758
        %v1863 = vmul.f32 %v1707, %v1759
        %v1864 = vmul.f32 %v1708, %v1758
        %v1865 = vmul.f32 %v1709, %v1759
        %v1866 = vmul.f32 %v1710, %v1758
        %v1867 = vmul.f32 %v1711, %v1759
        %v1868 = vmul.f32 %v1712, %v1758
        %v1869 = vmul.f32 %v1713, %v1759
        %v1870 = vmul.f32 %v1714, %v1758
        %v1871 = vmul.f32 %v1715, %v1759
        %v1872 = vmul.f32 %v1716, %v1758
        %v1873 = vmul.f32 %v1717, %v1759
        %v1874 = vmul.f32 %v1718, %v1758
        %v1875 = vmul.f32 %v1719, %v1759
        %v1876 = vmul.f32 %v1720, %v1758
        %v1877 = vmul.f32 %v1721, %v1759
        %v1878 = vmul.f32 %v1722, %v1758
        %v1879 = vmul.f32 %v1723, %v1759
        %v1880 = vmul.f32 %v1724, %v1758
        %v1881 = vmul.f32 %v1725, %v1759
        %v1882 = vmul.f32 %v1726, %v1758
        %v1883 = vmul.f32 %v1727, %v1759
        %v1884 = vmul.f32 %v1728, %v1758
        %v1885 = vmul.f32 %v1729, %v1759
        %v1886 = vmul.f32 %v1730, %v1758
        %v1887 = vmul.f32 %v1731, %v1759
        %v1888 = vmul.f32 %v1732, %v1758
        %v1889 = vmul.f32 %v1733, %v1759
        %v1891 = vperm.slane %v1756, 0
        %v1892 = vperm.slane %v1756, 1
        %v1895 = vadd.f32 %v1762, %v1891
        %v1896 = vadd.f32 %v1763, %v1892
        %v1897 = vadd.f32 %v1764, %v1891
        %v1898 = vadd.f32 %v1765, %v1892
        %v1899 = vadd.f32 %v1766, %v1891
        %v1900 = vadd.f32 %v1767, %v1892
        %v1901 = vadd.f32 %v1768, %v1891
        %v1902 = vadd.f32 %v1769, %v1892
        %v1903 = vadd.f32 %v1770, %v1891
        %v1904 = vadd.f32 %v1771, %v1892
        %v1905 = vadd.f32 %v1772, %v1891
        %v1906 = vadd.f32 %v1773, %v1892
        %v1907 = vadd.f32 %v1774, %v1891
        %v1908 = vadd.f32 %v1775, %v1892
        %v1909 = vadd.f32 %v1776, %v1891
        %v1910 = vadd.f32 %v1777, %v1892
        %v1911 = vadd.f32 %v1778, %v1891
        %v1912 = vadd.f32 %v1779, %v1892
        %v1913 = vadd.f32 %v1780, %v1891
        %v1914 = vadd.f32 %v1781, %v1892
        %v1915 = vadd.f32 %v1782, %v1891
        %v1916 = vadd.f32 %v1783, %v1892
        %v1917 = vadd.f32 %v1784, %v1891
        %v1918 = vadd.f32 %v1785, %v1892
        %v1919 = vadd.f32 %v1786, %v1891
        %v1920 = vadd.f32 %v1787, %v1892
        %v1921 = vadd.f32 %v1788, %v1891
        %v1922 = vadd.f32 %v1789, %v1892
        %v1923 = vadd.f32 %v1790, %v1891
        %v1924 = vadd.f32 %v1791, %v1892
        %v1925 = vadd.f32 %v1792, %v1891
        %v1926 = vadd.f32 %v1793, %v1892
        %v1927 = vadd.f32 %v1794, %v1891
        %v1928 = vadd.f32 %v1795, %v1892
        %v1929 = vadd.f32 %v1796, %v1891
        %v1930 = vadd.f32 %v1797, %v1892
        %v1931 = vadd.f32 %v1798, %v1891
        %v1932 = vadd.f32 %v1799, %v1892
        %v1933 = vadd.f32 %v1800, %v1891
        %v1934 = vadd.f32 %v1801, %v1892
        %v1935 = vadd.f32 %v1802, %v1891
        %v1936 = vadd.f32 %v1803, %v1892
        %v1937 = vadd.f32 %v1804, %v1891
        %v1938 = vadd.f32 %v1805, %v1892
        %v1939 = vadd.f32 %v1806, %v1891
        %v1940 = vadd.f32 %v1807, %v1892
        %v1941 = vadd.f32 %v1808, %v1891
        %v1942 = vadd.f32 %v1809, %v1892
        %v1943 = vadd.f32 %v1810, %v1891
        %v1944 = vadd.f32 %v1811, %v1892
        %v1945 = vadd.f32 %v1812, %v1891
        %v1946 = vadd.f32 %v1813, %v1892
        %v1947 = vadd.f32 %v1814, %v1891
        %v1948 = vadd.f32 %v1815, %v1892
        %v1949 = vadd.f32 %v1816, %v1891
        %v1950 = vadd.f32 %v1817, %v1892
        %v1951 = vadd.f32 %v1818, %v1891
        %v1952 = vadd.f32 %v1819, %v1892
        %v1953 = vadd.f32 %v1820, %v1891
        %v1954 = vadd.f32 %v1821, %v1892
        %v1955 = vadd.f32 %v1822, %v1891
        %v1956 = vadd.f32 %v1823, %v1892
        %v1957 = vadd.f32 %v1824, %v1891
        %v1958 = vadd.f32 %v1825, %v1892
        %v1959 = vadd.f32 %v1826, %v1891
        %v1960 = vadd.f32 %v1827, %v1892
        %v1961 = vadd.f32 %v1828, %v1891
        %v1962 = vadd.f32 %v1829, %v1892
        %v1963 = vadd.f32 %v1830, %v1891
        %v1964 = vadd.f32 %v1831, %v1892
        %v1965 = vadd.f32 %v1832, %v1891
        %v1966 = vadd.f32 %v1833, %v1892
        %v1967 = vadd.f32 %v1834, %v1891
        %v1968 = vadd.f32 %v1835, %v1892
        %v1969 = vadd.f32 %v1836, %v1891
        %v1970 = vadd.f32 %v1837, %v1892
        %v1971 = vadd.f32 %v1838, %v1891
        %v1972 = vadd.f32 %v1839, %v1892
        %v1973 = vadd.f32 %v1840, %v1891
        %v1974 = vadd.f32 %v1841, %v1892
        %v1975 = vadd.f32 %v1842, %v1891
        %v1976 = vadd.f32 %v1843, %v1892
        %v1977 = vadd.f32 %v1844, %v1891
        %v1978 = vadd.f32 %v1845, %v1892
        %v1979 = vadd.f32 %v1846, %v1891
        %v1980 = vadd.f32 %v1847, %v1892
        %v1981 = vadd.f32 %v1848, %v1891
        %v1982 = vadd.f32 %v1849, %v1892
        %v1983 = vadd.f32 %v1850, %v1891
        %v1984 = vadd.f32 %v1851, %v1892
        %v1985 = vadd.f32 %v1852, %v1891
        %v1986 = vadd.f32 %v1853, %v1892
        %v1987 = vadd.f32 %v1854, %v1891
        %v1988 = vadd.f32 %v1855, %v1892
        %v1989 = vadd.f32 %v1856, %v1891
        %v1990 = vadd.f32 %v1857, %v1892
        %v1991 = vadd.f32 %v1858, %v1891
        %v1992 = vadd.f32 %v1859, %v1892
        %v1993 = vadd.f32 %v1860, %v1891
        %v1994 = vadd.f32 %v1861, %v1892
        %v1995 = vadd.f32 %v1862, %v1891
        %v1996 = vadd.f32 %v1863, %v1892
        %v1997 = vadd.f32 %v1864, %v1891
        %v1998 = vadd.f32 %v1865, %v1892
        %v1999 = vadd.f32 %v1866, %v1891
        %v2000 = vadd.f32 %v1867, %v1892
        %v2001 = vadd.f32 %v1868, %v1891
        %v2002 = vadd.f32 %v1869, %v1892
        %v2003 = vadd.f32 %v1870, %v1891
        %v2004 = vadd.f32 %v1871, %v1892
        %v2005 = vadd.f32 %v1872, %v1891
        %v2006 = vadd.f32 %v1873, %v1892
        %v2007 = vadd.f32 %v1874, %v1891
        %v2008 = vadd.f32 %v1875, %v1892
        %v2009 = vadd.f32 %v1876, %v1891
        %v2010 = vadd.f32 %v1877, %v1892
        %v2011 = vadd.f32 %v1878, %v1891
        %v2012 = vadd.f32 %v1879, %v1892
        %v2013 = vadd.f32 %v1880, %v1891
        %v2014 = vadd.f32 %v1881, %v1892
        %v2015 = vadd.f32 %v1882, %v1891
        %v2016 = vadd.f32 %v1883, %v1892
        %v2017 = vadd.f32 %v1884, %v1891
        %v2018 = vadd.f32 %v1885, %v1892
        %v2019 = vadd.f32 %v1886, %v1891
        %v2020 = vadd.f32 %v1887, %v1892
        %v2021 = vadd.f32 %v1888, %v1891
        %v2022 = vadd.f32 %v1889, %v1892
        %vm2023 = vcmp.ge.f32.partialorder %v1895, 0.0
        %vm2024 = vcmp.ge.f32.partialorder %v1896, 0.0
        %vm2025 = vcmp.ge.f32.partialorder %v1897, 0.0
        %vm2026 = vcmp.ge.f32.partialorder %v1898, 0.0
        %vm2027 = vcmp.ge.f32.partialorder %v1899, 0.0
        %vm2028 = vcmp.ge.f32.partialorder %v1900, 0.0
        %vm2029 = vcmp.ge.f32.partialorder %v1901, 0.0
        %vm2030 = vcmp.ge.f32.partialorder %v1902, 0.0
        %vm2031 = vcmp.ge.f32.partialorder %v1903, 0.0
        %vm2032 = vcmp.ge.f32.partialorder %v1904, 0.0
        %vm2033 = vcmp.ge.f32.partialorder %v1905, 0.0
        %vm2034 = vcmp.ge.f32.partialorder %v1906, 0.0
        %vm2035 = vcmp.ge.f32.partialorder %v1907, 0.0
        %vm2036 = vcmp.ge.f32.partialorder %v1908, 0.0
        %vm2037 = vcmp.ge.f32.partialorder %v1909, 0.0
        %vm2038 = vcmp.ge.f32.partialorder %v1910, 0.0
        %vm2039 = vcmp.ge.f32.partialorder %v1911, 0.0
        %vm2040 = vcmp.ge.f32.partialorder %v1912, 0.0
        %vm2041 = vcmp.ge.f32.partialorder %v1913, 0.0
        %vm2042 = vcmp.ge.f32.partialorder %v1914, 0.0
        %vm2043 = vcmp.ge.f32.partialorder %v1915, 0.0
        %vm2044 = vcmp.ge.f32.partialorder %v1916, 0.0
        %vm2045 = vcmp.ge.f32.partialorder %v1917, 0.0
        %vm2046 = vcmp.ge.f32.partialorder %v1918, 0.0
        %vm2047 = vcmp.ge.f32.partialorder %v1919, 0.0
        %vm2048 = vcmp.ge.f32.partialorder %v1920, 0.0
        %vm2049 = vcmp.ge.f32.partialorder %v1921, 0.0
        %vm2050 = vcmp.ge.f32.partialorder %v1922, 0.0
        %vm2051 = vcmp.ge.f32.partialorder %v1923, 0.0
        %vm2052 = vcmp.ge.f32.partialorder %v1924, 0.0
        %vm2053 = vcmp.ge.f32.partialorder %v1925, 0.0
        %vm2054 = vcmp.ge.f32.partialorder %v1926, 0.0
        %vm2055 = vcmp.ge.f32.partialorder %v1927, 0.0
        %vm2056 = vcmp.ge.f32.partialorder %v1928, 0.0
        %vm2057 = vcmp.ge.f32.partialorder %v1929, 0.0
        %vm2058 = vcmp.ge.f32.partialorder %v1930, 0.0
        %vm2059 = vcmp.ge.f32.partialorder %v1931, 0.0
        %vm2060 = vcmp.ge.f32.partialorder %v1932, 0.0
        %vm2061 = vcmp.ge.f32.partialorder %v1933, 0.0
        %vm2062 = vcmp.ge.f32.partialorder %v1934, 0.0
        %vm2063 = vcmp.ge.f32.partialorder %v1935, 0.0
        %vm2064 = vcmp.ge.f32.partialorder %v1936, 0.0
        %vm2065 = vcmp.ge.f32.partialorder %v1937, 0.0
        %vm2066 = vcmp.ge.f32.partialorder %v1938, 0.0
        %vm2067 = vcmp.ge.f32.partialorder %v1939, 0.0
        %vm2068 = vcmp.ge.f32.partialorder %v1940, 0.0
        %vm2069 = vcmp.ge.f32.partialorder %v1941, 0.0
        %vm2070 = vcmp.ge.f32.partialorder %v1942, 0.0
        %vm2071 = vcmp.ge.f32.partialorder %v1943, 0.0
        %vm2072 = vcmp.ge.f32.partialorder %v1944, 0.0
        %vm2073 = vcmp.ge.f32.partialorder %v1945, 0.0
        %vm2074 = vcmp.ge.f32.partialorder %v1946, 0.0
        %vm2075 = vcmp.ge.f32.partialorder %v1947, 0.0
        %vm2076 = vcmp.ge.f32.partialorder %v1948, 0.0
        %vm2077 = vcmp.ge.f32.partialorder %v1949, 0.0
        %vm2078 = vcmp.ge.f32.partialorder %v1950, 0.0
        %vm2079 = vcmp.ge.f32.partialorder %v1951, 0.0
        %vm2080 = vcmp.ge.f32.partialorder %v1952, 0.0
        %vm2081 = vcmp.ge.f32.partialorder %v1953, 0.0
        %vm2082 = vcmp.ge.f32.partialorder %v1954, 0.0
        %vm2083 = vcmp.ge.f32.partialorder %v1955, 0.0
        %vm2084 = vcmp.ge.f32.partialorder %v1956, 0.0
        %vm2085 = vcmp.ge.f32.partialorder %v1957, 0.0
        %vm2086 = vcmp.ge.f32.partialorder %v1958, 0.0
        %vm2087 = vcmp.ge.f32.partialorder %v1959, 0.0
        %vm2088 = vcmp.ge.f32.partialorder %v1960, 0.0
        %vm2089 = vcmp.ge.f32.partialorder %v1961, 0.0
        %vm2090 = vcmp.ge.f32.partialorder %v1962, 0.0
        %vm2091 = vcmp.ge.f32.partialorder %v1963, 0.0
        %vm2092 = vcmp.ge.f32.partialorder %v1964, 0.0
        %vm2093 = vcmp.ge.f32.partialorder %v1965, 0.0
        %vm2094 = vcmp.ge.f32.partialorder %v1966, 0.0
        %vm2095 = vcmp.ge.f32.partialorder %v1967, 0.0
        %vm2096 = vcmp.ge.f32.partialorder %v1968, 0.0
        %vm2097 = vcmp.ge.f32.partialorder %v1969, 0.0
        %vm2098 = vcmp.ge.f32.partialorder %v1970, 0.0
        %vm2099 = vcmp.ge.f32.partialorder %v1971, 0.0
        %vm2100 = vcmp.ge.f32.partialorder %v1972, 0.0
        %vm2101 = vcmp.ge.f32.partialorder %v1973, 0.0
        %vm2102 = vcmp.ge.f32.partialorder %v1974, 0.0
        %vm2103 = vcmp.ge.f32.partialorder %v1975, 0.0
        %vm2104 = vcmp.ge.f32.partialorder %v1976, 0.0
        %vm2105 = vcmp.ge.f32.partialorder %v1977, 0.0
        %vm2106 = vcmp.ge.f32.partialorder %v1978, 0.0
        %vm2107 = vcmp.ge.f32.partialorder %v1979, 0.0
        %vm2108 = vcmp.ge.f32.partialorder %v1980, 0.0
        %vm2109 = vcmp.ge.f32.partialorder %v1981, 0.0
        %vm2110 = vcmp.ge.f32.partialorder %v1982, 0.0
        %vm2111 = vcmp.ge.f32.partialorder %v1983, 0.0
        %vm2112 = vcmp.ge.f32.partialorder %v1984, 0.0
        %vm2113 = vcmp.ge.f32.partialorder %v1985, 0.0
        %vm2114 = vcmp.ge.f32.partialorder %v1986, 0.0
        %vm2115 = vcmp.ge.f32.partialorder %v1987, 0.0
        %vm2116 = vcmp.ge.f32.partialorder %v1988, 0.0
        %vm2117 = vcmp.ge.f32.partialorder %v1989, 0.0
        %vm2118 = vcmp.ge.f32.partialorder %v1990, 0.0
        %vm2119 = vcmp.ge.f32.partialorder %v1991, 0.0
        %vm2120 = vcmp.ge.f32.partialorder %v1992, 0.0
        %vm2121 = vcmp.ge.f32.partialorder %v1993, 0.0
        %vm2122 = vcmp.ge.f32.partialorder %v1994, 0.0
        %vm2123 = vcmp.ge.f32.partialorder %v1995, 0.0
        %vm2124 = vcmp.ge.f32.partialorder %v1996, 0.0
        %vm2125 = vcmp.ge.f32.partialorder %v1997, 0.0
        %vm2126 = vcmp.ge.f32.partialorder %v1998, 0.0
        %vm2127 = vcmp.ge.f32.partialorder %v1999, 0.0
        %vm2128 = vcmp.ge.f32.partialorder %v2000, 0.0
        %vm2129 = vcmp.ge.f32.partialorder %v2001, 0.0
        %vm2130 = vcmp.ge.f32.partialorder %v2002, 0.0
        %vm2131 = vcmp.ge.f32.partialorder %v2003, 0.0
        %vm2132 = vcmp.ge.f32.partialorder %v2004, 0.0
        %vm2133 = vcmp.ge.f32.partialorder %v2005, 0.0
        %vm2134 = vcmp.ge.f32.partialorder %v2006, 0.0
        %vm2135 = vcmp.ge.f32.partialorder %v2007, 0.0
        %vm2136 = vcmp.ge.f32.partialorder %v2008, 0.0
        %vm2137 = vcmp.ge.f32.partialorder %v2009, 0.0
        %vm2138 = vcmp.ge.f32.partialorder %v2010, 0.0
        %vm2139 = vcmp.ge.f32.partialorder %v2011, 0.0
        %vm2140 = vcmp.ge.f32.partialorder %v2012, 0.0
        %vm2141 = vcmp.ge.f32.partialorder %v2013, 0.0
        %vm2142 = vcmp.ge.f32.partialorder %v2014, 0.0
        %vm2143 = vcmp.ge.f32.partialorder %v2015, 0.0
        %vm2144 = vcmp.ge.f32.partialorder %v2016, 0.0
        %vm2145 = vcmp.ge.f32.partialorder %v2017, 0.0
        %vm2146 = vcmp.ge.f32.partialorder %v2018, 0.0
        %vm2147 = vcmp.ge.f32.partialorder %v2019, 0.0
        %vm2148 = vcmp.ge.f32.partialorder %v2020, 0.0
        %vm2149 = vcmp.ge.f32.partialorder %v2021, 0.0
        %vm2150 = vcmp.ge.f32.partialorder %v2022, 0.0
        %v2151 = vld [vmem:[%s4] sm:$0x3]
        %v2153 = vperm.slane %v2151, 0
        %v2154 = vperm.slane %v2151, 1
        %v2157 = vmul.f32 %v2153, %v1895
        %v2158 = vmul.f32 %v2154, %v1896
        %v2159 = vmul.f32 %v2153, %v1897
        %v2160 = vmul.f32 %v2154, %v1898
        %v2161 = vmul.f32 %v2153, %v1899
        %v2162 = vmul.f32 %v2154, %v1900
        %v2163 = vmul.f32 %v2153, %v1901
        %v2164 = vmul.f32 %v2154, %v1902
        %v2165 = vmul.f32 %v2153, %v1903
        %v2166 = vmul.f32 %v2154, %v1904
        %v2167 = vmul.f32 %v2153, %v1905
        %v2168 = vmul.f32 %v2154, %v1906
        %v2169 = vmul.f32 %v2153, %v1907
        %v2170 = vmul.f32 %v2154, %v1908
        %v2171 = vmul.f32 %v2153, %v1909
        %v2172 = vmul.f32 %v2154, %v1910
        %v2173 = vmul.f32 %v2153, %v1911
        %v2174 = vmul.f32 %v2154, %v1912
        %v2175 = vmul.f32 %v2153, %v1913
        %v2176 = vmul.f32 %v2154, %v1914
        %v2177 = vmul.f32 %v2153, %v1915
        %v2178 = vmul.f32 %v2154, %v1916
        %v2179 = vmul.f32 %v2153, %v1917
        %v2180 = vmul.f32 %v2154, %v1918
        %v2181 = vmul.f32 %v2153, %v1919
        %v2182 = vmul.f32 %v2154, %v1920
        %v2183 = vmul.f32 %v2153, %v1921
        %v2184 = vmul.f32 %v2154, %v1922
        %v2185 = vmul.f32 %v2153, %v1923
        %v2186 = vmul.f32 %v2154, %v1924
        %v2187 = vmul.f32 %v2153, %v1925
        %v2188 = vmul.f32 %v2154, %v1926
        %v2189 = vmul.f32 %v2153, %v1927
        %v2190 = vmul.f32 %v2154, %v1928
        %v2191 = vmul.f32 %v2153, %v1929
        %v2192 = vmul.f32 %v2154, %v1930
        %v2193 = vmul.f32 %v2153, %v1931
        %v2194 = vmul.f32 %v2154, %v1932
        %v2195 = vmul.f32 %v2153, %v1933
        %v2196 = vmul.f32 %v2154, %v1934
        %v2197 = vmul.f32 %v2153, %v1935
        %v2198 = vmul.f32 %v2154, %v1936
        %v2199 = vmul.f32 %v2153, %v1937
        %v2200 = vmul.f32 %v2154, %v1938
        %v2201 = vmul.f32 %v2153, %v1939
        %v2202 = vmul.f32 %v2154, %v1940
        %v2203 = vmul.f32 %v2153, %v1941
        %v2204 = vmul.f32 %v2154, %v1942
        %v2205 = vmul.f32 %v2153, %v1943
        %v2206 = vmul.f32 %v2154, %v1944
        %v2207 = vmul.f32 %v2153, %v1945
        %v2208 = vmul.f32 %v2154, %v1946
        %v2209 = vmul.f32 %v2153, %v1947
        %v2210 = vmul.f32 %v2154, %v1948
        %v2211 = vmul.f32 %v2153, %v1949
        %v2212 = vmul.f32 %v2154, %v1950
        %v2213 = vmul.f32 %v2153, %v1951
        %v2214 = vmul.f32 %v2154, %v1952
        %v2215 = vmul.f32 %v2153, %v1953
        %v2216 = vmul.f32 %v2154, %v1954
        %v2217 = vmul.f32 %v2153, %v1955
        %v2218 = vmul.f32 %v2154, %v1956
        %v2219 = vmul.f32 %v2153, %v1957
        %v2220 = vmul.f32 %v2154, %v1958
        %v2221 = vmul.f32 %v2153, %v1959
        %v2222 = vmul.f32 %v2154, %v1960
        %v2223 = vmul.f32 %v2153, %v1961
        %v2224 = vmul.f32 %v2154, %v1962
        %v2225 = vmul.f32 %v2153, %v1963
        %v2226 = vmul.f32 %v2154, %v1964
        %v2227 = vmul.f32 %v2153, %v1965
        %v2228 = vmul.f32 %v2154, %v1966
        %v2229 = vmul.f32 %v2153, %v1967
        %v2230 = vmul.f32 %v2154, %v1968
        %v2231 = vmul.f32 %v2153, %v1969
        %v2232 = vmul.f32 %v2154, %v1970
        %v2233 = vmul.f32 %v2153, %v1971
        %v2234 = vmul.f32 %v2154, %v1972
        %v2235 = vmul.f32 %v2153, %v1973
        %v2236 = vmul.f32 %v2154, %v1974
        %v2237 = vmul.f32 %v2153, %v1975
        %v2238 = vmul.f32 %v2154, %v1976
        %v2239 = vmul.f32 %v2153, %v1977
        %v2240 = vmul.f32 %v2154, %v1978
        %v2241 = vmul.f32 %v2153, %v1979
        %v2242 = vmul.f32 %v2154, %v1980
        %v2243 = vmul.f32 %v2153, %v1981
        %v2244 = vmul.f32 %v2154, %v1982
        %v2245 = vmul.f32 %v2153, %v1983
        %v2246 = vmul.f32 %v2154, %v1984
        %v2247 = vmul.f32 %v2153, %v1985
        %v2248 = vmul.f32 %v2154, %v1986
        %v2249 = vmul.f32 %v2153, %v1987
        %v2250 = vmul.f32 %v2154, %v1988
        %v2251 = vmul.f32 %v2153, %v1989
        %v2252 = vmul.f32 %v2154, %v1990
        %v2253 = vmul.f32 %v2153, %v1991
        %v2254 = vmul.f32 %v2154, %v1992
        %v2255 = vmul.f32 %v2153, %v1993
        %v2256 = vmul.f32 %v2154, %v1994
        %v2257 = vmul.f32 %v2153, %v1995
        %v2258 = vmul.f32 %v2154, %v1996
        %v2259 = vmul.f32 %v2153, %v1997
        %v2260 = vmul.f32 %v2154, %v1998
        %v2261 = vmul.f32 %v2153, %v1999
        %v2262 = vmul.f32 %v2154, %v2000
        %v2263 = vmul.f32 %v2153, %v2001
        %v2264 = vmul.f32 %v2154, %v2002
        %v2265 = vmul.f32 %v2153, %v2003
        %v2266 = vmul.f32 %v2154, %v2004
        %v2267 = vmul.f32 %v2153, %v2005
        %v2268 = vmul.f32 %v2154, %v2006
        %v2269 = vmul.f32 %v2153, %v2007
        %v2270 = vmul.f32 %v2154, %v2008
        %v2271 = vmul.f32 %v2153, %v2009
        %v2272 = vmul.f32 %v2154, %v2010
        %v2273 = vmul.f32 %v2153, %v2011
        %v2274 = vmul.f32 %v2154, %v2012
        %v2275 = vmul.f32 %v2153, %v2013
        %v2276 = vmul.f32 %v2154, %v2014
        %v2277 = vmul.f32 %v2153, %v2015
        %v2278 = vmul.f32 %v2154, %v2016
        %v2279 = vmul.f32 %v2153, %v2017
        %v2280 = vmul.f32 %v2154, %v2018
        %v2281 = vmul.f32 %v2153, %v2019
        %v2282 = vmul.f32 %v2154, %v2020
        %v2283 = vmul.f32 %v2153, %v2021
        %v2284 = vmul.f32 %v2154, %v2022
        %v2285 = vsel %vm2023, %v1895, %v2157
        %v2286 = vsel %vm2024, %v1896, %v2158
        %v2287 = vsel %vm2025, %v1897, %v2159
        %v2288 = vsel %vm2026, %v1898, %v2160
        %v2289 = vsel %vm2027, %v1899, %v2161
        %v2290 = vsel %vm2028, %v1900, %v2162
        %v2291 = vsel %vm2029, %v1901, %v2163
        %v2292 = vsel %vm2030, %v1902, %v2164
        %v2293 = vsel %vm2031, %v1903, %v2165
        %v2294 = vsel %vm2032, %v1904, %v2166
        %v2295 = vsel %vm2033, %v1905, %v2167
        %v2296 = vsel %vm2034, %v1906, %v2168
        %v2297 = vsel %vm2035, %v1907, %v2169
        %v2298 = vsel %vm2036, %v1908, %v2170
        %v2299 = vsel %vm2037, %v1909, %v2171
        %v2300 = vsel %vm2038, %v1910, %v2172
        %v2301 = vsel %vm2039, %v1911, %v2173
        %v2302 = vsel %vm2040, %v1912, %v2174
        %v2303 = vsel %vm2041, %v1913, %v2175
        %v2304 = vsel %vm2042, %v1914, %v2176
        %v2305 = vsel %vm2043, %v1915, %v2177
        %v2306 = vsel %vm2044, %v1916, %v2178
        %v2307 = vsel %vm2045, %v1917, %v2179
        %v2308 = vsel %vm2046, %v1918, %v2180
        %v2309 = vsel %vm2047, %v1919, %v2181
        %v2310 = vsel %vm2048, %v1920, %v2182
        %v2311 = vsel %vm2049, %v1921, %v2183
        %v2312 = vsel %vm2050, %v1922, %v2184
        %v2313 = vsel %vm2051, %v1923, %v2185
        %v2314 = vsel %vm2052, %v1924, %v2186
        %v2315 = vsel %vm2053, %v1925, %v2187
        %v2316 = vsel %vm2054, %v1926, %v2188
        %v2317 = vsel %vm2055, %v1927, %v2189
        %v2318 = vsel %vm2056, %v1928, %v2190
        %v2319 = vsel %vm2057, %v1929, %v2191
        %v2320 = vsel %vm2058, %v1930, %v2192
        %v2321 = vsel %vm2059, %v1931, %v2193
        %v2322 = vsel %vm2060, %v1932, %v2194
        %v2323 = vsel %vm2061, %v1933, %v2195
        %v2324 = vsel %vm2062, %v1934, %v2196
        %v2325 = vsel %vm2063, %v1935, %v2197
        %v2326 = vsel %vm2064, %v1936, %v2198
        %v2327 = vsel %vm2065, %v1937, %v2199
        %v2328 = vsel %vm2066, %v1938, %v2200
        %v2329 = vsel %vm2067, %v1939, %v2201
        %v2330 = vsel %vm2068, %v1940, %v2202
        %v2331 = vsel %vm2069, %v1941, %v2203
        %v2332 = vsel %vm2070, %v1942, %v2204
        %v2333 = vsel %vm2071, %v1943, %v2205
        %v2334 = vsel %vm2072, %v1944, %v2206
        %v2335 = vsel %vm2073, %v1945, %v2207
        %v2336 = vsel %vm2074, %v1946, %v2208
        %v2337 = vsel %vm2075, %v1947, %v2209
        %v2338 = vsel %vm2076, %v1948, %v2210
        %v2339 = vsel %vm2077, %v1949, %v2211
        %v2340 = vsel %vm2078, %v1950, %v2212
        %v2341 = vsel %vm2079, %v1951, %v2213
        %v2342 = vsel %vm2080, %v1952, %v2214
        %v2343 = vsel %vm2081, %v1953, %v2215
        %v2344 = vsel %vm2082, %v1954, %v2216
        %v2345 = vsel %vm2083, %v1955, %v2217
        %v2346 = vsel %vm2084, %v1956, %v2218
        %v2347 = vsel %vm2085, %v1957, %v2219
        %v2348 = vsel %vm2086, %v1958, %v2220
        %v2349 = vsel %vm2087, %v1959, %v2221
        %v2350 = vsel %vm2088, %v1960, %v2222
        %v2351 = vsel %vm2089, %v1961, %v2223
        %v2352 = vsel %vm2090, %v1962, %v2224
        %v2353 = vsel %vm2091, %v1963, %v2225
        %v2354 = vsel %vm2092, %v1964, %v2226
        %v2355 = vsel %vm2093, %v1965, %v2227
        %v2356 = vsel %vm2094, %v1966, %v2228
        %v2357 = vsel %vm2095, %v1967, %v2229
        %v2358 = vsel %vm2096, %v1968, %v2230
        %v2359 = vsel %vm2097, %v1969, %v2231
        %v2360 = vsel %vm2098, %v1970, %v2232
        %v2361 = vsel %vm2099, %v1971, %v2233
        %v2362 = vsel %vm2100, %v1972, %v2234
        %v2363 = vsel %vm2101, %v1973, %v2235
        %v2364 = vsel %vm2102, %v1974, %v2236
        %v2365 = vsel %vm2103, %v1975, %v2237
        %v2366 = vsel %vm2104, %v1976, %v2238
        %v2367 = vsel %vm2105, %v1977, %v2239
        %v2368 = vsel %vm2106, %v1978, %v2240
        %v2369 = vsel %vm2107, %v1979, %v2241
        %v2370 = vsel %vm2108, %v1980, %v2242
        %v2371 = vsel %vm2109, %v1981, %v2243
        %v2372 = vsel %vm2110, %v1982, %v2244
        %v2373 = vsel %vm2111, %v1983, %v2245
        %v2374 = vsel %vm2112, %v1984, %v2246
        %v2375 = vsel %vm2113, %v1985, %v2247
        %v2376 = vsel %vm2114, %v1986, %v2248
        %v2377 = vsel %vm2115, %v1987, %v2249
        %v2378 = vsel %vm2116, %v1988, %v2250
        %v2379 = vsel %vm2117, %v1989, %v2251
        %v2380 = vsel %vm2118, %v1990, %v2252
        %v2381 = vsel %vm2119, %v1991, %v2253
        %v2382 = vsel %vm2120, %v1992, %v2254
        %v2383 = vsel %vm2121, %v1993, %v2255
        %v2384 = vsel %vm2122, %v1994, %v2256
        %v2385 = vsel %vm2123, %v1995, %v2257
        %v2386 = vsel %vm2124, %v1996, %v2258
        %v2387 = vsel %vm2125, %v1997, %v2259
        %v2388 = vsel %vm2126, %v1998, %v2260
        %v2389 = vsel %vm2127, %v1999, %v2261
        %v2390 = vsel %vm2128, %v2000, %v2262
        %v2391 = vsel %vm2129, %v2001, %v2263
        %v2392 = vsel %vm2130, %v2002, %v2264
        %v2393 = vsel %vm2131, %v2003, %v2265
        %v2394 = vsel %vm2132, %v2004, %v2266
        %v2395 = vsel %vm2133, %v2005, %v2267
        %v2396 = vsel %vm2134, %v2006, %v2268
        %v2397 = vsel %vm2135, %v2007, %v2269
        %v2398 = vsel %vm2136, %v2008, %v2270
        %v2399 = vsel %vm2137, %v2009, %v2271
        %v2400 = vsel %vm2138, %v2010, %v2272
        %v2401 = vsel %vm2139, %v2011, %v2273
        %v2402 = vsel %vm2140, %v2012, %v2274
        %v2403 = vsel %vm2141, %v2013, %v2275
        %v2404 = vsel %vm2142, %v2014, %v2276
        %v2405 = vsel %vm2143, %v2015, %v2277
        %v2406 = vsel %vm2144, %v2016, %v2278
        %v2407 = vsel %vm2145, %v2017, %v2279
        %v2408 = vsel %vm2146, %v2018, %v2280
        %v2409 = vsel %vm2147, %v2019, %v2281
        %v2410 = vsel %vm2148, %v2020, %v2282
        %v2411 = vsel %vm2149, %v2021, %v2283
        %v2412 = vsel %vm2150, %v2022, %v2284
        %v2413 = vpack.c.bf16 %v2286, %v2285
        %v2414 = vpack.c.bf16 %v2288, %v2287
        %v2415 = vpack.c.bf16 %v2290, %v2289
        %v2416 = vpack.c.bf16 %v2292, %v2291
        %v2417 = vpack.c.bf16 %v2294, %v2293
        %v2418 = vpack.c.bf16 %v2296, %v2295
        %v2419 = vpack.c.bf16 %v2298, %v2297
        %v2420 = vpack.c.bf16 %v2300, %v2299
        %v2421 = vpack.c.bf16 %v2302, %v2301
        %v2422 = vpack.c.bf16 %v2304, %v2303
        %v2423 = vpack.c.bf16 %v2306, %v2305
        %v2424 = vpack.c.bf16 %v2308, %v2307
        %v2425 = vpack.c.bf16 %v2310, %v2309
        %v2426 = vpack.c.bf16 %v2312, %v2311
        %v2427 = vpack.c.bf16 %v2314, %v2313
        %v2428 = vpack.c.bf16 %v2316, %v2315
        %v2429 = vpack.c.bf16 %v2318, %v2317
        %v2430 = vpack.c.bf16 %v2320, %v2319
        %v2431 = vpack.c.bf16 %v2322, %v2321
        %v2432 = vpack.c.bf16 %v2324, %v2323
        %v2433 = vpack.c.bf16 %v2326, %v2325
        %v2434 = vpack.c.bf16 %v2328, %v2327
        %v2435 = vpack.c.bf16 %v2330, %v2329
        %v2436 = vpack.c.bf16 %v2332, %v2331
        %v2437 = vpack.c.bf16 %v2334, %v2333
        %v2438 = vpack.c.bf16 %v2336, %v2335
        %v2439 = vpack.c.bf16 %v2338, %v2337
        %v2440 = vpack.c.bf16 %v2340, %v2339
        %v2441 = vpack.c.bf16 %v2342, %v2341
        %v2442 = vpack.c.bf16 %v2344, %v2343
        %v2443 = vpack.c.bf16 %v2346, %v2345
        %v2444 = vpack.c.bf16 %v2348, %v2347
        %v2445 = vpack.c.bf16 %v2350, %v2349
        %v2446 = vpack.c.bf16 %v2352, %v2351
        %v2447 = vpack.c.bf16 %v2354, %v2353
        %v2448 = vpack.c.bf16 %v2356, %v2355
        %v2449 = vpack.c.bf16 %v2358, %v2357
        %v2450 = vpack.c.bf16 %v2360, %v2359
        %v2451 = vpack.c.bf16 %v2362, %v2361
        %v2452 = vpack.c.bf16 %v2364, %v2363
        %v2453 = vpack.c.bf16 %v2366, %v2365
        %v2454 = vpack.c.bf16 %v2368, %v2367
        %v2455 = vpack.c.bf16 %v2370, %v2369
        %v2456 = vpack.c.bf16 %v2372, %v2371
        %v2457 = vpack.c.bf16 %v2374, %v2373
        %v2458 = vpack.c.bf16 %v2376, %v2375
        %v2459 = vpack.c.bf16 %v2378, %v2377
        %v2460 = vpack.c.bf16 %v2380, %v2379
        %v2461 = vpack.c.bf16 %v2382, %v2381
        %v2462 = vpack.c.bf16 %v2384, %v2383
        %v2463 = vpack.c.bf16 %v2386, %v2385
        %v2464 = vpack.c.bf16 %v2388, %v2387
        %v2465 = vpack.c.bf16 %v2390, %v2389
        %v2466 = vpack.c.bf16 %v2392, %v2391
        %v2467 = vpack.c.bf16 %v2394, %v2393
        %v2468 = vpack.c.bf16 %v2396, %v2395
        %v2469 = vpack.c.bf16 %v2398, %v2397
        %v2470 = vpack.c.bf16 %v2400, %v2399
        %v2471 = vpack.c.bf16 %v2402, %v2401
        %v2472 = vpack.c.bf16 %v2404, %v2403
        %v2473 = vpack.c.bf16 %v2406, %v2405
        %v2474 = vpack.c.bf16 %v2408, %v2407
        %v2475 = vpack.c.bf16 %v2410, %v2409
        %v2476 = vpack.c.bf16 %v2412, %v2411
        %2477 = vst [vmem:[%s258] sm:$0xff] %v2413
        %2478 = vst [vmem:[%s258 + $0x8] sm:$0xff] %v2414
        %2479 = vst [vmem:[%s258 + $0x10] sm:$0xff] %v2415
        %2480 = vst [vmem:[%s258 + $0x18] sm:$0xff] %v2416
        %2481 = vst [vmem:[%s258 + $0x20] sm:$0xff] %v2417
        %2482 = vst [vmem:[%s258 + $0x28] sm:$0xff] %v2418
        %2483 = vst [vmem:[%s258 + $0x30] sm:$0xff] %v2419
        %2484 = vst [vmem:[%s258 + $0x38] sm:$0xff] %v2420
        %2485 = vst [vmem:[%s258 + $0x40] sm:$0xff] %v2421
        %2486 = vst [vmem:[%s258 + $0x48] sm:$0xff] %v2422
        %2487 = vst [vmem:[%s258 + $0x50] sm:$0xff] %v2423
        %2488 = vst [vmem:[%s258 + $0x58] sm:$0xff] %v2424
        %2489 = vst [vmem:[%s258 + $0x60] sm:$0xff] %v2425
        %2490 = vst [vmem:[%s258 + $0x68] sm:$0xff] %v2426
        %2491 = vst [vmem:[%s258 + $0x70] sm:$0xff] %v2427
        %2492 = vst [vmem:[%s258 + $0x78] sm:$0xff] %v2428
        %2493 = vst [vmem:[%s258 + $0x80] sm:$0xff] %v2429
        %2494 = vst [vmem:[%s258 + $0x88] sm:$0xff] %v2430
        %2495 = vst [vmem:[%s258 + $0x90] sm:$0xff] %v2431
        %2496 = vst [vmem:[%s258 + $0x98] sm:$0xff] %v2432
        %2497 = vst [vmem:[%s258 + $0xa0] sm:$0xff] %v2433
        %2498 = vst [vmem:[%s258 + $0xa8] sm:$0xff] %v2434
        %2499 = vst [vmem:[%s258 + $0xb0] sm:$0xff] %v2435
        %2500 = vst [vmem:[%s258 + $0xb8] sm:$0xff] %v2436
        %2501 = vst [vmem:[%s258 + $0xc0] sm:$0xff] %v2437
        %2502 = vst [vmem:[%s258 + $0xc8] sm:$0xff] %v2438
        %2503 = vst [vmem:[%s258 + $0xd0] sm:$0xff] %v2439
        %2504 = vst [vmem:[%s258 + $0xd8] sm:$0xff] %v2440
        %2505 = vst [vmem:[%s258 + $0xe0] sm:$0xff] %v2441
        %2506 = vst [vmem:[%s258 + $0xe8] sm:$0xff] %v2442
        %2507 = vst [vmem:[%s258 + $0xf0] sm:$0xff] %v2443
        %2508 = vst [vmem:[%s258 + $0xf8] sm:$0xff] %v2444
        %2509 = vst [vmem:[%s258 + $0x100] sm:$0xff] %v2445
        %2510 = vst [vmem:[%s258 + $0x108] sm:$0xff] %v2446
        %2511 = vst [vmem:[%s258 + $0x110] sm:$0xff] %v2447
        %2512 = vst [vmem:[%s258 + $0x118] sm:$0xff] %v2448
        %2513 = vst [vmem:[%s258 + $0x120] sm:$0xff] %v2449
        %2514 = vst [vmem:[%s258 + $0x128] sm:$0xff] %v2450
        %2515 = vst [vmem:[%s258 + $0x130] sm:$0xff] %v2451
        %2516 = vst [vmem:[%s258 + $0x138] sm:$0xff] %v2452
        %2517 = vst [vmem:[%s258 + $0x140] sm:$0xff] %v2453
        %2518 = vst [vmem:[%s258 + $0x148] sm:$0xff] %v2454
        %2519 = vst [vmem:[%s258 + $0x150] sm:$0xff] %v2455
        %2520 = vst [vmem:[%s258 + $0x158] sm:$0xff] %v2456
        %2521 = vst [vmem:[%s258 + $0x160] sm:$0xff] %v2457
        %2522 = vst [vmem:[%s258 + $0x168] sm:$0xff] %v2458
        %2523 = vst [vmem:[%s258 + $0x170] sm:$0xff] %v2459
        %2524 = vst [vmem:[%s258 + $0x178] sm:$0xff] %v2460
        %2525 = vst [vmem:[%s258 + $0x180] sm:$0xff] %v2461
        %2526 = vst [vmem:[%s258 + $0x188] sm:$0xff] %v2462
        %2527 = vst [vmem:[%s258 + $0x190] sm:$0xff] %v2463
        %2528 = vst [vmem:[%s258 + $0x198] sm:$0xff] %v2464
        %2529 = vst [vmem:[%s258 + $0x1a0] sm:$0xff] %v2465
        %2530 = vst [vmem:[%s258 + $0x1a8] sm:$0xff] %v2466
        %2531 = vst [vmem:[%s258 + $0x1b0] sm:$0xff] %v2467
        %2532 = vst [vmem:[%s258 + $0x1b8] sm:$0xff] %v2468
        %2533 = vst [vmem:[%s258 + $0x1c0] sm:$0xff] %v2469
        %2534 = vst [vmem:[%s258 + $0x1c8] sm:$0xff] %v2470
        %2535 = vst [vmem:[%s258 + $0x1d0] sm:$0xff] %v2471
        %2536 = vst [vmem:[%s258 + $0x1d8] sm:$0xff] %v2472
        %2537 = vst [vmem:[%s258 + $0x1e0] sm:$0xff] %v2473
        %2538 = vst [vmem:[%s258 + $0x1e8] sm:$0xff] %v2474
        %2539 = vst [vmem:[%s258 + $0x1f0] sm:$0xff] %v2475
        %2540 = vst [vmem:[%s258 + $0x1f8] sm:$0xff] %v2476
      $region52: #{residual_forward.2} parent=39 // pred_fallthru
        _
      %s2541 = smul.u32 %s20, %s21
      %s2542 = smul.u32 64, %s2541
      %p2543 = scmp.lt.s32.totalorder %s2542, 63
      %s2544 = scalar_select %p2543, %s2542, 63
      %s2545 = smul.addr %s2544, 2
      %s2546 = smul.addr %s2545, 4
      %s2547 = scalar_lea.vmem %s5, %s2546
      // Predicated region
      $region53: #{residual_forward.2} parent=39 // pred_check
        %p2548 = pneg %p162
      $region54: #{residual_forward.2} parent=39 // pred_check_branch
        %2550 = sbr.rel (%p2548) target = $region56
      $region55: #{residual_forward.2} parent=39 // pred_region
        %s2551 = smul.u32 %s20, %s21
        %s2552 = smul.u32 64, %s2551
      $region56: #{residual_forward.2} parent=39 // pred_fallthru
        _
    $region40: #{residual_forward.2} parent=5 // pred_fallthru
      _
    %p2553 = scmp.le.s32.totalorder 2, %s11
    // Predicated region
    $region57: #{residual_forward.2} parent=5 // pred_check
      %p2554 = pneg %p2553
    $region58: #{residual_forward.2} parent=5 // pred_check_branch
      %2556 = sbr.rel (%p2554) target = $region60
    $region59: #{residual_forward.2} parent=5 // pred_region
      %s2557 = ssub.s32 %s11, 2
      // Predicated region
      $region61: #{residual_forward.2} parent=59 // pred_check
        %p2558 = pneg %p168
      $region62: #{residual_forward.2} parent=59 // pred_check_branch
        %2560 = sbr.rel (%p2558) target = $region64
      $region63: #{residual_forward.2} parent=59 // pred_region
        %s2561 = smul.u32 %s22, %s23
        %s2562 = smul.u32 64, %s2561
        %p2563 = scmp.lt.s32.totalorder %s2562, 63
        %s2564 = scalar_select %p2563, %s2562, 63
        %s2565 = smul.addr %s2564, 2
        %s2566 = smul.addr %s2565, 4
        %s2567 = scalar_lea.vmem %s5, %s2566
      $region64: #{residual_forward.2} parent=59 // pred_fallthru
        _
    $region60: #{residual_forward.2} parent=5 // pred_fallthru
      _
  $region6: #{residual_forward.2} parent=0 // loop_footer
    %s15 = sadd.s32 1, %s11
  $region7: #{residual_forward.2} parent=0 // loop_footer_branch
    %10 = sbr.rel target = $region3
  $region8: #{residual_forward.2} parent=0 // loop_exit
    _

// kernel: residual_forward.3
$region0: #{residual_forward.3}
  #allocation0 [shape = 'u32[]', space=smem, size = 0x4, offset = 0x4, fixed_abs, tag = 'smem constant byte address 0x4 - core index']
  #allocation1 [shape = 'u32[72,128]{1,0:T(1,128)}', space=vmem, size = 0x9000, scoped, tag = 'internal scratch']
  #allocation2 [shape = 'f32[1,128]{1,0:T(1,128)}', space=vmem, size = 0x200, scoped, tag = 'scratch operand']
  #allocation3 [shape = 'f32[1,128]{1,0:T(1,128)}', space=vmem, size = 0x200, scoped, tag = 'scratch operand']
  #allocation4 [shape = 'bf16[512,128]{1,0:T(8,128)(2,1)}', space=vmem, size = 0x20000, scoped, tag = 'scratch operand']
  %s0 = inlined_call_operand.vmem [shape: bf16[512,72], index: 0, kind: input, shape index: {}]
  %s1 = inlined_call_operand.vmem [shape: bf16[72,128], index: 1, kind: input, shape index: {}]
  %s2 = inlined_call_operand.vmem [shape: f32[1,128], index: 2, kind: input, shape index: {}]
  %s3 = inlined_call_operand.vmem [shape: f32[1,128], index: 3, kind: input, shape index: {}]
  %s4 = inlined_call_operand.vmem [shape: f32[1,128], index: 4, kind: input, shape index: {}]
  %s5 = inlined_call_operand.vmem [shape: bf16[512,128], index: 5, kind: input, shape index: {}]
  %s6 = inlined_call_operand.vmem [shape: f32[512,128], index: 6, kind: output, shape index: {}]
  %s7 = sld [smem:[#allocation0]]
  $region69: #{residual_forward.3} parent=0
    _
  %s9 = ssub.s32 1, %s7
  %s10 = scalar_select 0, %s9, %s7
  loop: start=0, step=1, limit=4
  $region2: #{residual_forward.3} parent=0 // loop_pre_header
    _
  $region3: #{residual_forward.3} parent=0 // loop_header
    %s12 = sphi 0, %s16
    %p13 = scmp.ge.s32.totalorder %s12, 4
    %s19 = sphi 0, %s31
    %s20 = sphi 0, %s27
    %s21 = sphi 0, %s19
    %s22 = sphi 0, %s20
    %s23 = sphi 0, %s21
    %s24 = sphi 0, %s22
    %s38 = sphi 0, %s40
    %s41 = sphi 0, %s38
    %s42 = sphi 0, %s41
    %s58 = sphi 0, %s42
    %s62 = sphi 0, %s62
    %s64 = sphi 0, %s62
    %s65 = sphi 0, %s64
    %s79 = sphi 0, %s65
    %s83 = sphi 0, %s83
    %s85 = sphi 0, %s83
    %s86 = sphi 0, %s85
    %s100 = sphi 0, %s86
    %s104 = sphi 0, %s104
    %s106 = sphi 0, %s104
    %s107 = sphi 0, %s106
    %s121 = sphi 0, %s107
    %s125 = sphi 0, %s125
    %s127 = sphi 0, %s125
    %s128 = sphi 0, %s127
    %s142 = sphi 0, %s128
    %s150 = sphi 0, %s152
    %s153 = sphi 0, %s150
    %s154 = sphi 0, %s153
    %s170 = sphi 0, %s154
    %s178 = sphi 0, %s180
    %s181 = sphi 0, %s178
    %s182 = sphi 0, %s181
    %s198 = sphi 0, %s182
  $region4: #{residual_forward.3} parent=0 // loop_header_branch
    %15 = sbr.rel (%p13) target = $region8
  $region5: #{residual_forward.3} parent=0 // loop_body
    %s17 = ssub.s32 %s12, 1
    %s18 = ssub.s32 %s12, 2
    %s25 = sadd.s32 1, %s20
    %p26 = scmp.ge.s32.totalorder %s25, 1
    %s27 = scalar_select %p26, 0, %s25
    %s28 = sadd.s32 1, %s19
    %s29 = scalar_select %p26, %s28, %s19
    %p30 = scmp.ge.s32.totalorder %s29, 2
    %s31 = scalar_select %p30, 0, %s29
    %s32 = ssub.s32 1, %s19
    %s33 = smul.u32 %s32, %s20
    %s34 = ssub.s32 1, %s31
    %s35 = smul.u32 %s34, %s27
    %s36 = ssub.s32 %s33, %s35
    %p37 = scmp.eq.s32.totalorder %s36, 0
    %s39 = sadd.s32 %s38, 1
    %s40 = scalar_select %p37, %s38, %s39
    %p43 = pneg %p37
    %p44 = scmp.eq.s32.totalorder %s12, 1
    %p45 = por %p43, %p44
    %p46 = scmp.ne.s32.totalorder %s38, %s41
    %p47 = scmp.eq.s32.totalorder %s12, 0
    %p48 = por %p46, %p47
    %p49 = scmp.ne.s32.totalorder %s38, %s41
    %p50 = scmp.eq.s32.totalorder %s17, 1
    %p51 = por %p49, %p50
    %p52 = scmp.ne.s32.totalorder %s41, %s42
    %p53 = scmp.eq.s32.totalorder %s17, 0
    %p54 = por %p52, %p53
    %p55 = scmp.ne.s32.totalorder %s41, %s42
    %p56 = scmp.eq.s32.totalorder %s18, 1
    %p57 = por %p55, %p56
    %p59 = scmp.ne.s32.totalorder %s42, %s58
    %p60 = scmp.eq.s32.totalorder %s18, 0
    %p61 = por %p59, %p60
    %s63 = sadd.s32 %s62, 1
    %p66 = scmp.eq.s32.totalorder %s12, 1
    %p67 = scmp.ne.s32.totalorder %s62, %s64
    %p68 = scmp.eq.s32.totalorder %s12, 0
    %p69 = por %p67, %p68
    %p70 = scmp.ne.s32.totalorder %s62, %s64
    %p71 = scmp.eq.s32.totalorder %s17, 1
    %p72 = por %p70, %p71
    %p73 = scmp.ne.s32.totalorder %s64, %s65
    %p74 = scmp.eq.s32.totalorder %s17, 0
    %p75 = por %p73, %p74
    %p76 = scmp.ne.s32.totalorder %s64, %s65
    %p77 = scmp.eq.s32.totalorder %s18, 1
    %p78 = por %p76, %p77
    %p80 = scmp.ne.s32.totalorder %s65, %s79
    %p81 = scmp.eq.s32.totalorder %s18, 0
    %p82 = por %p80, %p81
    %s84 = sadd.s32 %s83, 1
    %p87 = scmp.eq.s32.totalorder %s12, 1
    %p88 = scmp.ne.s32.totalorder %s83, %s85
    %p89 = scmp.eq.s32.totalorder %s12, 0
    %p90 = por %p88, %p89
    %p91 = scmp.ne.s32.totalorder %s83, %s85
    %p92 = scmp.eq.s32.totalorder %s17, 1
    %p93 = por %p91, %p92
    %p94 = scmp.ne.s32.totalorder %s85, %s86
    %p95 = scmp.eq.s32.totalorder %s17, 0
    %p96 = por %p94, %p95
    %p97 = scmp.ne.s32.totalorder %s85, %s86
    %p98 = scmp.eq.s32.totalorder %s18, 1
    %p99 = por %p97, %p98
    %p101 = scmp.ne.s32.totalorder %s86, %s100
    %p102 = scmp.eq.s32.totalorder %s18, 0
    %p103 = por %p101, %p102
    %s105 = sadd.s32 %s104, 1
    %p108 = scmp.eq.s32.totalorder %s12, 1
    %p109 = scmp.ne.s32.totalorder %s104, %s106
    %p110 = scmp.eq.s32.totalorder %s12, 0
    %p111 = por %p109, %p110
    %p112 = scmp.ne.s32.totalorder %s104, %s106
    %p113 = scmp.eq.s32.totalorder %s17, 1
    %p114 = por %p112, %p113
    %p115 = scmp.ne.s32.totalorder %s106, %s107
    %p116 = scmp.eq.s32.totalorder %s17, 0
    %p117 = por %p115, %p116
    %p118 = scmp.ne.s32.totalorder %s106, %s107
    %p119 = scmp.eq.s32.totalorder %s18, 1
    %p120 = por %p118, %p119
    %p122 = scmp.ne.s32.totalorder %s107, %s121
    %p123 = scmp.eq.s32.totalorder %s18, 0
    %p124 = por %p122, %p123
    %s126 = sadd.s32 %s125, 1
    %p129 = scmp.eq.s32.totalorder %s12, 1
    %p130 = scmp.ne.s32.totalorder %s125, %s127
    %p131 = scmp.eq.s32.totalorder %s12, 0
    %p132 = por %p130, %p131
    %p133 = scmp.ne.s32.totalorder %s125, %s127
    %p134 = scmp.eq.s32.totalorder %s17, 1
    %p135 = por %p133, %p134
    %p136 = scmp.ne.s32.totalorder %s127, %s128
    %p137 = scmp.eq.s32.totalorder %s17, 0
    %p138 = por %p136, %p137
    %p139 = scmp.ne.s32.totalorder %s127, %s128
    %p140 = scmp.eq.s32.totalorder %s18, 1
    %p141 = por %p139, %p140
    %p143 = scmp.ne.s32.totalorder %s128, %s142
    %p144 = scmp.eq.s32.totalorder %s18, 0
    %p145 = por %p143, %p144
    %s146 = smul.u32 %s19, %s20
    %s147 = smul.u32 %s31, %s27
    %s148 = ssub.s32 %s146, %s147
    %p149 = scmp.eq.s32.totalorder %s148, 0
    %s151 = sadd.s32 %s150, 1
    %s152 = scalar_select %p149, %s150, %s151
    %p155 = pneg %p149
    %p156 = scmp.eq.s32.totalorder %s12, 1
    %p157 = por %p155, %p156
    %p158 = scmp.ne.s32.totalorder %s150, %s153
    %p159 = scmp.eq.s32.totalorder %s12, 0
    %p160 = por %p158, %p159
    %p161 = scmp.ne.s32.totalorder %s150, %s153
    %p162 = scmp.eq.s32.totalorder %s17, 1
    %p163 = por %p161, %p162
    %p164 = scmp.ne.s32.totalorder %s153, %s154
    %p165 = scmp.eq.s32.totalorder %s17, 0
    %p166 = por %p164, %p165
    %p167 = scmp.ne.s32.totalorder %s153, %s154
    %p168 = scmp.eq.s32.totalorder %s18, 1
    %p169 = por %p167, %p168
    %p171 = scmp.ne.s32.totalorder %s154, %s170
    %p172 = scmp.eq.s32.totalorder %s18, 0
    %p173 = por %p171, %p172
    %s174 = smul.u32 %s19, %s20
    %s175 = smul.u32 %s31, %s27
    %s176 = ssub.s32 %s174, %s175
    %p177 = scmp.eq.s32.totalorder %s176, 0
    %s179 = sadd.s32 %s178, 1
    %s180 = scalar_select %p177, %s178, %s179
    %p183 = pneg %p177
    %p184 = scmp.eq.s32.totalorder %s12, 1
    %p185 = por %p183, %p184
    %p186 = scmp.ne.s32.totalorder %s178, %s181
    %p187 = scmp.eq.s32.totalorder %s12, 0
    %p188 = por %p186, %p187
    %p189 = scmp.ne.s32.totalorder %s178, %s181
    %p190 = scmp.eq.s32.totalorder %s17, 1
    %p191 = por %p189, %p190
    %p192 = scmp.ne.s32.totalorder %s181, %s182
    %p193 = scmp.eq.s32.totalorder %s17, 0
    %p194 = por %p192, %p193
    %p195 = scmp.ne.s32.totalorder %s181, %s182
    %p196 = scmp.eq.s32.totalorder %s18, 1
    %p197 = por %p195, %p196
    %p199 = scmp.ne.s32.totalorder %s182, %s198
    %p200 = scmp.eq.s32.totalorder %s18, 0
    %p201 = por %p199, %p200
    %p202 = scmp.le.s32.totalorder 1, %s12
    %p203 = scmp.lt.s32.totalorder %s12, 3
    %p204 = pnand %p202, %p203
    %p205 = pneg %p204
    // Predicated region
    $region9: #{residual_forward.3} parent=5 // pred_check
      _
    $region10: #{residual_forward.3} parent=5 // pred_check_branch
      %207 = sbr.rel (%p204) target = $region12
    $region11: #{residual_forward.3} parent=5 // pred_region
      %s208 = ssub.s32 %s12, 1
      // Predicated region
      $region13: #{residual_forward.3} parent=11 // pred_check
        %p209 = pneg %p75
      $region14: #{residual_forward.3} parent=11 // pred_check_branch
        %211 = sbr.rel (%p209) target = $region16
      $region15: #{residual_forward.3} parent=11 // pred_region
        _
      $region16: #{residual_forward.3} parent=11 // pred_fallthru
        _
      // Predicated region
      $region17: #{residual_forward.3} parent=11 // pred_check
        %p212 = pneg %p96
      $region18: #{residual_forward.3} parent=11 // pred_check_branch
        %214 = sbr.rel (%p212) target = $region20
      $region19: #{residual_forward.3} parent=11 // pred_region
        _
      $region20: #{residual_forward.3} parent=11 // pred_fallthru
        _
      // Predicated region
      $region21: #{residual_forward.3} parent=11 // pred_check
        %p215 = pneg %p117
      $region22: #{residual_forward.3} parent=11 // pred_check_branch
        %217 = sbr.rel (%p215) target = $region24
      $region23: #{residual_forward.3} parent=11 // pred_region
        _
      $region24: #{residual_forward.3} parent=11 // pred_fallthru
        _
      // Predicated region
      $region25: #{residual_forward.3} parent=11 // pred_check
        %p218 = pneg %p138
      $region26: #{residual_forward.3} parent=11 // pred_check_branch
        %220 = sbr.rel (%p218) target = $region28
      $region27: #{residual_forward.3} parent=11 // pred_region
        _
      $region28: #{residual_forward.3} parent=11 // pred_fallthru
        _
    $region12: #{residual_forward.3} parent=5 // pred_fallthru
      _
    %p221 = scmp.lt.s32.totalorder %s12, 2
    // Predicated region
    $region29: #{residual_forward.3} parent=5 // pred_check
      %p222 = pneg %p221
    $region30: #{residual_forward.3} parent=5 // pred_check_branch
      %224 = sbr.rel (%p222) target = $region32
    $region31: #{residual_forward.3} parent=5 // pred_region
      // Predicated region
      $region33: #{residual_forward.3} parent=31 // pred_check
        %p225 = pneg %p48
      $region34: #{residual_forward.3} parent=31 // pred_check_branch
        %227 = sbr.rel (%p225) target = $region36
      $region35: #{residual_forward.3} parent=31 // pred_region
        %s228 = ssub.s32 1, %s19
        %s229 = smul.u32 %s228, %s20
        %s230 = smul.u32 64, %s229
        %p231 = scmp.lt.s32.totalorder %s230, 63
        %s232 = scalar_select %p231, %s230, 63
        %s233 = smul.addr %s232, 4
        %s234 = scalar_lea.vmem %s0, %s233
        %s235 = ssub.s32 1, %s19
        %s236 = smul.u32 %s235, %s20
        %s237 = smul.u32 64, %s236
      $region36: #{residual_forward.3} parent=31 // pred_fallthru
        _
      // Predicated region
      $region37: #{residual_forward.3} parent=31 // pred_check
        %p238 = pneg %p160
      $region38: #{residual_forward.3} parent=31 // pred_check_branch
        %240 = sbr.rel (%p238) target = $region40
      $region39: #{residual_forward.3} parent=31 // pred_region
        %s241 = smul.u32 %s19, %s20
        %s242 = smul.u32 64, %s241
        %p243 = scmp.lt.s32.totalorder %s242, 63
        %s244 = scalar_select %p243, %s242, 63
        %s245 = smul.addr %s244, 4
        %s246 = scalar_lea.vmem %s5, %s245
        %s247 = smul.u32 %s19, %s20
        %s248 = smul.u32 64, %s247
      $region40: #{residual_forward.3} parent=31 // pred_fallthru
        _
    $region32: #{residual_forward.3} parent=5 // pred_fallthru
      _
    %p249 = scmp.le.s32.totalorder 1, %s12
    %p250 = scmp.lt.s32.totalorder %s12, 3
    %p251 = pnand %p249, %p250
    %p252 = pneg %p251
    // Predicated region
    $region41: #{residual_forward.3} parent=5 // pred_check
      _
    $region42: #{residual_forward.3} parent=5 // pred_check_branch
      %254 = sbr.rel (%p251) target = $region44
    $region43: #{residual_forward.3} parent=5 // pred_region
      %s255 = ssub.s32 %s12, 1
      %s256 = ssub.s32 1, %s21
      %s257 = smul.u32 %s256, %s22
      %s258 = smul.u32 64, %s257
      %p259 = scmp.lt.s32.totalorder %s258, 63
      %s260 = scalar_select %p259, %s258, 63
      %s261 = smul.addr %s260, 4
      %s262 = scalar_lea.vmem %s0, %s261
      %p263 = pneg %p54
      %p264 = pneg %p51
      %p265 = pneg %p75
      %p266 = pneg %p72
      %p267 = pneg %p96
      %p268 = pneg %p93
      %p269 = pneg %p117
      %p270 = pneg %p114
      %p271 = pneg %p138
      %p272 = pneg %p135
      %s273 = smul.u32 %s21, %s22
      %s274 = smul.u32 64, %s273
      %p275 = scmp.lt.s32.totalorder %s274, 63
      %s276 = scalar_select %p275, %s274, 63
      %s277 = smul.addr %s276, 4
      %s278 = scalar_lea.vmem %s5, %s277
      %p279 = pneg %p166
      %p280 = pneg %p163
      %p281 = pneg %p194
      %p282 = pneg %p191
      %s283 = smul.u32 %s21, %s22
      %s284 = smul.u32 64, %s283
      %p285 = scmp.lt.s32.totalorder %s284, 63
      %s286 = scalar_select %p285, %s284, 63
      %s287 = smul.addr %s286, 8
      %s288 = scalar_lea.vmem %s6, %s287
      %s289 = ssub.s32 1, %s21
      %s290 = smul.u32 %s289, %s22
      %s291 = smul.u32 64, %s290
      %p292 = scmp.lt.s32.totalorder %s291, 63
      %s293 = scalar_select %p292, %s291, 63
      %s294 = smul.addr %s293, 4
      %s295 = scalar_lea.vmem %s0, %s294
      %s296 = ssub.s32 1, %s21
      %s297 = smul.u32 %s296, %s22
      %s298 = smul.u32 64, %s297
      %s299 = smul.u32 %s21, %s22
      %s300 = smul.u32 64, %s299
      %p301 = scmp.lt.s32.totalorder %s300, 63
      %s302 = scalar_select %p301, %s300, 63
      %s303 = smul.addr %s302, 4
      %s304 = scalar_lea.vmem %s5, %s303
      %s305 = smul.u32 %s21, %s22
      %s306 = smul.u32 64, %s305
      %s307 = smul.u32 %s21, %s22
      %s308 = smul.u32 64, %s307
      %p309 = scmp.lt.s32.totalorder %s308, 63
      %s310 = scalar_select %p309, %s308, 63
      %s311 = smul.addr %s310, 8
      %s312 = scalar_lea.vmem %s6, %s311
      %s313 = smul.u32 %s21, %s22
      %s314 = smul.u32 64, %s313
      %p316 = scmp.eq.s32.totalorder %s21, 0
      %p317 = scmp.eq.s32.totalorder %s22, 0
      %p318 = pnand %p316, %p317
      %p319 = pneg %p318
      // Predicated region
      $region45: #{residual_forward.3} parent=43 // pred_check
        _
      $region46: #{residual_forward.3} parent=43 // pred_check_branch
        %321 = sbr.rel (%p318) target = $region48
      $region47: #{residual_forward.3} parent=43 // pred_region
        %322 = vst [vmem:[#allocation2] sm:$0x1] 0.0
        %323 = vst [vmem:[#allocation3] sm:$0x1] 0.0
      $region48: #{residual_forward.3} parent=43 // pred_fallthru
        _
      // Predicated region
      $region49: #{residual_forward.3} parent=43 // pred_check
        %p324 = pneg %p316
      $region50: #{residual_forward.3} parent=43 // pred_check_branch
        %326 = sbr.rel (%p324) target = $region52
      $region51: #{residual_forward.3} parent=43 // pred_region
        %v327 = vld [vmem:[%s295] sm:$0xf]
        %v328 = vld [vmem:[%s295 + $0x4] sm:$0xf]
        %v329 = vld [vmem:[%s295 + $0x8] sm:$0xf]
        %v330 = vld [vmem:[%s295 + $0xc] sm:$0xf]
        %v331 = vld [vmem:[%s295 + $0x10] sm:$0xf]
        %v332 = vld [vmem:[%s295 + $0x14] sm:$0xf]
        %v333 = vld [vmem:[%s295 + $0x18] sm:$0xf]
        %v334 = vld [vmem:[%s295 + $0x1c] sm:$0xf]
        %v335 = vld [vmem:[%s295 + $0x20] sm:$0xf]
        %v336 = vld [vmem:[%s295 + $0x24] sm:$0xf]
        %v337 = vld [vmem:[%s295 + $0x28] sm:$0xf]
        %v338 = vld [vmem:[%s295 + $0x2c] sm:$0xf]
        %v339 = vld [vmem:[%s295 + $0x30] sm:$0xf]
        %v340 = vld [vmem:[%s295 + $0x34] sm:$0xf]
        %v341 = vld [vmem:[%s295 + $0x38] sm:$0xf]
        %v342 = vld [vmem:[%s295 + $0x3c] sm:$0xf]
        %v343 = vld [vmem:[%s295 + $0x40] sm:$0xf]
        %v344 = vld [vmem:[%s295 + $0x44] sm:$0xf]
        %v345 = vld [vmem:[%s295 + $0x48] sm:$0xf]
        %v346 = vld [vmem:[%s295 + $0x4c] sm:$0xf]
        %v347 = vld [vmem:[%s295 + $0x50] sm:$0xf]
        %v348 = vld [vmem:[%s295 + $0x54] sm:$0xf]
        %v349 = vld [vmem:[%s295 + $0x58] sm:$0xf]
        %v350 = vld [vmem:[%s295 + $0x5c] sm:$0xf]
        %v351 = vld [vmem:[%s295 + $0x60] sm:$0xf]
        %v352 = vld [vmem:[%s295 + $0x64] sm:$0xf]
        %v353 = vld [vmem:[%s295 + $0x68] sm:$0xf]
        %v354 = vld [vmem:[%s295 + $0x6c] sm:$0xf]
        %v355 = vld [vmem:[%s295 + $0x70] sm:$0xf]
        %v356 = vld [vmem:[%s295 + $0x74] sm:$0xf]
        %v357 = vld [vmem:[%s295 + $0x78] sm:$0xf]
        %v358 = vld [vmem:[%s295 + $0x7c] sm:$0xf]
        %v359 = vld [vmem:[%s295 + $0x80] sm:$0xf]
        %v360 = vld [vmem:[%s295 + $0x84] sm:$0xf]
        %v361 = vld [vmem:[%s295 + $0x88] sm:$0xf]
        %v362 = vld [vmem:[%s295 + $0x8c] sm:$0xf]
        %v363 = vld [vmem:[%s295 + $0x90] sm:$0xf]
        %v364 = vld [vmem:[%s295 + $0x94] sm:$0xf]
        %v365 = vld [vmem:[%s295 + $0x98] sm:$0xf]
        %v366 = vld [vmem:[%s295 + $0x9c] sm:$0xf]
        %v367 = vld [vmem:[%s295 + $0xa0] sm:$0xf]
        %v368 = vld [vmem:[%s295 + $0xa4] sm:$0xf]
        %v369 = vld [vmem:[%s295 + $0xa8] sm:$0xf]
        %v370 = vld [vmem:[%s295 + $0xac] sm:$0xf]
        %v371 = vld [vmem:[%s295 + $0xb0] sm:$0xf]
        %v372 = vld [vmem:[%s295 + $0xb4] sm:$0xf]
        %v373 = vld [vmem:[%s295 + $0xb8] sm:$0xf]
        %v374 = vld [vmem:[%s295 + $0xbc] sm:$0xf]
        %v375 = vld [vmem:[%s295 + $0xc0] sm:$0xf]
        %v376 = vld [vmem:[%s295 + $0xc4] sm:$0xf]
        %v377 = vld [vmem:[%s295 + $0xc8] sm:$0xf]
        %v378 = vld [vmem:[%s295 + $0xcc] sm:$0xf]
        %v379 = vld [vmem:[%s295 + $0xd0] sm:$0xf]
        %v380 = vld [vmem:[%s295 + $0xd4] sm:$0xf]
        %v381 = vld [vmem:[%s295 + $0xd8] sm:$0xf]
        %v382 = vld [vmem:[%s295 + $0xdc] sm:$0xf]
        %v383 = vld [vmem:[%s295 + $0xe0] sm:$0xf]
        %v384 = vld [vmem:[%s295 + $0xe4] sm:$0xf]
        %v385 = vld [vmem:[%s295 + $0xe8] sm:$0xf]
        %v386 = vld [vmem:[%s295 + $0xec] sm:$0xf]
        %v387 = vld [vmem:[%s295 + $0xf0] sm:$0xf]
        %v388 = vld [vmem:[%s295 + $0xf4] sm:$0xf]
        %v389 = vld [vmem:[%s295 + $0xf8] sm:$0xf]
        %v390 = vld [vmem:[%s295 + $0xfc] sm:$0xf]
        %v391 = vld [vmem:[%s1] sm:$0xf]
        %v392 = vld [vmem:[%s1 + $0x4] sm:$0xf]
        %v393 = vld [vmem:[%s1 + $0x8] sm:$0xf]
        %v394 = vld [vmem:[%s1 + $0xc] sm:$0xf]
        %v395 = vld [vmem:[%s1 + $0x10] sm:$0xf]
        %v396 = vld [vmem:[%s1 + $0x14] sm:$0xf]
        %v397 = vld [vmem:[%s1 + $0x18] sm:$0xf]
        %v398 = vld [vmem:[%s1 + $0x1c] sm:$0xf]
        %v399 = vld [vmem:[%s1 + $0x20] sm:$0xf]
        %v464 = vunpack.c.l.b16 %v327
        %v465 = vunpack.c.l.b16 %v328
        %v466 = vunpack.c.l.b16 %v329
        %v467 = vunpack.c.l.b16 %v330
        %v468 = vunpack.c.l.b16 %v331
        %v469 = vunpack.c.l.b16 %v332
        %v470 = vunpack.c.l.b16 %v333
        %v471 = vunpack.c.l.b16 %v334
        %v472 = vunpack.c.l.b16 %v335
        %v473 = vunpack.c.l.b16 %v336
        %v474 = vunpack.c.l.b16 %v337
        %v475 = vunpack.c.l.b16 %v338
        %v476 = vunpack.c.l.b16 %v339
        %v477 = vunpack.c.l.b16 %v340
        %v478 = vunpack.c.l.b16 %v341
        %v479 = vunpack.c.l.b16 %v342
        %v480 = vunpack.c.l.b16 %v343
        %v481 = vunpack.c.l.b16 %v344
        %v482 = vunpack.c.l.b16 %v345
        %v483 = vunpack.c.l.b16 %v346
        %v484 = vunpack.c.l.b16 %v347
        %v485 = vunpack.c.l.b16 %v348
        %v486 = vunpack.c.l.b16 %v349
        %v487 = vunpack.c.l.b16 %v350
        %v488 = vunpack.c.l.b16 %v351
        %v489 = vunpack.c.l.b16 %v352
        %v490 = vunpack.c.l.b16 %v353
        %v491 = vunpack.c.l.b16 %v354
        %v492 = vunpack.c.l.b16 %v355
        %v493 = vunpack.c.l.b16 %v356
        %v494 = vunpack.c.l.b16 %v357
        %v495 = vunpack.c.l.b16 %v358
        %v496 = vunpack.c.l.b16 %v359
        %v497 = vunpack.c.l.b16 %v360
        %v498 = vunpack.c.l.b16 %v361
        %v499 = vunpack.c.l.b16 %v362
        %v500 = vunpack.c.l.b16 %v363
        %v501 = vunpack.c.l.b16 %v364
        %v502 = vunpack.c.l.b16 %v365
        %v503 = vunpack.c.l.b16 %v366
        %v504 = vunpack.c.l.b16 %v367
        %v505 = vunpack.c.l.b16 %v368
        %v506 = vunpack.c.l.b16 %v369
        %v507 = vunpack.c.l.b16 %v370
        %v508 = vunpack.c.l.b16 %v371
        %v509 = vunpack.c.l.b16 %v372
        %v510 = vunpack.c.l.b16 %v373
        %v511 = vunpack.c.l.b16 %v374
        %v512 = vunpack.c.l.b16 %v375
        %v513 = vunpack.c.l.b16 %v376
        %v514 = vunpack.c.l.b16 %v377
        %v515 = vunpack.c.l.b16 %v378
        %v516 = vunpack.c.l.b16 %v379
        %v517 = vunpack.c.l.b16 %v380
        %v518 = vunpack.c.l.b16 %v381
        %v519 = vunpack.c.l.b16 %v382
        %v520 = vunpack.c.l.b16 %v383
        %v521 = vunpack.c.l.b16 %v384
        %v522 = vunpack.c.l.b16 %v385
        %v523 = vunpack.c.l.b16 %v386
        %v524 = vunpack.c.l.b16 %v387
        %v525 = vunpack.c.l.b16 %v388
        %v526 = vunpack.c.l.b16 %v389
        %v527 = vunpack.c.l.b16 %v390
        %v528 = vpack.c.b16 %v465, %v464
        %v529 = vpack.c.b16 %v467, %v466
        %v530 = vpack.c.b16 %v469, %v468
        %v531 = vpack.c.b16 %v471, %v470
        %v532 = vpack.c.b16 %v473, %v472
        %v533 = vpack.c.b16 %v475, %v474
        %v534 = vpack.c.b16 %v477, %v476
        %v535 = vpack.c.b16 %v479, %v478
        %v536 = vpack.c.b16 %v481, %v480
        %v537 = vpack.c.b16 %v483, %v482
        %v538 = vpack.c.b16 %v485, %v484
        %v539 = vpack.c.b16 %v487, %v486
        %v540 = vpack.c.b16 %v489, %v488
        %v541 = vpack.c.b16 %v491, %v490
        %v542 = vpack.c.b16 %v493, %v492
        %v543 = vpack.c.b16 %v495, %v494
        %v544 = vpack.c.b16 %v497, %v496
        %v545 = vpack.c.b16 %v499, %v498
        %v546 = vpack.c.b16 %v501, %v500
        %v547 = vpack.c.b16 %v503, %v502
        %v548 = vpack.c.b16 %v505, %v504
        %v549 = vpack.c.b16 %v507, %v506
        %v550 = vpack.c.b16 %v509, %v508
        %v551 = vpack.c.b16 %v511, %v510
        %v552 = vpack.c.b16 %v513, %v512
        %v553 = vpack.c.b16 %v515, %v514
        %v554 = vpack.c.b16 %v517, %v516
        %v555 = vpack.c.b16 %v519, %v518
        %v556 = vpack.c.b16 %v521, %v520
        %v557 = vpack.c.b16 %v523, %v522
        %v558 = vpack.c.b16 %v525, %v524
        %v559 = vpack.c.b16 %v527, %v526
        %v569 = vunpack.c.l.b16 %v391
        %v570 = vunpack.c.l.b16 %v392
        %v571 = vunpack.c.l.b16 %v393
        %v572 = vunpack.c.l.b16 %v394
        %v573 = vunpack.c.l.b16 %v395
        %v574 = vunpack.c.l.b16 %v396
        %v575 = vunpack.c.l.b16 %v397
        %v576 = vunpack.c.l.b16 %v398
        %v577 = vunpack.c.l.b16 %v399
        %v578 = vpack.c.b16 %v570, %v569
        %v579 = vpack.c.b16 %v572, %v571
        %v580 = vpack.c.b16 %v574, %v573
        %v581 = vpack.c.b16 %v576, %v575
        %v582 = vpack.c.b16 %v577, %v577
        %vm587 = vcmask 588800
        %v589 = vsel %vm587, %v528, 0
        %v592 = vsel %vm587, %v529, 0
        %v595 = vsel %vm587, %v530, 0
        %v598 = vsel %vm587, %v531, 0
        %v601 = vsel %vm587, %v532, 0
        %v604 = vsel %vm587, %v533, 0
        %v607 = vsel %vm587, %v534, 0
        %v610 = vsel %vm587, %v535, 0
        %v613 = vsel %vm587, %v536, 0
        %v616 = vsel %vm587, %v537, 0
        %v619 = vsel %vm587, %v538, 0
        %v622 = vsel %vm587, %v539, 0
        %v625 = vsel %vm587, %v540, 0
        %v628 = vsel %vm587, %v541, 0
        %v631 = vsel %vm587, %v542, 0
        %v634 = vsel %vm587, %v543, 0
        %v637 = vsel %vm587, %v544, 0
        %v640 = vsel %vm587, %v545, 0
        %v643 = vsel %vm587, %v546, 0
        %v646 = vsel %vm587, %v547, 0
        %v649 = vsel %vm587, %v548, 0
        %v652 = vsel %vm587, %v549, 0
        %v655 = vsel %vm587, %v550, 0
        %v658 = vsel %vm587, %v551, 0
        %v661 = vsel %vm587, %v552, 0
        %v664 = vsel %vm587, %v553, 0
        %v667 = vsel %vm587, %v554, 0
        %v670 = vsel %vm587, %v555, 0
        %v673 = vsel %vm587, %v556, 0
        %v676 = vsel %vm587, %v557, 0
        %v679 = vsel %vm587, %v558, 0
        %v682 = vsel %vm587, %v559, 0
        %vm684 = vcmask 1043456
        %v686 = vsel %vm684, %v582, 0
        %688 = vmatpush.bf16.msra.mxu0 0
        %689 = vmatpush.bf16.msra.mxu0 0
        %690 = vmatpush.bf16.msra.mxu0 0
        %691 = vmatpush.bf16.msra.mxu0 %v686
        %692 = vmatpush.bf16.msra.mxu0 %v581
        %693 = vmatpush.bf16.msra.mxu0 %v580
        %694 = vmatpush.bf16.msra.mxu0 %v579
        %695 = vmatpush.bf16.msra.mxu0 %v578
        %696 = vmatmul.bf16.gmra.mxu0 %v589
        %v697 = vpop.f32.mrf.mxu0
        %v698 = vadd.f32 0.0, %v697
        %v699 = vpop.f32.mrf.mxu0
        %v700 = vadd.f32 0.0, %v699
        %701 = vmatmul.bf16.gmra.mxu0 %v592
        %v702 = vpop.f32.mrf.mxu0
        %v703 = vadd.f32 0.0, %v702
        %v704 = vpop.f32.mrf.mxu0
        %v705 = vadd.f32 0.0, %v704
        %706 = vmatmul.bf16.gmra.mxu0 %v595
        %v707 = vpop.f32.mrf.mxu0
        %v708 = vadd.f32 0.0, %v707
        %v709 = vpop.f32.mrf.mxu0
        %v710 = vadd.f32 0.0, %v709
        %711 = vmatmul.bf16.gmra.mxu0 %v598
        %v712 = vpop.f32.mrf.mxu0
        %v713 = vadd.f32 0.0, %v712
        %v714 = vpop.f32.mrf.mxu0
        %v715 = vadd.f32 0.0, %v714
        %716 = vmatmul.bf16.gmra.mxu0 %v601
        %v717 = vpop.f32.mrf.mxu0
        %v718 = vadd.f32 0.0, %v717
        %v719 = vpop.f32.mrf.mxu0
        %v720 = vadd.f32 0.0, %v719
        %721 = vmatmul.bf16.gmra.mxu0 %v604
        %v722 = vpop.f32.mrf.mxu0
        %v723 = vadd.f32 0.0, %v722
        %v724 = vpop.f32.mrf.mxu0
        %v725 = vadd.f32 0.0, %v724
        %726 = vmatmul.bf16.gmra.mxu0 %v607
        %v727 = vpop.f32.mrf.mxu0
        %v728 = vadd.f32 0.0, %v727
        %v729 = vpop.f32.mrf.mxu0
        %v730 = vadd.f32 0.0, %v729
        %731 = vmatmul.bf16.gmra.mxu0 %v610
        %v732 = vpop.f32.mrf.mxu0
        %v733 = vadd.f32 0.0, %v732
        %v734 = vpop.f32.mrf.mxu0
        %v735 = vadd.f32 0.0, %v734
        %736 = vmatmul.bf16.gmra.mxu0 %v613
        %v737 = vpop.f32.mrf.mxu0
        %v738 = vadd.f32 0.0, %v737
        %v739 = vpop.f32.mrf.mxu0
        %v740 = vadd.f32 0.0, %v739
        %741 = vmatmul.bf16.gmra.mxu0 %v616
        %v742 = vpop.f32.mrf.mxu0
        %v743 = vadd.f32 0.0, %v742
        %v744 = vpop.f32.mrf.mxu0
        %v745 = vadd.f32 0.0, %v744
        %746 = vmatmul.bf16.gmra.mxu0 %v619
        %v747 = vpop.f32.mrf.mxu0
        %v748 = vadd.f32 0.0, %v747
        %v749 = vpop.f32.mrf.mxu0
        %v750 = vadd.f32 0.0, %v749
        %751 = vmatmul.bf16.gmra.mxu0 %v622
        %v752 = vpop.f32.mrf.mxu0
        %v753 = vadd.f32 0.0, %v752
        %v754 = vpop.f32.mrf.mxu0
        %v755 = vadd.f32 0.0, %v754
        %756 = vmatmul.bf16.gmra.mxu0 %v625
        %v757 = vpop.f32.mrf.mxu0
        %v758 = vadd.f32 0.0, %v757
        %v759 = vpop.f32.mrf.mxu0
        %v760 = vadd.f32 0.0, %v759
        %761 = vmatmul.bf16.gmra.mxu0 %v628
        %v762 = vpop.f32.mrf.mxu0
        %v763 = vadd.f32 0.0, %v762
        %v764 = vpop.f32.mrf.mxu0
        %v765 = vadd.f32 0.0, %v764
        %766 = vmatmul.bf16.gmra.mxu0 %v631
        %v767 = vpop.f32.mrf.mxu0
        %v768 = vadd.f32 0.0, %v767
        %v769 = vpop.f32.mrf.mxu0
        %v770 = vadd.f32 0.0, %v769
        %771 = vmatmul.bf16.gmra.mxu0 %v634
        %v772 = vpop.f32.mrf.mxu0
        %v773 = vadd.f32 0.0, %v772
        %v774 = vpop.f32.mrf.mxu0
        %v775 = vadd.f32 0.0, %v774
        %776 = vmatmul.bf16.gmra.mxu0 %v637
        %v777 = vpop.f32.mrf.mxu0
        %v778 = vadd.f32 0.0, %v777
        %v779 = vpop.f32.mrf.mxu0
        %v780 = vadd.f32 0.0, %v779
        %781 = vmatmul.bf16.gmra.mxu0 %v640
        %v782 = vpop.f32.mrf.mxu0
        %v783 = vadd.f32 0.0, %v782
        %v784 = vpop.f32.mrf.mxu0
        %v785 = vadd.f32 0.0, %v784
        %786 = vmatmul.bf16.gmra.mxu0 %v643
        %v787 = vpop.f32.mrf.mxu0
        %v788 = vadd.f32 0.0, %v787
        %v789 = vpop.f32.mrf.mxu0
        %v790 = vadd.f32 0.0, %v789
        %791 = vmatmul.bf16.gmra.mxu0 %v646
        %v792 = vpop.f32.mrf.mxu0
        %v793 = vadd.f32 0.0, %v792
        %v794 = vpop.f32.mrf.mxu0
        %v795 = vadd.f32 0.0, %v794
        %796 = vmatmul.bf16.gmra.mxu0 %v649
        %v797 = vpop.f32.mrf.mxu0
        %v798 = vadd.f32 0.0, %v797
        %v799 = vpop.f32.mrf.mxu0
        %v800 = vadd.f32 0.0, %v799
        %801 = vmatmul.bf16.gmra.mxu0 %v652
        %v802 = vpop.f32.mrf.mxu0
        %v803 = vadd.f32 0.0, %v802
        %v804 = vpop.f32.mrf.mxu0
        %v805 = vadd.f32 0.0, %v804
        %806 = vmatmul.bf16.gmra.mxu0 %v655
        %v807 = vpop.f32.mrf.mxu0
        %v808 = vadd.f32 0.0, %v807
        %v809 = vpop.f32.mrf.mxu0
        %v810 = vadd.f32 0.0, %v809
        %811 = vmatmul.bf16.gmra.mxu0 %v658
        %v812 = vpop.f32.mrf.mxu0
        %v813 = vadd.f32 0.0, %v812
        %v814 = vpop.f32.mrf.mxu0
        %v815 = vadd.f32 0.0, %v814
        %816 = vmatmul.bf16.gmra.mxu0 %v661
        %v817 = vpop.f32.mrf.mxu0
        %v818 = vadd.f32 0.0, %v817
        %v819 = vpop.f32.mrf.mxu0
        %v820 = vadd.f32 0.0, %v819
        %821 = vmatmul.bf16.gmra.mxu0 %v664
        %v822 = vpop.f32.mrf.mxu0
        %v823 = vadd.f32 0.0, %v822
        %v824 = vpop.f32.mrf.mxu0
        %v825 = vadd.f32 0.0, %v824
        %826 = vmatmul.bf16.gmra.mxu0 %v667
        %v827 = vpop.f32.mrf.mxu0
        %v828 = vadd.f32 0.0, %v827
        %v829 = vpop.f32.mrf.mxu0
        %v830 = vadd.f32 0.0, %v829
        %831 = vmatmul.bf16.gmra.mxu0 %v670
        %v832 = vpop.f32.mrf.mxu0
        %v833 = vadd.f32 0.0, %v832
        %v834 = vpop.f32.mrf.mxu0
        %v835 = vadd.f32 0.0, %v834
        %836 = vmatmul.bf16.gmra.mxu0 %v673
        %v837 = vpop.f32.mrf.mxu0
        %v838 = vadd.f32 0.0, %v837
        %v839 = vpop.f32.mrf.mxu0
        %v840 = vadd.f32 0.0, %v839
        %841 = vmatmul.bf16.gmra.mxu0 %v676
        %v842 = vpop.f32.mrf.mxu0
        %v843 = vadd.f32 0.0, %v842
        %v844 = vpop.f32.mrf.mxu0
        %v845 = vadd.f32 0.0, %v844
        %846 = vmatmul.bf16.gmra.mxu0 %v679
        %v847 = vpop.f32.mrf.mxu0
        %v848 = vadd.f32 0.0, %v847
        %v849 = vpop.f32.mrf.mxu0
        %v850 = vadd.f32 0.0, %v849
        %851 = vmatmul.bf16.gmra.mxu0 %v682
        %v852 = vpop.f32.mrf.mxu0
        %v853 = vadd.f32 0.0, %v852
        %v854 = vpop.f32.mrf.mxu0
        %v855 = vadd.f32 0.0, %v854
        %856 = vdwg.mxu0
        %s857 = smul.u32 %s22, 512
        %v858 = vpack.c.bf16 %v698, %v698
        %v859 = vpack.c.bf16 %v700, %v700
        %v860 = vpack.c.bf16 %v703, %v703
        %v861 = vpack.c.bf16 %v705, %v705
        %v862 = vpack.c.bf16 %v708, %v708
        %v863 = vpack.c.bf16 %v710, %v710
        %v864 = vpack.c.bf16 %v713, %v713
        %v865 = vpack.c.bf16 %v715, %v715
        %v866 = vpack.c.bf16 %v718, %v718
        %v867 = vpack.c.bf16 %v720, %v720
        %v868 = vpack.c.bf16 %v723, %v723
        %v869 = vpack.c.bf16 %v725, %v725
        %v870 = vpack.c.bf16 %v728, %v728
        %v871 = vpack.c.bf16 %v730, %v730
        %v872 = vpack.c.bf16 %v733, %v733
        %v873 = vpack.c.bf16 %v735, %v735
        %v874 = vpack.c.bf16 %v738, %v738
        %v875 = vpack.c.bf16 %v740, %v740
        %v876 = vpack.c.bf16 %v743, %v743
        %v877 = vpack.c.bf16 %v745, %v745
        %v878 = vpack.c.bf16 %v748, %v748
        %v879 = vpack.c.bf16 %v750, %v750
        %v880 = vpack.c.bf16 %v753, %v753
        %v881 = vpack.c.bf16 %v755, %v755
        %v882 = vpack.c.bf16 %v758, %v758
        %v883 = vpack.c.bf16 %v760, %v760
        %v884 = vpack.c.bf16 %v763, %v763
        %v885 = vpack.c.bf16 %v765, %v765
        %v886 = vpack.c.bf16 %v768, %v768
        %v887 = vpack.c.bf16 %v770, %v770
        %v888 = vpack.c.bf16 %v773, %v773
        %v889 = vpack.c.bf16 %v775, %v775
        %v890 = vpack.c.bf16 %v778, %v778
        %v891 = vpack.c.bf16 %v780, %v780
        %v892 = vpack.c.bf16 %v783, %v783
        %v893 = vpack.c.bf16 %v785, %v785
        %v894 = vpack.c.bf16 %v788, %v788
        %v895 = vpack.c.bf16 %v790, %v790
        %v896 = vpack.c.bf16 %v793, %v793
        %v897 = vpack.c.bf16 %v795, %v795
        %v898 = vpack.c.bf16 %v798, %v798
        %v899 = vpack.c.bf16 %v800, %v800
        %v900 = vpack.c.bf16 %v803, %v803
        %v901 = vpack.c.bf16 %v805, %v805
        %v902 = vpack.c.bf16 %v808, %v808
        %v903 = vpack.c.bf16 %v810, %v810
        %v904 = vpack.c.bf16 %v813, %v813
        %v905 = vpack.c.bf16 %v815, %v815
        %v906 = vpack.c.bf16 %v818, %v818
        %v907 = vpack.c.bf16 %v820, %v820
        %v908 = vpack.c.bf16 %v823, %v823
        %v909 = vpack.c.bf16 %v825, %v825
        %v910 = vpack.c.bf16 %v828, %v828
        %v911 = vpack.c.bf16 %v830, %v830
        %v912 = vpack.c.bf16 %v833, %v833
        %v913 = vpack.c.bf16 %v835, %v835
        %v914 = vpack.c.bf16 %v838, %v838
        %v915 = vpack.c.bf16 %v840, %v840
        %v916 = vpack.c.bf16 %v843, %v843
        %v917 = vpack.c.bf16 %v845, %v845
        %v918 = vpack.c.bf16 %v848, %v848
        %v919 = vpack.c.bf16 %v850, %v850
        %v920 = vpack.c.bf16 %v853, %v853
        %v921 = vpack.c.bf16 %v855, %v855
        %s922 = sshra.s32 %s857, 3
        %s923 = sand.u32 %s857, 7
        %s924 = smul.addr %s922, 4
        %s925 = scalar_lea.vmem [#allocation4], %s924
        %926 = vst [vmem:[%s925] sm:$0xf] %v858
        %927 = vst [vmem:[%s925 + $0x4] sm:$0xf] %v859
        %928 = vst [vmem:[%s925 + $0x8] sm:$0xf] %v860
        %929 = vst [vmem:[%s925 + $0xc] sm:$0xf] %v861
        %930 = vst [vmem:[%s925 + $0x10] sm:$0xf] %v862
        %931 = vst [vmem:[%s925 + $0x14] sm:$0xf] %v863
        %932 = vst [vmem:[%s925 + $0x18] sm:$0xf] %v864
        %933 = vst [vmem:[%s925 + $0x1c] sm:$0xf] %v865
        %934 = vst [vmem:[%s925 + $0x20] sm:$0xf] %v866
        %935 = vst [vmem:[%s925 + $0x24] sm:$0xf] %v867
        %936 = vst [vmem:[%s925 + $0x28] sm:$0xf] %v868
        %937 = vst [vmem:[%s925 + $0x2c] sm:$0xf] %v869
        %938 = vst [vmem:[%s925 + $0x30] sm:$0xf] %v870
        %939 = vst [vmem:[%s925 + $0x34] sm:$0xf] %v871
        %940 = vst [vmem:[%s925 + $0x38] sm:$0xf] %v872
        %941 = vst [vmem:[%s925 + $0x3c] sm:$0xf] %v873
        %942 = vst [vmem:[%s925 + $0x40] sm:$0xf] %v874
        %943 = vst [vmem:[%s925 + $0x44] sm:$0xf] %v875
        %944 = vst [vmem:[%s925 + $0x48] sm:$0xf] %v876
        %945 = vst [vmem:[%s925 + $0x4c] sm:$0xf] %v877
        %946 = vst [vmem:[%s925 + $0x50] sm:$0xf] %v878
        %947 = vst [vmem:[%s925 + $0x54] sm:$0xf] %v879
        %948 = vst [vmem:[%s925 + $0x58] sm:$0xf] %v880
        %949 = vst [vmem:[%s925 + $0x5c] sm:$0xf] %v881
        %950 = vst [vmem:[%s925 + $0x60] sm:$0xf] %v882
        %951 = vst [vmem:[%s925 + $0x64] sm:$0xf] %v883
        %952 = vst [vmem:[%s925 + $0x68] sm:$0xf] %v884
        %953 = vst [vmem:[%s925 + $0x6c] sm:$0xf] %v885
        %954 = vst [vmem:[%s925 + $0x70] sm:$0xf] %v886
        %955 = vst [vmem:[%s925 + $0x74] sm:$0xf] %v887
        %956 = vst [vmem:[%s925 + $0x78] sm:$0xf] %v888
        %957 = vst [vmem:[%s925 + $0x7c] sm:$0xf] %v889
        %958 = vst [vmem:[%s925 + $0x80] sm:$0xf] %v890
        %959 = vst [vmem:[%s925 + $0x84] sm:$0xf] %v891
        %960 = vst [vmem:[%s925 + $0x88] sm:$0xf] %v892
        %961 = vst [vmem:[%s925 + $0x8c] sm:$0xf] %v893
        %962 = vst [vmem:[%s925 + $0x90] sm:$0xf] %v894
        %963 = vst [vmem:[%s925 + $0x94] sm:$0xf] %v895
        %964 = vst [vmem:[%s925 + $0x98] sm:$0xf] %v896
        %965 = vst [vmem:[%s925 + $0x9c] sm:$0xf] %v897
        %966 = vst [vmem:[%s925 + $0xa0] sm:$0xf] %v898
        %967 = vst [vmem:[%s925 + $0xa4] sm:$0xf] %v899
        %968 = vst [vmem:[%s925 + $0xa8] sm:$0xf] %v900
        %969 = vst [vmem:[%s925 + $0xac] sm:$0xf] %v901
        %970 = vst [vmem:[%s925 + $0xb0] sm:$0xf] %v902
        %971 = vst [vmem:[%s925 + $0xb4] sm:$0xf] %v903
        %972 = vst [vmem:[%s925 + $0xb8] sm:$0xf] %v904
        %973 = vst [vmem:[%s925 + $0xbc] sm:$0xf] %v905
        %974 = vst [vmem:[%s925 + $0xc0] sm:$0xf] %v906
        %975 = vst [vmem:[%s925 + $0xc4] sm:$0xf] %v907
        %976 = vst [vmem:[%s925 + $0xc8] sm:$0xf] %v908
        %977 = vst [vmem:[%s925 + $0xcc] sm:$0xf] %v909
        %978 = vst [vmem:[%s925 + $0xd0] sm:$0xf] %v910
        %979 = vst [vmem:[%s925 + $0xd4] sm:$0xf] %v911
        %980 = vst [vmem:[%s925 + $0xd8] sm:$0xf] %v912
        %981 = vst [vmem:[%s925 + $0xdc] sm:$0xf] %v913
        %982 = vst [vmem:[%s925 + $0xe0] sm:$0xf] %v914
        %983 = vst [vmem:[%s925 + $0xe4] sm:$0xf] %v915
        %984 = vst [vmem:[%s925 + $0xe8] sm:$0xf] %v916
        %985 = vst [vmem:[%s925 + $0xec] sm:$0xf] %v917
        %986 = vst [vmem:[%s925 + $0xf0] sm:$0xf] %v918
        %987 = vst [vmem:[%s925 + $0xf4] sm:$0xf] %v919
        %988 = vst [vmem:[%s925 + $0xf8] sm:$0xf] %v920
        %989 = vst [vmem:[%s925 + $0xfc] sm:$0xf] %v921
        %v990 = vld [vmem:[#allocation2] sm:$0x1]
        %v991 = vadd.f32 %v698, %v700
        %v992 = vadd.f32 %v991, %v703
        %v993 = vadd.f32 %v992, %v705
        %v994 = vadd.f32 %v993, %v708
        %v995 = vadd.f32 %v994, %v710
        %v996 = vadd.f32 %v995, %v713
        %v997 = vadd.f32 %v996, %v715
        %v998 = vadd.f32 %v997, %v718
        %v999 = vadd.f32 %v998, %v720
        %v1000 = vadd.f32 %v999, %v723
        %v1001 = vadd.f32 %v1000, %v725
        %v1002 = vadd.f32 %v1001, %v728
        %v1003 = vadd.f32 %v1002, %v730
        %v1004 = vadd.f32 %v1003, %v733
        %v1005 = vadd.f32 %v1004, %v735
        %v1006 = vadd.f32 %v1005, %v738
        %v1007 = vadd.f32 %v1006, %v740
        %v1008 = vadd.f32 %v1007, %v743
        %v1009 = vadd.f32 %v1008, %v745
        %v1010 = vadd.f32 %v1009, %v748
        %v1011 = vadd.f32 %v1010, %v750
        %v1012 = vadd.f32 %v1011, %v753
        %v1013 = vadd.f32 %v1012, %v755
        %v1014 = vadd.f32 %v1013, %v758
        %v1015 = vadd.f32 %v1014, %v760
        %v1016 = vadd.f32 %v1015, %v763
        %v1017 = vadd.f32 %v1016, %v765
        %v1018 = vadd.f32 %v1017, %v768
        %v1019 = vadd.f32 %v1018, %v770
        %v1020 = vadd.f32 %v1019, %v773
        %v1021 = vadd.f32 %v1020, %v775
        %v1022 = vadd.f32 %v1021, %v778
        %v1023 = vadd.f32 %v1022, %v780
        %v1024 = vadd.f32 %v1023, %v783
        %v1025 = vadd.f32 %v1024, %v785
        %v1026 = vadd.f32 %v1025, %v788
        %v1027 = vadd.f32 %v1026, %v790
        %v1028 = vadd.f32 %v1027, %v793
        %v1029 = vadd.f32 %v1028, %v795
        %v1030 = vadd.f32 %v1029, %v798
        %v1031 = vadd.f32 %v1030, %v800
        %v1032 = vadd.f32 %v1031, %v803
        %v1033 = vadd.f32 %v1032, %v805
        %v1034 = vadd.f32 %v1033, %v808
        %v1035 = vadd.f32 %v1034, %v810
        %v1036 = vadd.f32 %v1035, %v813
        %v1037 = vadd.f32 %v1036, %v815
        %v1038 = vadd.f32 %v1037, %v818
        %v1039 = vadd.f32 %v1038, %v820
        %v1040 = vadd.f32 %v1039, %v823
        %v1041 = vadd.f32 %v1040, %v825
        %v1042 = vadd.f32 %v1041, %v828
        %v1043 = vadd.f32 %v1042, %v830
        %v1044 = vadd.f32 %v1043, %v833
        %v1045 = vadd.f32 %v1044, %v835
        %v1046 = vadd.f32 %v1045, %v838
        %v1047 = vadd.f32 %v1046, %v840
        %v1048 = vadd.f32 %v1047, %v843
        %v1049 = vadd.f32 %v1048, %v845
        %v1050 = vadd.f32 %v1049, %v848
        %v1051 = vadd.f32 %v1050, %v850
        %v1052 = vadd.f32 %v1051, %v853
        %v1053 = vadd.f32 %v1052, %v855
        %v1054 = vrot.slane %v1053, 4
        %v1055 = vadd.f32 %v1053, %v1054
        %v1056 = vrot.slane %v1055, 2
        %v1057 = vadd.f32 %v1055, %v1056
        %v1058 = vrot.slane %v1057, 1
        %v1059 = vadd.f32 %v1057, %v1058
        %v1060 = vadd.f32 %v990, %v1059
        %1061 = vst [vmem:[#allocation2] sm:$0x1] %v1060
        %v1062 = vld [vmem:[#allocation3] sm:$0x1]
        %v1063 = vmul.f32 %v698, %v698
        %v1064 = vmul.f32 %v700, %v700
        %v1065 = vmul.f32 %v703, %v703
        %v1066 = vmul.f32 %v705, %v705
        %v1067 = vmul.f32 %v708, %v708
        %v1068 = vmul.f32 %v710, %v710
        %v1069 = vmul.f32 %v713, %v713
        %v1070 = vmul.f32 %v715, %v715
        %v1071 = vmul.f32 %v718, %v718
        %v1072 = vmul.f32 %v720, %v720
        %v1073 = vmul.f32 %v723, %v723
        %v1074 = vmul.f32 %v725, %v725
        %v1075 = vmul.f32 %v728, %v728
        %v1076 = vmul.f32 %v730, %v730
        %v1077 = vmul.f32 %v733, %v733
        %v1078 = vmul.f32 %v735, %v735
        %v1079 = vmul.f32 %v738, %v738
        %v1080 = vmul.f32 %v740, %v740
        %v1081 = vmul.f32 %v743, %v743
        %v1082 = vmul.f32 %v745, %v745
        %v1083 = vmul.f32 %v748, %v748
        %v1084 = vmul.f32 %v750, %v750
        %v1085 = vmul.f32 %v753, %v753
        %v1086 = vmul.f32 %v755, %v755
        %v1087 = vmul.f32 %v758, %v758
        %v1088 = vmul.f32 %v760, %v760
        %v1089 = vmul.f32 %v763, %v763
        %v1090 = vmul.f32 %v765, %v765
        %v1091 = vmul.f32 %v768, %v768
        %v1092 = vmul.f32 %v770, %v770
        %v1093 = vmul.f32 %v773, %v773
        %v1094 = vmul.f32 %v775, %v775
        %v1095 = vmul.f32 %v778, %v778
        %v1096 = vmul.f32 %v780, %v780
        %v1097 = vmul.f32 %v783, %v783
        %v1098 = vmul.f32 %v785, %v785
        %v1099 = vmul.f32 %v788, %v788
        %v1100 = vmul.f32 %v790, %v790
        %v1101 = vmul.f32 %v793, %v793
        %v1102 = vmul.f32 %v795, %v795
        %v1103 = vmul.f32 %v798, %v798
        %v1104 = vmul.f32 %v800, %v800
        %v1105 = vmul.f32 %v803, %v803
        %v1106 = vmul.f32 %v805, %v805
        %v1107 = vmul.f32 %v808, %v808
        %v1108 = vmul.f32 %v810, %v810
        %v1109 = vmul.f32 %v813, %v813
        %v1110 = vmul.f32 %v815, %v815
        %v1111 = vmul.f32 %v818, %v818
        %v1112 = vmul.f32 %v820, %v820
        %v1113 = vmul.f32 %v823, %v823
        %v1114 = vmul.f32 %v825, %v825
        %v1115 = vmul.f32 %v828, %v828
        %v1116 = vmul.f32 %v830, %v830
        %v1117 = vmul.f32 %v833, %v833
        %v1118 = vmul.f32 %v835, %v835
        %v1119 = vmul.f32 %v838, %v838
        %v1120 = vmul.f32 %v840, %v840
        %v1121 = vmul.f32 %v843, %v843
        %v1122 = vmul.f32 %v845, %v845
        %v1123 = vmul.f32 %v848, %v848
        %v1124 = vmul.f32 %v850, %v850
        %v1125 = vmul.f32 %v853, %v853
        %v1126 = vmul.f32 %v855, %v855
        %v1127 = vadd.f32 %v1063, %v1064
        %v1128 = vadd.f32 %v1127, %v1065
        %v1129 = vadd.f32 %v1128, %v1066
        %v1130 = vadd.f32 %v1129, %v1067
        %v1131 = vadd.f32 %v1130, %v1068
        %v1132 = vadd.f32 %v1131, %v1069
        %v1133 = vadd.f32 %v1132, %v1070
        %v1134 = vadd.f32 %v1133, %v1071
        %v1135 = vadd.f32 %v1134, %v1072
        %v1136 = vadd.f32 %v1135, %v1073
        %v1137 = vadd.f32 %v1136, %v1074
        %v1138 = vadd.f32 %v1137, %v1075
        %v1139 = vadd.f32 %v1138, %v1076
        %v1140 = vadd.f32 %v1139, %v1077
        %v1141 = vadd.f32 %v1140, %v1078
        %v1142 = vadd.f32 %v1141, %v1079
        %v1143 = vadd.f32 %v1142, %v1080
        %v1144 = vadd.f32 %v1143, %v1081
        %v1145 = vadd.f32 %v1144, %v1082
        %v1146 = vadd.f32 %v1145, %v1083
        %v1147 = vadd.f32 %v1146, %v1084
        %v1148 = vadd.f32 %v1147, %v1085
        %v1149 = vadd.f32 %v1148, %v1086
        %v1150 = vadd.f32 %v1149, %v1087
        %v1151 = vadd.f32 %v1150, %v1088
        %v1152 = vadd.f32 %v1151, %v1089
        %v1153 = vadd.f32 %v1152, %v1090
        %v1154 = vadd.f32 %v1153, %v1091
        %v1155 = vadd.f32 %v1154, %v1092
        %v1156 = vadd.f32 %v1155, %v1093
        %v1157 = vadd.f32 %v1156, %v1094
        %v1158 = vadd.f32 %v1157, %v1095
        %v1159 = vadd.f32 %v1158, %v1096
        %v1160 = vadd.f32 %v1159, %v1097
        %v1161 = vadd.f32 %v1160, %v1098
        %v1162 = vadd.f32 %v1161, %v1099
        %v1163 = vadd.f32 %v1162, %v1100
        %v1164 = vadd.f32 %v1163, %v1101
        %v1165 = vadd.f32 %v1164, %v1102
        %v1166 = vadd.f32 %v1165, %v1103
        %v1167 = vadd.f32 %v1166, %v1104
        %v1168 = vadd.f32 %v1167, %v1105
        %v1169 = vadd.f32 %v1168, %v1106
        %v1170 = vadd.f32 %v1169, %v1107
        %v1171 = vadd.f32 %v1170, %v1108
        %v1172 = vadd.f32 %v1171, %v1109
        %v1173 = vadd.f32 %v1172, %v1110
        %v1174 = vadd.f32 %v1173, %v1111
        %v1175 = vadd.f32 %v1174, %v1112
        %v1176 = vadd.f32 %v1175, %v1113
        %v1177 = vadd.f32 %v1176, %v1114
        %v1178 = vadd.f32 %v1177, %v1115
        %v1179 = vadd.f32 %v1178, %v1116
        %v1180 = vadd.f32 %v1179, %v1117
        %v1181 = vadd.f32 %v1180, %v1118
        %v1182 = vadd.f32 %v1181, %v1119
        %v1183 = vadd.f32 %v1182, %v1120
        %v1184 = vadd.f32 %v1183, %v1121
        %v1185 = vadd.f32 %v1184, %v1122
        %v1186 = vadd.f32 %v1185, %v1123
        %v1187 = vadd.f32 %v1186, %v1124
        %v1188 = vadd.f32 %v1187, %v1125
        %v1189 = vadd.f32 %v1188, %v1126
        %v1190 = vrot.slane %v1189, 4
        %v1191 = vadd.f32 %v1189, %v1190
        %v1192 = vrot.slane %v1191, 2
        %v1193 = vadd.f32 %v1191, %v1192
        %v1194 = vrot.slane %v1193, 1
        %v1195 = vadd.f32 %v1193, %v1194
        %v1196 = vadd.f32 %v1062, %v1195
        %1197 = vst [vmem:[#allocation3] sm:$0x1] %v1196
      $region52: #{residual_forward.3} parent=43 // pred_fallthru
        _
      %p1198 = scmp.eq.s32.totalorder %s21, 1
      // Predicated region
      $region53: #{residual_forward.3} parent=43 // pred_check
        %p1199 = pneg %p1198
      $region54: #{residual_forward.3} parent=43 // pred_check_branch
        %1201 = sbr.rel (%p1199) target = $region56
      $region55: #{residual_forward.3} parent=43 // pred_region
        %s1202 = smul.u32 %s22, 512
        %s1203 = sshra.s32 %s1202, 3
        %s1204 = sand.u32 %s1202, 7
        %s1205 = smul.addr %s1203, 4
        %s1206 = scalar_lea.vmem [#allocation4], %s1205
        %v1207 = vld [vmem:[%s1206] sm:$0xf]
        %v1208 = vld [vmem:[%s1206 + $0x4] sm:$0xf]
        %v1209 = vld [vmem:[%s1206 + $0x8] sm:$0xf]
        %v1210 = vld [vmem:[%s1206 + $0xc] sm:$0xf]
        %v1211 = vld [vmem:[%s1206 + $0x10] sm:$0xf]
        %v1212 = vld [vmem:[%s1206 + $0x14] sm:$0xf]
        %v1213 = vld [vmem:[%s1206 + $0x18] sm:$0xf]
        %v1214 = vld [vmem:[%s1206 + $0x1c] sm:$0xf]
        %v1215 = vld [vmem:[%s1206 + $0x20] sm:$0xf]
        %v1216 = vld [vmem:[%s1206 + $0x24] sm:$0xf]
        %v1217 = vld [vmem:[%s1206 + $0x28] sm:$0xf]
        %v1218 = vld [vmem:[%s1206 + $0x2c] sm:$0xf]
        %v1219 = vld [vmem:[%s1206 + $0x30] sm:$0xf]
        %v1220 = vld [vmem:[%s1206 + $0x34] sm:$0xf]
        %v1221 = vld [vmem:[%s1206 + $0x38] sm:$0xf]
        %v1222 = vld [vmem:[%s1206 + $0x3c] sm:$0xf]
        %v1223 = vld [vmem:[%s1206 + $0x40] sm:$0xf]
        %v1224 = vld [vmem:[%s1206 + $0x44] sm:$0xf]
        %v1225 = vld [vmem:[%s1206 + $0x48] sm:$0xf]
        %v1226 = vld [vmem:[%s1206 + $0x4c] sm:$0xf]
        %v1227 = vld [vmem:[%s1206 + $0x50] sm:$0xf]
        %v1228 = vld [vmem:[%s1206 + $0x54] sm:$0xf]
        %v1229 = vld [vmem:[%s1206 + $0x58] sm:$0xf]
        %v1230 = vld [vmem:[%s1206 + $0x5c] sm:$0xf]
        %v1231 = vld [vmem:[%s1206 + $0x60] sm:$0xf]
        %v1232 = vld [vmem:[%s1206 + $0x64] sm:$0xf]
        %v1233 = vld [vmem:[%s1206 + $0x68] sm:$0xf]
        %v1234 = vld [vmem:[%s1206 + $0x6c] sm:$0xf]
        %v1235 = vld [vmem:[%s1206 + $0x70] sm:$0xf]
        %v1236 = vld [vmem:[%s1206 + $0x74] sm:$0xf]
        %v1237 = vld [vmem:[%s1206 + $0x78] sm:$0xf]
        %v1238 = vld [vmem:[%s1206 + $0x7c] sm:$0xf]
        %v1239 = vld [vmem:[%s1206 + $0x80] sm:$0xf]
        %v1240 = vld [vmem:[%s1206 + $0x84] sm:$0xf]
        %v1241 = vld [vmem:[%s1206 + $0x88] sm:$0xf]
        %v1242 = vld [vmem:[%s1206 + $0x8c] sm:$0xf]
        %v1243 = vld [vmem:[%s1206 + $0x90] sm:$0xf]
        %v1244 = vld [vmem:[%s1206 + $0x94] sm:$0xf]
        %v1245 = vld [vmem:[%s1206 + $0x98] sm:$0xf]
        %v1246 = vld [vmem:[%s1206 + $0x9c] sm:$0xf]
        %v1247 = vld [vmem:[%s1206 + $0xa0] sm:$0xf]
        %v1248 = vld [vmem:[%s1206 + $0xa4] sm:$0xf]
        %v1249 = vld [vmem:[%s1206 + $0xa8] sm:$0xf]
        %v1250 = vld [vmem:[%s1206 + $0xac] sm:$0xf]
        %v1251 = vld [vmem:[%s1206 + $0xb0] sm:$0xf]
        %v1252 = vld [vmem:[%s1206 + $0xb4] sm:$0xf]
        %v1253 = vld [vmem:[%s1206 + $0xb8] sm:$0xf]
        %v1254 = vld [vmem:[%s1206 + $0xbc] sm:$0xf]
        %v1255 = vld [vmem:[%s1206 + $0xc0] sm:$0xf]
        %v1256 = vld [vmem:[%s1206 + $0xc4] sm:$0xf]
        %v1257 = vld [vmem:[%s1206 + $0xc8] sm:$0xf]
        %v1258 = vld [vmem:[%s1206 + $0xcc] sm:$0xf]
        %v1259 = vld [vmem:[%s1206 + $0xd0] sm:$0xf]
        %v1260 = vld [vmem:[%s1206 + $0xd4] sm:$0xf]
        %v1261 = vld [vmem:[%s1206 + $0xd8] sm:$0xf]
        %v1262 = vld [vmem:[%s1206 + $0xdc] sm:$0xf]
        %v1263 = vld [vmem:[%s1206 + $0xe0] sm:$0xf]
        %v1264 = vld [vmem:[%s1206 + $0xe4] sm:$0xf]
        %v1265 = vld [vmem:[%s1206 + $0xe8] sm:$0xf]
        %v1266 = vld [vmem:[%s1206 + $0xec] sm:$0xf]
        %v1267 = vld [vmem:[%s1206 + $0xf0] sm:$0xf]
        %v1268 = vld [vmem:[%s1206 + $0xf4] sm:$0xf]
        %v1269 = vld [vmem:[%s1206 + $0xf8] sm:$0xf]
        %v1270 = vld [vmem:[%s1206 + $0xfc] sm:$0xf]
        %v1271 = vunpack.c.l.bf16 %v1207
        %v1272 = vunpack.c.l.bf16 %v1208
        %v1273 = vunpack.c.l.bf16 %v1209
        %v1274 = vunpack.c.l.bf16 %v1210
        %v1275 = vunpack.c.l.bf16 %v1211
        %v1276 = vunpack.c.l.bf16 %v1212
        %v1277 = vunpack.c.l.bf16 %v1213
        %v1278 = vunpack.c.l.bf16 %v1214
        %v1279 = vunpack.c.l.bf16 %v1215
        %v1280 = vunpack.c.l.bf16 %v1216
        %v1281 = vunpack.c.l.bf16 %v1217
        %v1282 = vunpack.c.l.bf16 %v1218
        %v1283 = vunpack.c.l.bf16 %v1219
        %v1284 = vunpack.c.l.bf16 %v1220
        %v1285 = vunpack.c.l.bf16 %v1221
        %v1286 = vunpack.c.l.bf16 %v1222
        %v1287 = vunpack.c.l.bf16 %v1223
        %v1288 = vunpack.c.l.bf16 %v1224
        %v1289 = vunpack.c.l.bf16 %v1225
        %v1290 = vunpack.c.l.bf16 %v1226
        %v1291 = vunpack.c.l.bf16 %v1227
        %v1292 = vunpack.c.l.bf16 %v1228
        %v1293 = vunpack.c.l.bf16 %v1229
        %v1294 = vunpack.c.l.bf16 %v1230
        %v1295 = vunpack.c.l.bf16 %v1231
        %v1296 = vunpack.c.l.bf16 %v1232
        %v1297 = vunpack.c.l.bf16 %v1233
        %v1298 = vunpack.c.l.bf16 %v1234
        %v1299 = vunpack.c.l.bf16 %v1235
        %v1300 = vunpack.c.l.bf16 %v1236
        %v1301 = vunpack.c.l.bf16 %v1237
        %v1302 = vunpack.c.l.bf16 %v1238
        %v1303 = vunpack.c.l.bf16 %v1239
        %v1304 = vunpack.c.l.bf16 %v1240
        %v1305 = vunpack.c.l.bf16 %v1241
        %v1306 = vunpack.c.l.bf16 %v1242
        %v1307 = vunpack.c.l.bf16 %v1243
        %v1308 = vunpack.c.l.bf16 %v1244
        %v1309 = vunpack.c.l.bf16 %v1245
        %v1310 = vunpack.c.l.bf16 %v1246
        %v1311 = vunpack.c.l.bf16 %v1247
        %v1312 = vunpack.c.l.bf16 %v1248
        %v1313 = vunpack.c.l.bf16 %v1249
        %v1314 = vunpack.c.l.bf16 %v1250
        %v1315 = vunpack.c.l.bf16 %v1251
        %v1316 = vunpack.c.l.bf16 %v1252
        %v1317 = vunpack.c.l.bf16 %v1253
        %v1318 = vunpack.c.l.bf16 %v1254
        %v1319 = vunpack.c.l.bf16 %v1255
        %v1320 = vunpack.c.l.bf16 %v1256
        %v1321 = vunpack.c.l.bf16 %v1257
        %v1322 = vunpack.c.l.bf16 %v1258
        %v1323 = vunpack.c.l.bf16 %v1259
        %v1324 = vunpack.c.l.bf16 %v1260
        %v1325 = vunpack.c.l.bf16 %v1261
        %v1326 = vunpack.c.l.bf16 %v1262
        %v1327 = vunpack.c.l.bf16 %v1263
        %v1328 = vunpack.c.l.bf16 %v1264
        %v1329 = vunpack.c.l.bf16 %v1265
        %v1330 = vunpack.c.l.bf16 %v1266
        %v1331 = vunpack.c.l.bf16 %v1267
        %v1332 = vunpack.c.l.bf16 %v1268
        %v1333 = vunpack.c.l.bf16 %v1269
        %v1334 = vunpack.c.l.bf16 %v1270
        %v1335 = vld [vmem:[#allocation2] sm:$0x1]
        %v1336 = vmul.f32 %v1335, 0.001953125
        %v1337 = vld [vmem:[#allocation3] sm:$0x1]
        %v1338 = vmul.f32 %v1337, 0.001953125
        %v1339 = vmul.f32 %v1336, %v1336
        %v1340 = vsub.f32 %v1338, %v1339
        %v1341 = vmax.f32 %v1340, 0.0
        %v1342 = vld [vmem:[%s2] sm:$0x1]
        %v1343 = vadd.f32 %v1341, 1e-05
        %v1344 = vrsqrt.pop %v1343
        %v1345 = vmul.f32 %v1344, %v1343
        %v1346 = vmul.f32 %v1345, %v1344
        %v1347 = vmul.f32 0.5, %v1346
        %v1348 = vsub.f32 1.5, %v1347
        %v1349 = vmul.f32 %v1344, %v1348
        %vm1350 = vweird.f32 %v1343
        %vm1351 = vweird.f32 %v1344
        %vm1352 = vmor %vm1350, %vm1351
        %v1353 = vsel %vm1352, %v1344, %v1349
        %v1354 = vmul.f32 %v1342, %v1353
        %v1355 = vld [vmem:[%s3] sm:$0x1]
        %v1356 = vmul.f32 %v1336, %v1354
        %v1357 = vsub.f32 %v1355, %v1356
        %v1359 = vperm.slane %v1354, 0
        %v1361 = vmul.f32 %v1271, %v1359
        %v1362 = vmul.f32 %v1272, %v1359
        %v1363 = vmul.f32 %v1273, %v1359
        %v1364 = vmul.f32 %v1274, %v1359
        %v1365 = vmul.f32 %v1275, %v1359
        %v1366 = vmul.f32 %v1276, %v1359
        %v1367 = vmul.f32 %v1277, %v1359
        %v1368 = vmul.f32 %v1278, %v1359
        %v1369 = vmul.f32 %v1279, %v1359
        %v1370 = vmul.f32 %v1280, %v1359
        %v1371 = vmul.f32 %v1281, %v1359
        %v1372 = vmul.f32 %v1282, %v1359
        %v1373 = vmul.f32 %v1283, %v1359
        %v1374 = vmul.f32 %v1284, %v1359
        %v1375 = vmul.f32 %v1285, %v1359
        %v1376 = vmul.f32 %v1286, %v1359
        %v1377 = vmul.f32 %v1287, %v1359
        %v1378 = vmul.f32 %v1288, %v1359
        %v1379 = vmul.f32 %v1289, %v1359
        %v1380 = vmul.f32 %v1290, %v1359
        %v1381 = vmul.f32 %v1291, %v1359
        %v1382 = vmul.f32 %v1292, %v1359
        %v1383 = vmul.f32 %v1293, %v1359
        %v1384 = vmul.f32 %v1294, %v1359
        %v1385 = vmul.f32 %v1295, %v1359
        %v1386 = vmul.f32 %v1296, %v1359
        %v1387 = vmul.f32 %v1297, %v1359
        %v1388 = vmul.f32 %v1298, %v1359
        %v1389 = vmul.f32 %v1299, %v1359
        %v1390 = vmul.f32 %v1300, %v1359
        %v1391 = vmul.f32 %v1301, %v1359
        %v1392 = vmul.f32 %v1302, %v1359
        %v1393 = vmul.f32 %v1303, %v1359
        %v1394 = vmul.f32 %v1304, %v1359
        %v1395 = vmul.f32 %v1305, %v1359
        %v1396 = vmul.f32 %v1306, %v1359
        %v1397 = vmul.f32 %v1307, %v1359
        %v1398 = vmul.f32 %v1308, %v1359
        %v1399 = vmul.f32 %v1309, %v1359
        %v1400 = vmul.f32 %v1310, %v1359
        %v1401 = vmul.f32 %v1311, %v1359
        %v1402 = vmul.f32 %v1312, %v1359
        %v1403 = vmul.f32 %v1313, %v1359
        %v1404 = vmul.f32 %v1314, %v1359
        %v1405 = vmul.f32 %v1315, %v1359
        %v1406 = vmul.f32 %v1316, %v1359
        %v1407 = vmul.f32 %v1317, %v1359
        %v1408 = vmul.f32 %v1318, %v1359
        %v1409 = vmul.f32 %v1319, %v1359
        %v1410 = vmul.f32 %v1320, %v1359
        %v1411 = vmul.f32 %v1321, %v1359
        %v1412 = vmul.f32 %v1322, %v1359
        %v1413 = vmul.f32 %v1323, %v1359
        %v1414 = vmul.f32 %v1324, %v1359
        %v1415 = vmul.f32 %v1325, %v1359
        %v1416 = vmul.f32 %v1326, %v1359
        %v1417 = vmul.f32 %v1327, %v1359
        %v1418 = vmul.f32 %v1328, %v1359
        %v1419 = vmul.f32 %v1329, %v1359
        %v1420 = vmul.f32 %v1330, %v1359
        %v1421 = vmul.f32 %v1331, %v1359
        %v1422 = vmul.f32 %v1332, %v1359
        %v1423 = vmul.f32 %v1333, %v1359
        %v1424 = vmul.f32 %v1334, %v1359
        %v1426 = vperm.slane %v1357, 0
        %v1428 = vadd.f32 %v1361, %v1426
        %v1429 = vadd.f32 %v1362, %v1426
        %v1430 = vadd.f32 %v1363, %v1426
        %v1431 = vadd.f32 %v1364, %v1426
        %v1432 = vadd.f32 %v1365, %v1426
        %v1433 = vadd.f32 %v1366, %v1426
        %v1434 = vadd.f32 %v1367, %v1426
        %v1435 = vadd.f32 %v1368, %v1426
        %v1436 = vadd.f32 %v1369, %v1426
        %v1437 = vadd.f32 %v1370, %v1426
        %v1438 = vadd.f32 %v1371, %v1426
        %v1439 = vadd.f32 %v1372, %v1426
        %v1440 = vadd.f32 %v1373, %v1426
        %v1441 = vadd.f32 %v1374, %v1426
        %v1442 = vadd.f32 %v1375, %v1426
        %v1443 = vadd.f32 %v1376, %v1426
        %v1444 = vadd.f32 %v1377, %v1426
        %v1445 = vadd.f32 %v1378, %v1426
        %v1446 = vadd.f32 %v1379, %v1426
        %v1447 = vadd.f32 %v1380, %v1426
        %v1448 = vadd.f32 %v1381, %v1426
        %v1449 = vadd.f32 %v1382, %v1426
        %v1450 = vadd.f32 %v1383, %v1426
        %v1451 = vadd.f32 %v1384, %v1426
        %v1452 = vadd.f32 %v1385, %v1426
        %v1453 = vadd.f32 %v1386, %v1426
        %v1454 = vadd.f32 %v1387, %v1426
        %v1455 = vadd.f32 %v1388, %v1426
        %v1456 = vadd.f32 %v1389, %v1426
        %v1457 = vadd.f32 %v1390, %v1426
        %v1458 = vadd.f32 %v1391, %v1426
        %v1459 = vadd.f32 %v1392, %v1426
        %v1460 = vadd.f32 %v1393, %v1426
        %v1461 = vadd.f32 %v1394, %v1426
        %v1462 = vadd.f32 %v1395, %v1426
        %v1463 = vadd.f32 %v1396, %v1426
        %v1464 = vadd.f32 %v1397, %v1426
        %v1465 = vadd.f32 %v1398, %v1426
        %v1466 = vadd.f32 %v1399, %v1426
        %v1467 = vadd.f32 %v1400, %v1426
        %v1468 = vadd.f32 %v1401, %v1426
        %v1469 = vadd.f32 %v1402, %v1426
        %v1470 = vadd.f32 %v1403, %v1426
        %v1471 = vadd.f32 %v1404, %v1426
        %v1472 = vadd.f32 %v1405, %v1426
        %v1473 = vadd.f32 %v1406, %v1426
        %v1474 = vadd.f32 %v1407, %v1426
        %v1475 = vadd.f32 %v1408, %v1426
        %v1476 = vadd.f32 %v1409, %v1426
        %v1477 = vadd.f32 %v1410, %v1426
        %v1478 = vadd.f32 %v1411, %v1426
        %v1479 = vadd.f32 %v1412, %v1426
        %v1480 = vadd.f32 %v1413, %v1426
        %v1481 = vadd.f32 %v1414, %v1426
        %v1482 = vadd.f32 %v1415, %v1426
        %v1483 = vadd.f32 %v1416, %v1426
        %v1484 = vadd.f32 %v1417, %v1426
        %v1485 = vadd.f32 %v1418, %v1426
        %v1486 = vadd.f32 %v1419, %v1426
        %v1487 = vadd.f32 %v1420, %v1426
        %v1488 = vadd.f32 %v1421, %v1426
        %v1489 = vadd.f32 %v1422, %v1426
        %v1490 = vadd.f32 %v1423, %v1426
        %v1491 = vadd.f32 %v1424, %v1426
        %v1492 = vld [vmem:[%s304] sm:$0xf]
        %v1493 = vld [vmem:[%s304 + $0x4] sm:$0xf]
        %v1494 = vld [vmem:[%s304 + $0x8] sm:$0xf]
        %v1495 = vld [vmem:[%s304 + $0xc] sm:$0xf]
        %v1496 = vld [vmem:[%s304 + $0x10] sm:$0xf]
        %v1497 = vld [vmem:[%s304 + $0x14] sm:$0xf]
        %v1498 = vld [vmem:[%s304 + $0x18] sm:$0xf]
        %v1499 = vld [vmem:[%s304 + $0x1c] sm:$0xf]
        %v1500 = vld [vmem:[%s304 + $0x20] sm:$0xf]
        %v1501 = vld [vmem:[%s304 + $0x24] sm:$0xf]
        %v1502 = vld [vmem:[%s304 + $0x28] sm:$0xf]
        %v1503 = vld [vmem:[%s304 + $0x2c] sm:$0xf]
        %v1504 = vld [vmem:[%s304 + $0x30] sm:$0xf]
        %v1505 = vld [vmem:[%s304 + $0x34] sm:$0xf]
        %v1506 = vld [vmem:[%s304 + $0x38] sm:$0xf]
        %v1507 = vld [vmem:[%s304 + $0x3c] sm:$0xf]
        %v1508 = vld [vmem:[%s304 + $0x40] sm:$0xf]
        %v1509 = vld [vmem:[%s304 + $0x44] sm:$0xf]
        %v1510 = vld [vmem:[%s304 + $0x48] sm:$0xf]
        %v1511 = vld [vmem:[%s304 + $0x4c] sm:$0xf]
        %v1512 = vld [vmem:[%s304 + $0x50] sm:$0xf]
        %v1513 = vld [vmem:[%s304 + $0x54] sm:$0xf]
        %v1514 = vld [vmem:[%s304 + $0x58] sm:$0xf]
        %v1515 = vld [vmem:[%s304 + $0x5c] sm:$0xf]
        %v1516 = vld [vmem:[%s304 + $0x60] sm:$0xf]
        %v1517 = vld [vmem:[%s304 + $0x64] sm:$0xf]
        %v1518 = vld [vmem:[%s304 + $0x68] sm:$0xf]
        %v1519 = vld [vmem:[%s304 + $0x6c] sm:$0xf]
        %v1520 = vld [vmem:[%s304 + $0x70] sm:$0xf]
        %v1521 = vld [vmem:[%s304 + $0x74] sm:$0xf]
        %v1522 = vld [vmem:[%s304 + $0x78] sm:$0xf]
        %v1523 = vld [vmem:[%s304 + $0x7c] sm:$0xf]
        %v1524 = vld [vmem:[%s304 + $0x80] sm:$0xf]
        %v1525 = vld [vmem:[%s304 + $0x84] sm:$0xf]
        %v1526 = vld [vmem:[%s304 + $0x88] sm:$0xf]
        %v1527 = vld [vmem:[%s304 + $0x8c] sm:$0xf]
        %v1528 = vld [vmem:[%s304 + $0x90] sm:$0xf]
        %v1529 = vld [vmem:[%s304 + $0x94] sm:$0xf]
        %v1530 = vld [vmem:[%s304 + $0x98] sm:$0xf]
        %v1531 = vld [vmem:[%s304 + $0x9c] sm:$0xf]
        %v1532 = vld [vmem:[%s304 + $0xa0] sm:$0xf]
        %v1533 = vld [vmem:[%s304 + $0xa4] sm:$0xf]
        %v1534 = vld [vmem:[%s304 + $0xa8] sm:$0xf]
        %v1535 = vld [vmem:[%s304 + $0xac] sm:$0xf]
        %v1536 = vld [vmem:[%s304 + $0xb0] sm:$0xf]
        %v1537 = vld [vmem:[%s304 + $0xb4] sm:$0xf]
        %v1538 = vld [vmem:[%s304 + $0xb8] sm:$0xf]
        %v1539 = vld [vmem:[%s304 + $0xbc] sm:$0xf]
        %v1540 = vld [vmem:[%s304 + $0xc0] sm:$0xf]
        %v1541 = vld [vmem:[%s304 + $0xc4] sm:$0xf]
        %v1542 = vld [vmem:[%s304 + $0xc8] sm:$0xf]
        %v1543 = vld [vmem:[%s304 + $0xcc] sm:$0xf]
        %v1544 = vld [vmem:[%s304 + $0xd0] sm:$0xf]
        %v1545 = vld [vmem:[%s304 + $0xd4] sm:$0xf]
        %v1546 = vld [vmem:[%s304 + $0xd8] sm:$0xf]
        %v1547 = vld [vmem:[%s304 + $0xdc] sm:$0xf]
        %v1548 = vld [vmem:[%s304 + $0xe0] sm:$0xf]
        %v1549 = vld [vmem:[%s304 + $0xe4] sm:$0xf]
        %v1550 = vld [vmem:[%s304 + $0xe8] sm:$0xf]
        %v1551 = vld [vmem:[%s304 + $0xec] sm:$0xf]
        %v1552 = vld [vmem:[%s304 + $0xf0] sm:$0xf]
        %v1553 = vld [vmem:[%s304 + $0xf4] sm:$0xf]
        %v1554 = vld [vmem:[%s304 + $0xf8] sm:$0xf]
        %v1555 = vld [vmem:[%s304 + $0xfc] sm:$0xf]
        %v1556 = vunpack.c.l.bf16 %v1492
        %v1557 = vunpack.c.l.bf16 %v1493
        %v1558 = vunpack.c.l.bf16 %v1494
        %v1559 = vunpack.c.l.bf16 %v1495
        %v1560 = vunpack.c.l.bf16 %v1496
        %v1561 = vunpack.c.l.bf16 %v1497
        %v1562 = vunpack.c.l.bf16 %v1498
        %v1563 = vunpack.c.l.bf16 %v1499
        %v1564 = vunpack.c.l.bf16 %v1500
        %v1565 = vunpack.c.l.bf16 %v1501
        %v1566 = vunpack.c.l.bf16 %v1502
        %v1567 = vunpack.c.l.bf16 %v1503
        %v1568 = vunpack.c.l.bf16 %v1504
        %v1569 = vunpack.c.l.bf16 %v1505
        %v1570 = vunpack.c.l.bf16 %v1506
        %v1571 = vunpack.c.l.bf16 %v1507
        %v1572 = vunpack.c.l.bf16 %v1508
        %v1573 = vunpack.c.l.bf16 %v1509
        %v1574 = vunpack.c.l.bf16 %v1510
        %v1575 = vunpack.c.l.bf16 %v1511
        %v1576 = vunpack.c.l.bf16 %v1512
        %v1577 = vunpack.c.l.bf16 %v1513
        %v1578 = vunpack.c.l.bf16 %v1514
        %v1579 = vunpack.c.l.bf16 %v1515
        %v1580 = vunpack.c.l.bf16 %v1516
        %v1581 = vunpack.c.l.bf16 %v1517
        %v1582 = vunpack.c.l.bf16 %v1518
        %v1583 = vunpack.c.l.bf16 %v1519
        %v1584 = vunpack.c.l.bf16 %v1520
        %v1585 = vunpack.c.l.bf16 %v1521
        %v1586 = vunpack.c.l.bf16 %v1522
        %v1587 = vunpack.c.l.bf16 %v1523
        %v1588 = vunpack.c.l.bf16 %v1524
        %v1589 = vunpack.c.l.bf16 %v1525
        %v1590 = vunpack.c.l.bf16 %v1526
        %v1591 = vunpack.c.l.bf16 %v1527
        %v1592 = vunpack.c.l.bf16 %v1528
        %v1593 = vunpack.c.l.bf16 %v1529
        %v1594 = vunpack.c.l.bf16 %v1530
        %v1595 = vunpack.c.l.bf16 %v1531
        %v1596 = vunpack.c.l.bf16 %v1532
        %v1597 = vunpack.c.l.bf16 %v1533
        %v1598 = vunpack.c.l.bf16 %v1534
        %v1599 = vunpack.c.l.bf16 %v1535
        %v1600 = vunpack.c.l.bf16 %v1536
        %v1601 = vunpack.c.l.bf16 %v1537
        %v1602 = vunpack.c.l.bf16 %v1538
        %v1603 = vunpack.c.l.bf16 %v1539
        %v1604 = vunpack.c.l.bf16 %v1540
        %v1605 = vunpack.c.l.bf16 %v1541
        %v1606 = vunpack.c.l.bf16 %v1542
        %v1607 = vunpack.c.l.bf16 %v1543
        %v1608 = vunpack.c.l.bf16 %v1544
        %v1609 = vunpack.c.l.bf16 %v1545
        %v1610 = vunpack.c.l.bf16 %v1546
        %v1611 = vunpack.c.l.bf16 %v1547
        %v1612 = vunpack.c.l.bf16 %v1548
        %v1613 = vunpack.c.l.bf16 %v1549
        %v1614 = vunpack.c.l.bf16 %v1550
        %v1615 = vunpack.c.l.bf16 %v1551
        %v1616 = vunpack.c.l.bf16 %v1552
        %v1617 = vunpack.c.l.bf16 %v1553
        %v1618 = vunpack.c.l.bf16 %v1554
        %v1619 = vunpack.c.l.bf16 %v1555
        %v1620 = vadd.f32 %v1428, %v1556
        %v1621 = vadd.f32 %v1429, %v1557
        %v1622 = vadd.f32 %v1430, %v1558
        %v1623 = vadd.f32 %v1431, %v1559
        %v1624 = vadd.f32 %v1432, %v1560
        %v1625 = vadd.f32 %v1433, %v1561
        %v1626 = vadd.f32 %v1434, %v1562
        %v1627 = vadd.f32 %v1435, %v1563
        %v1628 = vadd.f32 %v1436, %v1564
        %v1629 = vadd.f32 %v1437, %v1565
        %v1630 = vadd.f32 %v1438, %v1566
        %v1631 = vadd.f32 %v1439, %v1567
        %v1632 = vadd.f32 %v1440, %v1568
        %v1633 = vadd.f32 %v1441, %v1569
        %v1634 = vadd.f32 %v1442, %v1570
        %v1635 = vadd.f32 %v1443, %v1571
        %v1636 = vadd.f32 %v1444, %v1572
        %v1637 = vadd.f32 %v1445, %v1573
        %v1638 = vadd.f32 %v1446, %v1574
        %v1639 = vadd.f32 %v1447, %v1575
        %v1640 = vadd.f32 %v1448, %v1576
        %v1641 = vadd.f32 %v1449, %v1577
        %v1642 = vadd.f32 %v1450, %v1578
        %v1643 = vadd.f32 %v1451, %v1579
        %v1644 = vadd.f32 %v1452, %v1580
        %v1645 = vadd.f32 %v1453, %v1581
        %v1646 = vadd.f32 %v1454, %v1582
        %v1647 = vadd.f32 %v1455, %v1583
        %v1648 = vadd.f32 %v1456, %v1584
        %v1649 = vadd.f32 %v1457, %v1585
        %v1650 = vadd.f32 %v1458, %v1586
        %v1651 = vadd.f32 %v1459, %v1587
        %v1652 = vadd.f32 %v1460, %v1588
        %v1653 = vadd.f32 %v1461, %v1589
        %v1654 = vadd.f32 %v1462, %v1590
        %v1655 = vadd.f32 %v1463, %v1591
        %v1656 = vadd.f32 %v1464, %v1592
        %v1657 = vadd.f32 %v1465, %v1593
        %v1658 = vadd.f32 %v1466, %v1594
        %v1659 = vadd.f32 %v1467, %v1595
        %v1660 = vadd.f32 %v1468, %v1596
        %v1661 = vadd.f32 %v1469, %v1597
        %v1662 = vadd.f32 %v1470, %v1598
        %v1663 = vadd.f32 %v1471, %v1599
        %v1664 = vadd.f32 %v1472, %v1600
        %v1665 = vadd.f32 %v1473, %v1601
        %v1666 = vadd.f32 %v1474, %v1602
        %v1667 = vadd.f32 %v1475, %v1603
        %v1668 = vadd.f32 %v1476, %v1604
        %v1669 = vadd.f32 %v1477, %v1605
        %v1670 = vadd.f32 %v1478, %v1606
        %v1671 = vadd.f32 %v1479, %v1607
        %v1672 = vadd.f32 %v1480, %v1608
        %v1673 = vadd.f32 %v1481, %v1609
        %v1674 = vadd.f32 %v1482, %v1610
        %v1675 = vadd.f32 %v1483, %v1611
        %v1676 = vadd.f32 %v1484, %v1612
        %v1677 = vadd.f32 %v1485, %v1613
        %v1678 = vadd.f32 %v1486, %v1614
        %v1679 = vadd.f32 %v1487, %v1615
        %v1680 = vadd.f32 %v1488, %v1616
        %v1681 = vadd.f32 %v1489, %v1617
        %v1682 = vadd.f32 %v1490, %v1618
        %v1683 = vadd.f32 %v1491, %v1619
        %vm1684 = vcmp.ge.f32.partialorder %v1620, 0.0
        %vm1685 = vcmp.ge.f32.partialorder %v1621, 0.0
        %vm1686 = vcmp.ge.f32.partialorder %v1622, 0.0
        %vm1687 = vcmp.ge.f32.partialorder %v1623, 0.0
        %vm1688 = vcmp.ge.f32.partialorder %v1624, 0.0
        %vm1689 = vcmp.ge.f32.partialorder %v1625, 0.0
        %vm1690 = vcmp.ge.f32.partialorder %v1626, 0.0
        %vm1691 = vcmp.ge.f32.partialorder %v1627, 0.0
        %vm1692 = vcmp.ge.f32.partialorder %v1628, 0.0
        %vm1693 = vcmp.ge.f32.partialorder %v1629, 0.0
        %vm1694 = vcmp.ge.f32.partialorder %v1630, 0.0
        %vm1695 = vcmp.ge.f32.partialorder %v1631, 0.0
        %vm1696 = vcmp.ge.f32.partialorder %v1632, 0.0
        %vm1697 = vcmp.ge.f32.partialorder %v1633, 0.0
        %vm1698 = vcmp.ge.f32.partialorder %v1634, 0.0
        %vm1699 = vcmp.ge.f32.partialorder %v1635, 0.0
        %vm1700 = vcmp.ge.f32.partialorder %v1636, 0.0
        %vm1701 = vcmp.ge.f32.partialorder %v1637, 0.0
        %vm1702 = vcmp.ge.f32.partialorder %v1638, 0.0
        %vm1703 = vcmp.ge.f32.partialorder %v1639, 0.0
        %vm1704 = vcmp.ge.f32.partialorder %v1640, 0.0
        %vm1705 = vcmp.ge.f32.partialorder %v1641, 0.0
        %vm1706 = vcmp.ge.f32.partialorder %v1642, 0.0
        %vm1707 = vcmp.ge.f32.partialorder %v1643, 0.0
        %vm1708 = vcmp.ge.f32.partialorder %v1644, 0.0
        %vm1709 = vcmp.ge.f32.partialorder %v1645, 0.0
        %vm1710 = vcmp.ge.f32.partialorder %v1646, 0.0
        %vm1711 = vcmp.ge.f32.partialorder %v1647, 0.0
        %vm1712 = vcmp.ge.f32.partialorder %v1648, 0.0
        %vm1713 = vcmp.ge.f32.partialorder %v1649, 0.0
        %vm1714 = vcmp.ge.f32.partialorder %v1650, 0.0
        %vm1715 = vcmp.ge.f32.partialorder %v1651, 0.0
        %vm1716 = vcmp.ge.f32.partialorder %v1652, 0.0
        %vm1717 = vcmp.ge.f32.partialorder %v1653, 0.0
        %vm1718 = vcmp.ge.f32.partialorder %v1654, 0.0
        %vm1719 = vcmp.ge.f32.partialorder %v1655, 0.0
        %vm1720 = vcmp.ge.f32.partialorder %v1656, 0.0
        %vm1721 = vcmp.ge.f32.partialorder %v1657, 0.0
        %vm1722 = vcmp.ge.f32.partialorder %v1658, 0.0
        %vm1723 = vcmp.ge.f32.partialorder %v1659, 0.0
        %vm1724 = vcmp.ge.f32.partialorder %v1660, 0.0
        %vm1725 = vcmp.ge.f32.partialorder %v1661, 0.0
        %vm1726 = vcmp.ge.f32.partialorder %v1662, 0.0
        %vm1727 = vcmp.ge.f32.partialorder %v1663, 0.0
        %vm1728 = vcmp.ge.f32.partialorder %v1664, 0.0
        %vm1729 = vcmp.ge.f32.partialorder %v1665, 0.0
        %vm1730 = vcmp.ge.f32.partialorder %v1666, 0.0
        %vm1731 = vcmp.ge.f32.partialorder %v1667, 0.0
        %vm1732 = vcmp.ge.f32.partialorder %v1668, 0.0
        %vm1733 = vcmp.ge.f32.partialorder %v1669, 0.0
        %vm1734 = vcmp.ge.f32.partialorder %v1670, 0.0
        %vm1735 = vcmp.ge.f32.partialorder %v1671, 0.0
        %vm1736 = vcmp.ge.f32.partialorder %v1672, 0.0
        %vm1737 = vcmp.ge.f32.partialorder %v1673, 0.0
        %vm1738 = vcmp.ge.f32.partialorder %v1674, 0.0
        %vm1739 = vcmp.ge.f32.partialorder %v1675, 0.0
        %vm1740 = vcmp.ge.f32.partialorder %v1676, 0.0
        %vm1741 = vcmp.ge.f32.partialorder %v1677, 0.0
        %vm1742 = vcmp.ge.f32.partialorder %v1678, 0.0
        %vm1743 = vcmp.ge.f32.partialorder %v1679, 0.0
        %vm1744 = vcmp.ge.f32.partialorder %v1680, 0.0
        %vm1745 = vcmp.ge.f32.partialorder %v1681, 0.0
        %vm1746 = vcmp.ge.f32.partialorder %v1682, 0.0
        %vm1747 = vcmp.ge.f32.partialorder %v1683, 0.0
        %v1748 = vld [vmem:[%s4] sm:$0x1]
        %v1750 = vperm.slane %v1748, 0
        %v1752 = vmul.f32 %v1750, %v1620
        %v1753 = vmul.f32 %v1750, %v1621
        %v1754 = vmul.f32 %v1750, %v1622
        %v1755 = vmul.f32 %v1750, %v1623
        %v1756 = vmul.f32 %v1750, %v1624
        %v1757 = vmul.f32 %v1750, %v1625
        %v1758 = vmul.f32 %v1750, %v1626
        %v1759 = vmul.f32 %v1750, %v1627
        %v1760 = vmul.f32 %v1750, %v1628
        %v1761 = vmul.f32 %v1750, %v1629
        %v1762 = vmul.f32 %v1750, %v1630
        %v1763 = vmul.f32 %v1750, %v1631
        %v1764 = vmul.f32 %v1750, %v1632
        %v1765 = vmul.f32 %v1750, %v1633
        %v1766 = vmul.f32 %v1750, %v1634
        %v1767 = vmul.f32 %v1750, %v1635
        %v1768 = vmul.f32 %v1750, %v1636
        %v1769 = vmul.f32 %v1750, %v1637
        %v1770 = vmul.f32 %v1750, %v1638
        %v1771 = vmul.f32 %v1750, %v1639
        %v1772 = vmul.f32 %v1750, %v1640
        %v1773 = vmul.f32 %v1750, %v1641
        %v1774 = vmul.f32 %v1750, %v1642
        %v1775 = vmul.f32 %v1750, %v1643
        %v1776 = vmul.f32 %v1750, %v1644
        %v1777 = vmul.f32 %v1750, %v1645
        %v1778 = vmul.f32 %v1750, %v1646
        %v1779 = vmul.f32 %v1750, %v1647
        %v1780 = vmul.f32 %v1750, %v1648
        %v1781 = vmul.f32 %v1750, %v1649
        %v1782 = vmul.f32 %v1750, %v1650
        %v1783 = vmul.f32 %v1750, %v1651
        %v1784 = vmul.f32 %v1750, %v1652
        %v1785 = vmul.f32 %v1750, %v1653
        %v1786 = vmul.f32 %v1750, %v1654
        %v1787 = vmul.f32 %v1750, %v1655
        %v1788 = vmul.f32 %v1750, %v1656
        %v1789 = vmul.f32 %v1750, %v1657
        %v1790 = vmul.f32 %v1750, %v1658
        %v1791 = vmul.f32 %v1750, %v1659
        %v1792 = vmul.f32 %v1750, %v1660
        %v1793 = vmul.f32 %v1750, %v1661
        %v1794 = vmul.f32 %v1750, %v1662
        %v1795 = vmul.f32 %v1750, %v1663
        %v1796 = vmul.f32 %v1750, %v1664
        %v1797 = vmul.f32 %v1750, %v1665
        %v1798 = vmul.f32 %v1750, %v1666
        %v1799 = vmul.f32 %v1750, %v1667
        %v1800 = vmul.f32 %v1750, %v1668
        %v1801 = vmul.f32 %v1750, %v1669
        %v1802 = vmul.f32 %v1750, %v1670
        %v1803 = vmul.f32 %v1750, %v1671
        %v1804 = vmul.f32 %v1750, %v1672
        %v1805 = vmul.f32 %v1750, %v1673
        %v1806 = vmul.f32 %v1750, %v1674
        %v1807 = vmul.f32 %v1750, %v1675
        %v1808 = vmul.f32 %v1750, %v1676
        %v1809 = vmul.f32 %v1750, %v1677
        %v1810 = vmul.f32 %v1750, %v1678
        %v1811 = vmul.f32 %v1750, %v1679
        %v1812 = vmul.f32 %v1750, %v1680
        %v1813 = vmul.f32 %v1750, %v1681
        %v1814 = vmul.f32 %v1750, %v1682
        %v1815 = vmul.f32 %v1750, %v1683
        %v1816 = vsel %vm1684, %v1620, %v1752
        %v1817 = vsel %vm1685, %v1621, %v1753
        %v1818 = vsel %vm1686, %v1622, %v1754
        %v1819 = vsel %vm1687, %v1623, %v1755
        %v1820 = vsel %vm1688, %v1624, %v1756
        %v1821 = vsel %vm1689, %v1625, %v1757
        %v1822 = vsel %vm1690, %v1626, %v1758
        %v1823 = vsel %vm1691, %v1627, %v1759
        %v1824 = vsel %vm1692, %v1628, %v1760
        %v1825 = vsel %vm1693, %v1629, %v1761
        %v1826 = vsel %vm1694, %v1630, %v1762
        %v1827 = vsel %vm1695, %v1631, %v1763
        %v1828 = vsel %vm1696, %v1632, %v1764
        %v1829 = vsel %vm1697, %v1633, %v1765
        %v1830 = vsel %vm1698, %v1634, %v1766
        %v1831 = vsel %vm1699, %v1635, %v1767
        %v1832 = vsel %vm1700, %v1636, %v1768
        %v1833 = vsel %vm1701, %v1637, %v1769
        %v1834 = vsel %vm1702, %v1638, %v1770
        %v1835 = vsel %vm1703, %v1639, %v1771
        %v1836 = vsel %vm1704, %v1640, %v1772
        %v1837 = vsel %vm1705, %v1641, %v1773
        %v1838 = vsel %vm1706, %v1642, %v1774
        %v1839 = vsel %vm1707, %v1643, %v1775
        %v1840 = vsel %vm1708, %v1644, %v1776
        %v1841 = vsel %vm1709, %v1645, %v1777
        %v1842 = vsel %vm1710, %v1646, %v1778
        %v1843 = vsel %vm1711, %v1647, %v1779
        %v1844 = vsel %vm1712, %v1648, %v1780
        %v1845 = vsel %vm1713, %v1649, %v1781
        %v1846 = vsel %vm1714, %v1650, %v1782
        %v1847 = vsel %vm1715, %v1651, %v1783
        %v1848 = vsel %vm1716, %v1652, %v1784
        %v1849 = vsel %vm1717, %v1653, %v1785
        %v1850 = vsel %vm1718, %v1654, %v1786
        %v1851 = vsel %vm1719, %v1655, %v1787
        %v1852 = vsel %vm1720, %v1656, %v1788
        %v1853 = vsel %vm1721, %v1657, %v1789
        %v1854 = vsel %vm1722, %v1658, %v1790
        %v1855 = vsel %vm1723, %v1659, %v1791
        %v1856 = vsel %vm1724, %v1660, %v1792
        %v1857 = vsel %vm1725, %v1661, %v1793
        %v1858 = vsel %vm1726, %v1662, %v1794
        %v1859 = vsel %vm1727, %v1663, %v1795
        %v1860 = vsel %vm1728, %v1664, %v1796
        %v1861 = vsel %vm1729, %v1665, %v1797
        %v1862 = vsel %vm1730, %v1666, %v1798
        %v1863 = vsel %vm1731, %v1667, %v1799
        %v1864 = vsel %vm1732, %v1668, %v1800
        %v1865 = vsel %vm1733, %v1669, %v1801
        %v1866 = vsel %vm1734, %v1670, %v1802
        %v1867 = vsel %vm1735, %v1671, %v1803
        %v1868 = vsel %vm1736, %v1672, %v1804
        %v1869 = vsel %vm1737, %v1673, %v1805
        %v1870 = vsel %vm1738, %v1674, %v1806
        %v1871 = vsel %vm1739, %v1675, %v1807
        %v1872 = vsel %vm1740, %v1676, %v1808
        %v1873 = vsel %vm1741, %v1677, %v1809
        %v1874 = vsel %vm1742, %v1678, %v1810
        %v1875 = vsel %vm1743, %v1679, %v1811
        %v1876 = vsel %vm1744, %v1680, %v1812
        %v1877 = vsel %vm1745, %v1681, %v1813
        %v1878 = vsel %vm1746, %v1682, %v1814
        %v1879 = vsel %vm1747, %v1683, %v1815
        %1880 = vst [vmem:[%s312] sm:$0xff] %v1816
        %1881 = vst [vmem:[%s312 + $0x8] sm:$0xff] %v1817
        %1882 = vst [vmem:[%s312 + $0x10] sm:$0xff] %v1818
        %1883 = vst [vmem:[%s312 + $0x18] sm:$0xff] %v1819
        %1884 = vst [vmem:[%s312 + $0x20] sm:$0xff] %v1820
        %1885 = vst [vmem:[%s312 + $0x28] sm:$0xff] %v1821
        %1886 = vst [vmem:[%s312 + $0x30] sm:$0xff] %v1822
        %1887 = vst [vmem:[%s312 + $0x38] sm:$0xff] %v1823
        %1888 = vst [vmem:[%s312 + $0x40] sm:$0xff] %v1824
        %1889 = vst [vmem:[%s312 + $0x48] sm:$0xff] %v1825
        %1890 = vst [vmem:[%s312 + $0x50] sm:$0xff] %v1826
        %1891 = vst [vmem:[%s312 + $0x58] sm:$0xff] %v1827
        %1892 = vst [vmem:[%s312 + $0x60] sm:$0xff] %v1828
        %1893 = vst [vmem:[%s312 + $0x68] sm:$0xff] %v1829
        %1894 = vst [vmem:[%s312 + $0x70] sm:$0xff] %v1830
        %1895 = vst [vmem:[%s312 + $0x78] sm:$0xff] %v1831
        %1896 = vst [vmem:[%s312 + $0x80] sm:$0xff] %v1832
        %1897 = vst [vmem:[%s312 + $0x88] sm:$0xff] %v1833
        %1898 = vst [vmem:[%s312 + $0x90] sm:$0xff] %v1834
        %1899 = vst [vmem:[%s312 + $0x98] sm:$0xff] %v1835
        %1900 = vst [vmem:[%s312 + $0xa0] sm:$0xff] %v1836
        %1901 = vst [vmem:[%s312 + $0xa8] sm:$0xff] %v1837
        %1902 = vst [vmem:[%s312 + $0xb0] sm:$0xff] %v1838
        %1903 = vst [vmem:[%s312 + $0xb8] sm:$0xff] %v1839
        %1904 = vst [vmem:[%s312 + $0xc0] sm:$0xff] %v1840
        %1905 = vst [vmem:[%s312 + $0xc8] sm:$0xff] %v1841
        %1906 = vst [vmem:[%s312 + $0xd0] sm:$0xff] %v1842
        %1907 = vst [vmem:[%s312 + $0xd8] sm:$0xff] %v1843
        %1908 = vst [vmem:[%s312 + $0xe0] sm:$0xff] %v1844
        %1909 = vst [vmem:[%s312 + $0xe8] sm:$0xff] %v1845
        %1910 = vst [vmem:[%s312 + $0xf0] sm:$0xff] %v1846
        %1911 = vst [vmem:[%s312 + $0xf8] sm:$0xff] %v1847
        %1912 = vst [vmem:[%s312 + $0x100] sm:$0xff] %v1848
        %1913 = vst [vmem:[%s312 + $0x108] sm:$0xff] %v1849
        %1914 = vst [vmem:[%s312 + $0x110] sm:$0xff] %v1850
        %1915 = vst [vmem:[%s312 + $0x118] sm:$0xff] %v1851
        %1916 = vst [vmem:[%s312 + $0x120] sm:$0xff] %v1852
        %1917 = vst [vmem:[%s312 + $0x128] sm:$0xff] %v1853
        %1918 = vst [vmem:[%s312 + $0x130] sm:$0xff] %v1854
        %1919 = vst [vmem:[%s312 + $0x138] sm:$0xff] %v1855
        %1920 = vst [vmem:[%s312 + $0x140] sm:$0xff] %v1856
        %1921 = vst [vmem:[%s312 + $0x148] sm:$0xff] %v1857
        %1922 = vst [vmem:[%s312 + $0x150] sm:$0xff] %v1858
        %1923 = vst [vmem:[%s312 + $0x158] sm:$0xff] %v1859
        %1924 = vst [vmem:[%s312 + $0x160] sm:$0xff] %v1860
        %1925 = vst [vmem:[%s312 + $0x168] sm:$0xff] %v1861
        %1926 = vst [vmem:[%s312 + $0x170] sm:$0xff] %v1862
        %1927 = vst [vmem:[%s312 + $0x178] sm:$0xff] %v1863
        %1928 = vst [vmem:[%s312 + $0x180] sm:$0xff] %v1864
        %1929 = vst [vmem:[%s312 + $0x188] sm:$0xff] %v1865
        %1930 = vst [vmem:[%s312 + $0x190] sm:$0xff] %v1866
        %1931 = vst [vmem:[%s312 + $0x198] sm:$0xff] %v1867
        %1932 = vst [vmem:[%s312 + $0x1a0] sm:$0xff] %v1868
        %1933 = vst [vmem:[%s312 + $0x1a8] sm:$0xff] %v1869
        %1934 = vst [vmem:[%s312 + $0x1b0] sm:$0xff] %v1870
        %1935 = vst [vmem:[%s312 + $0x1b8] sm:$0xff] %v1871
        %1936 = vst [vmem:[%s312 + $0x1c0] sm:$0xff] %v1872
        %1937 = vst [vmem:[%s312 + $0x1c8] sm:$0xff] %v1873
        %1938 = vst [vmem:[%s312 + $0x1d0] sm:$0xff] %v1874
        %1939 = vst [vmem:[%s312 + $0x1d8] sm:$0xff] %v1875
        %1940 = vst [vmem:[%s312 + $0x1e0] sm:$0xff] %v1876
        %1941 = vst [vmem:[%s312 + $0x1e8] sm:$0xff] %v1877
        %1942 = vst [vmem:[%s312 + $0x1f0] sm:$0xff] %v1878
        %1943 = vst [vmem:[%s312 + $0x1f8] sm:$0xff] %v1879
      $region56: #{residual_forward.3} parent=43 // pred_fallthru
        _
      %s1944 = smul.u32 %s21, %s22
      %s1945 = smul.u32 64, %s1944
      %p1946 = scmp.lt.s32.totalorder %s1945, 63
      %s1947 = scalar_select %p1946, %s1945, 63
      %s1948 = smul.addr %s1947, 8
      %s1949 = scalar_lea.vmem %s6, %s1948
      // Predicated region
      $region57: #{residual_forward.3} parent=43 // pred_check
        %p1950 = pneg %p191
      $region58: #{residual_forward.3} parent=43 // pred_check_branch
        %1952 = sbr.rel (%p1950) target = $region60
      $region59: #{residual_forward.3} parent=43 // pred_region
        %s1953 = smul.u32 %s21, %s22
        %s1954 = smul.u32 64, %s1953
      $region60: #{residual_forward.3} parent=43 // pred_fallthru
        _
    $region44: #{residual_forward.3} parent=5 // pred_fallthru
      _
    %p1955 = scmp.le.s32.totalorder 2, %s12
    // Predicated region
    $region61: #{residual_forward.3} parent=5 // pred_check
      %p1956 = pneg %p1955
    $region62: #{residual_forward.3} parent=5 // pred_check_branch
      %1958 = sbr.rel (%p1956) target = $region64
    $region63: #{residual_forward.3} parent=5 // pred_region
      %s1959 = ssub.s32 %s12, 2
      // Predicated region
      $region65: #{residual_forward.3} parent=63 // pred_check
        %p1960 = pneg %p197
      $region66: #{residual_forward.3} parent=63 // pred_check_branch
        %1962 = sbr.rel (%p1960) target = $region68
      $region67: #{residual_forward.3} parent=63 // pred_region
        %s1963 = smul.u32 %s23, %s24
        %s1964 = smul.u32 64, %s1963
        %p1965 = scmp.lt.s32.totalorder %s1964, 63
        %s1966 = scalar_select %p1965, %s1964, 63
        %s1967 = smul.addr %s1966, 8
        %s1968 = scalar_lea.vmem %s6, %s1967
      $region68: #{residual_forward.3} parent=63 // pred_fallthru
        _
    $region64: #{residual_forward.3} parent=5 // pred_fallthru
      _
  $region6: #{residual_forward.3} parent=0 // loop_footer
    %s16 = sadd.s32 1, %s12
  $region7: #{residual_forward.3} parent=0 // loop_footer_branch
    %11 = sbr.rel target = $region3
  $region8: #{residual_forward.3} parent=0 // loop_exit
    _

</llo_original>
